<compile_context>
chip_gen: v7x
topology: tpu7x:2x2x1
jax: 0.10.0
libtpu: 0.0.40
codegen_flags: <defaults>
</compile_context>

<pallas_src>
import numpy as np
import jax
import jax.numpy as jnp
from jax.experimental import pallas as pl
from jax.experimental.pallas import tpu as pltpu


def _layer_norm(v, g, b, eps=1e-6):   # module spec: nn.LayerNorm(d_model, eps=1e-06)
    mu = jnp.mean(v, axis=-1, keepdims=True)
    var = jnp.mean((v - mu) ** 2, axis=-1, keepdims=True)
    return (v - mu) * jax.lax.rsqrt(var + eps) * g + b


def _make_kernel(heads, compute_dtype, approx_recip, with_attn):
    cdt = compute_dtype

    def kernel(x_ref, pad_ref, bias_ref, wq_ref, wk_ref, wv_ref, wo_ref,
               w1_ref, w2_ref, out_ref, *maybe_attn):
        attn_ref = maybe_attn[0] if with_attn else None
        _, D = x_ref.shape                       # x_ref: (Bb*T, D) f32
        Bb, _, T = pad_ref.shape                 # pad_ref: (Bb, 1, T) int32
        F = w1_ref.shape[1]
        dh = D // heads
        neg = jnp.float32(-1e18)                 # safe: scores stay f32

        x = x_ref[...]                           # (Bb*T, D) f32
        pad = pad_ref[...]                       # (Bb, 1, T) int32

        # ---- packed biases / LayerNorm params (one DMA instead of ten) ----
        bvals = bias_ref[...]                    # (16, max(D,F)) f32
        ln1_g, ln1_b = bvals[0:1, :D], bvals[1:2, :D]
        bq, bk, bv, bo = (bvals[2:3, :D], bvals[3:4, :D],
                          bvals[4:5, :D], bvals[5:6, :D])
        lnf_g, lnf_b = bvals[6:7, :D], bvals[7:8, :D]
        b2, b1 = bvals[8:9, :D], bvals[9:10, :F]

        # ---- layer_norm_1 + Q/K/V projections over all Bb*T rows at once ----
        xn = _layer_norm(x, ln1_g, ln1_b).astype(cdt)
        # 1/sqrt(dh) is already folded into Wq / bq on the wrapper side.
        q = jnp.dot(xn, wq_ref[...], preferred_element_type=jnp.float32) + bq
        k = jnp.dot(xn, wk_ref[...], preferred_element_type=jnp.float32) + bk
        v = jnp.dot(xn, wv_ref[...], preferred_element_type=jnp.float32) + bv

        # ---- causal mask rebuilt in-kernel (no (T,T) HBM traffic) ----
        row_id = jax.lax.broadcasted_iota(jnp.int32, (T, T), 0)
        col_id = jax.lax.broadcasted_iota(jnp.int32, (T, T), 1)
        causal = col_id > row_id

        wo = wo_ref[...]
        query_parts = []
        for b in range(Bb):                      # static unroll, batch-independent
            r = b * T
            # head-batched operands (H, T, dh)
            qh = jnp.stack([q[r:r + T, h * dh:(h + 1) * dh] for h in range(heads)],
                           0).astype(cdt)
            kh = jnp.stack([k[r:r + T, h * dh:(h + 1) * dh] for h in range(heads)],
                           0).astype(cdt)
            vh = jnp.stack([v[r:r + T, h * dh:(h + 1) * dh] for h in range(heads)],
                           0).astype(cdt)
            # one head-batched MXU issue for scores: (H,T,T)
            scores = jax.lax.dot_general(qh, kh, (((2,), (2,)), ((0,), (0,))),
                                         preferred_element_type=jnp.float32)
            masked = jnp.logical_or(causal, pad[b] > 0)        # (T, T)
            scores = jnp.where(masked[None], neg, scores)
            m = jnp.max(scores, axis=-1, keepdims=True)
            e = jnp.exp(scores - m)
            denom = jnp.sum(e, axis=-1, keepdims=True)
            attn = e * pl.reciprocal(denom, approx=approx_recip)
            if with_attn:
                attn_ref[b] = attn[0]                          # top_attn (head 0)
            # head-batched PV: (H,T,T) x (H,T,dh) -> (H,T,dh)
            ctx = jax.lax.dot_general(attn.astype(cdt), vh,
                                      (((2,), (1,)), ((0,), (0,))),
                                      preferred_element_type=jnp.float32)
            # merge heads -> (T, D); single K=D output projection
            ctx_td = jnp.concatenate([ctx[h] for h in range(heads)],
                                     axis=-1).astype(cdt)
            attn_out = jnp.dot(ctx_td, wo,
                               preferred_element_type=jnp.float32) + bo
            # residual (dropout = identity in eval)
            query_parts.append(attn_out + x[r:r + T, :])

        query = query_parts[0] if Bb == 1 else jnp.concatenate(query_parts, axis=0)

        # ---- PositionwiseFeedForward (own LayerNorm + residual), all rows ----
        qn = _layer_norm(query, lnf_g, lnf_b).astype(cdt)
        inter = jnp.maximum(
            jnp.dot(qn, w1_ref[...], preferred_element_type=jnp.float32) + b1, 0.0)
        ffn = jnp.dot(inter.astype(cdt), w2_ref[...],
                      preferred_element_type=jnp.float32) + b2
        out_ref[...] = ffn + query

    return kernel


def _pick_batch_block(B, T, max_block=8):
    # Keep the (Bb*T, D) block legal: rows must stay a multiple of 8 unless the
    # block equals the full array.
    if T % 8 != 0:
        return B
    for cand in range(min(B, max_block), 0, -1):
        if B % cand == 0:
            return cand
    return 1


def _vmem_limit_bytes():
    # ~3/4 of physical VMEM with headroom for compiler scratch / double buffers.
    # Critical on v7x (64 MiB per TensorCore); generous on v5e/v6e (128 MiB).
    try:
        cap = int(pltpu.get_tpu_info().vmem_capacity_bytes)
        return max(32 * 1024 * 1024, (cap * 3) // 4)
    except Exception:
        return 48 * 1024 * 1024


def transformer_decoder_layer(inputs, tgt_pad_mask, params, heads,
                              compute_dtype=jnp.float32,
                              exact_softmax_recip=True,
                              return_attn=True,
                              batch_block=8,
                              single_buffer_weights=True):
    B, T, D = inputs.shape
    F = params['w1'].shape[1]
    cdt = compute_dtype
    dh = D // heads
    scale = 1.0 / float(np.sqrt(dh))
    Bb = _pick_batch_block(B, T, batch_block)
    n_blocks = B // Bb
    vmem_limit = _vmem_limit_bytes()

    x_flat = inputs.reshape(B * T, D).astype(jnp.float32)
    pad_i32 = tgt_pad_mask.astype(jnp.int32)                 # (B, 1, T)

    # Weights in compute dtype (bf16 halves DMA/VMEM); fold 1/sqrt(dh) into Wq.
    wq = (params['wq'] * scale).astype(cdt)
    wk = params['wk'].astype(cdt)
    wv = params['wv'].astype(cdt)
    wo = params['wo'].astype(cdt)
    w1 = params['w1'].astype(cdt)
    w2 = params['w2'].astype(cdt)

    # Pack the 10 bias / LayerNorm vectors into one (16, max(D,F)) f32 block.
    Fmax = max(D, F)

    def _row(vec, width):
        v = jnp.asarray(vec, jnp.float32).reshape(1, width)
        return jnp.pad(v, ((0, 0), (0, Fmax - width)))

    bias_pack = jnp.concatenate([
        _row(params['ln1_g'], D), _row(params['ln1_b'], D),
        _row(params['bq'] * scale, D), _row(params['bk'], D),
        _row(params['bv'], D), _row(params['bo'], D),
        _row(params['lnf_g'], D), _row(params['lnf_b'], D),
        _row(params['b2'], D), _row(params['b1'], F),
    ], axis=0)
    bias_pack = jnp.pad(bias_pack, ((0, 16 - bias_pack.shape[0]), (0, 0)))

    kernel = _make_kernel(heads, cdt, not exact_softmax_recip, return_attn)

    def _call(single_buf):
        def const(shape):
            if single_buf:
                # Constant index_map -> single-buffer: no point double-buffering
                # weights that never change across grid steps (halves their VMEM).
                return pl.BlockSpec(shape, lambda i: (0, 0),
                                    pipeline_mode=pl.Buffered(1))
            return pl.BlockSpec(shape, lambda i: (0, 0))

        in_specs = [
            pl.BlockSpec((Bb * T, D), lambda i: (i, 0)),      # inputs (row slab)
            pl.BlockSpec((Bb, 1, T), lambda i: (i, 0, 0)),    # tgt_pad_mask
            const((16, Fmax)),                                # packed biases / LN
            const((D, D)), const((D, D)), const((D, D)),      # Wq, Wk, Wv
            const((D, D)),                                    # Wo
            const((D, F)), const((F, D)),                     # W1, W2
        ]
        if return_attn:
            out_shape = (jax.ShapeDtypeStruct((B * T, D), jnp.float32),
                         jax.ShapeDtypeStruct((B, T, T), jnp.float32))
            out_specs = (pl.BlockSpec((Bb * T, D), lambda i: (i, 0)),
                         pl.BlockSpec((Bb, T, T), lambda i: (i, 0, 0)))
        else:
            out_shape = jax.ShapeDtypeStruct((B * T, D), jnp.float32)
            out_specs = pl.BlockSpec((Bb * T, D), lambda i: (i, 0))

        res = pl.pallas_call(
            kernel,
            out_shape=out_shape,
            grid=(n_blocks,),
            in_specs=in_specs,
            out_specs=out_specs,
            compiler_params=pltpu.CompilerParams(
                dimension_semantics=("parallel",),            # batch blocks independent
                vmem_limit_bytes=vmem_limit),
        )(x_flat, pad_i32, bias_pack, wq, wk, wv, wo, w1, w2)
        jax.block_until_ready(res)
        return res

    if single_buffer_weights:
        try:
            res = _call(True)
        except Exception:
            # Older Pallas without pipeline_mode / Buffered(1): fall back.
            res = _call(False)
    else:
        res = _call(False)

    if return_attn:
        out_flat, top_attn = res
    else:
        out_flat, top_attn = res, None
    out = out_flat.reshape(B, T, D)
    attn_align = None  # with_align=False default path
    return out, top_attn, attn_align


# ---------------- pure-JAX reference (same math, f32, no Pallas) ----------------
def reference(inputs, tgt_pad_mask, params, heads):
    B, T, D = inputs.shape
    dh = D // heads
    future = jnp.triu(jnp.ones((T, T), jnp.int32), 1)
    dec_mask = (tgt_pad_mask.astype(jnp.int32) + future[None]) > 0  # (B,T,T)

    xn = _layer_norm(inputs, params['ln1_g'][0], params['ln1_b'][0])
    q = xn @ params['wq'] + params['bq'][0]
    k = xn @ params['wk'] + params['bk'][0]
    v = xn @ params['wv'] + params['bv'][0]
    qh = q.reshape(B, T, heads, dh).transpose(0, 2, 1, 3) / jnp.sqrt(float(dh))
    kh = k.reshape(B, T, heads, dh).transpose(0, 2, 1, 3)
    vh = v.reshape(B, T, heads, dh).transpose(0, 2, 1, 3)
    scores = jnp.einsum('bhqd,bhkd->bhqk', qh, kh)
    scores = jnp.where(dec_mask[:, None], -1e18, scores)
    attn = jax.nn.softmax(scores, axis=-1)
    ctx = jnp.einsum('bhqk,bhkd->bhqd', attn, vh)
    ctx = ctx.transpose(0, 2, 1, 3).reshape(B, T, D)
    attn_out = ctx @ params['wo'] + params['bo'][0]
    query = attn_out + inputs
    qn = _layer_norm(query, params['lnf_g'][0], params['lnf_b'][0])
    inter = jnp.maximum(qn @ params['w1'] + params['b1'][0], 0.0)
    out = inter @ params['w2'] + params['b2'][0] + query
    return out, attn[:, 0]


if __name__ == "__main__":
    B, T, D, H, F = 2, 8, 32, 4, 64   # batch, tgt_len, d_model, heads, d_ff

    key = jax.random.PRNGKey(0)
    ks = jax.random.split(key, 16)

    def rnd(k, shape, s=0.1):
        return jax.random.normal(k, shape, jnp.float32) * s

    params = dict(
        ln1_g=jnp.ones((1, D), jnp.float32), ln1_b=jnp.zeros((1, D), jnp.float32),
        wq=rnd(ks[0], (D, D)), bq=rnd(ks[1], (1, D)),
        wk=rnd(ks[2], (D, D)), bk=rnd(ks[3], (1, D)),
        wv=rnd(ks[4], (D, D)), bv=rnd(ks[5], (1, D)),
        wo=rnd(ks[6], (D, D)), bo=rnd(ks[7], (1, D)),
        lnf_g=jnp.ones((1, D), jnp.float32), lnf_b=jnp.zeros((1, D), jnp.float32),
        w1=rnd(ks[8], (D, F)), b1=rnd(ks[9], (1, F)),
        w2=rnd(ks[10], (F, D)), b2=rnd(ks[11], (1, D)),
    )
    # TODO(synk): context_attn / layer_norm_2 are built in __init__ but never
    # used by _forward (self-attention-only path), so they are not instantiated.

    inputs = jax.random.normal(ks[12], (B, T, D), jnp.float32)
    # tgt_pad_mask (B, 1, T): True = padded position. Batch 1 has 2 pads.
    lengths = jnp.array([T, T - 2])
    tgt_pad_mask = (jnp.arange(T)[None, None, :] >= lengths[:, None, None])

    ref_out, ref_attn = reference(inputs, tgt_pad_mask, params, H)

    # --- f32 compute, exact softmax reciprocal: tight check vs. reference ---
    out, top_attn, attn_align = transformer_decoder_layer(
        inputs, tgt_pad_mask, params, H,
        compute_dtype=jnp.float32, exact_softmax_recip=True)
    jax.block_until_ready((out, top_attn))
    assert np.allclose(np.asarray(out), np.asarray(ref_out), atol=1e-4), "f32 output mismatch"
    assert np.allclose(np.asarray(top_attn), np.asarray(ref_attn), atol=1e-4), "f32 attn mismatch"
    assert attn_align is None

    # --- bf16 MXU operands + approx (EUP) softmax reciprocal: production path ---
    out16, top16, _ = transformer_decoder_layer(
        inputs, tgt_pad_mask, params, H,
        compute_dtype=jnp.bfloat16, exact_softmax_recip=False)
    jax.block_until_ready((out16, top16))
    assert np.allclose(np.asarray(out16), np.asarray(ref_out), atol=3e-2), "bf16 output mismatch"
    assert np.allclose(np.asarray(top16), np.asarray(ref_attn), atol=3e-2), "bf16 attn mismatch"

    # --- lane-dense variant: drop top_attn output when the caller doesn't need it ---
    out_na, top_na, _ = transformer_decoder_layer(
        inputs, tgt_pad_mask, params, H,
        compute_dtype=jnp.float32, exact_softmax_recip=True, return_attn=False)
    jax.block_until_ready(out_na)
    assert top_na is None
    assert np.allclose(np.asarray(out_na), np.asarray(ref_out), atol=1e-4), "no-attn output mismatch"

    print("KERNEL_OK")
</pallas_src>

<mosaic_0001>
module attributes {stable_mosaic.version = 11 : i64} {
  func.func @kernel(%arg0: i32, %arg1: memref<16x32xf32, #tpu.memory_space<vmem>>, %arg2: memref<2x1x8xi32, #tpu.memory_space<vmem>>, %arg3: memref<16x64xf32, #tpu.memory_space<vmem>>, %arg4: memref<32x32xf32, #tpu.memory_space<vmem>>, %arg5: memref<32x32xf32, #tpu.memory_space<vmem>>, %arg6: memref<32x32xf32, #tpu.memory_space<vmem>>, %arg7: memref<32x32xf32, #tpu.memory_space<vmem>>, %arg8: memref<32x64xf32, #tpu.memory_space<vmem>>, %arg9: memref<64x32xf32, #tpu.memory_space<vmem>>, %arg10: memref<16x32xf32, #tpu.memory_space<vmem>>, %arg11: memref<2x8x8xf32, #tpu.memory_space<vmem>>) attributes {dimension_semantics = [#tpu.dimension_semantics<parallel>], iteration_bounds = array<i64: 1>, scalar_prefetch = 0 : i64, scratch_operands = 0 : i64, tpu.core_type = #tpu.core_type<tc>, window_params = [{transform_indices = @transform_0, window_bounds = array<i64: 16, 32>}, {transform_indices = @transform_1, window_bounds = array<i64: 2, 1, 8>}, {pipeline_mode = #tpu.pipeline_mode<synchronous>, transform_indices = @transform_2, window_bounds = array<i64: 16, 64>}, {pipeline_mode = #tpu.pipeline_mode<synchronous>, transform_indices = @transform_3, window_bounds = array<i64: 32, 32>}, {pipeline_mode = #tpu.pipeline_mode<synchronous>, transform_indices = @transform_4, window_bounds = array<i64: 32, 32>}, {pipeline_mode = #tpu.pipeline_mode<synchronous>, transform_indices = @transform_5, window_bounds = array<i64: 32, 32>}, {pipeline_mode = #tpu.pipeline_mode<synchronous>, transform_indices = @transform_6, window_bounds = array<i64: 32, 32>}, {pipeline_mode = #tpu.pipeline_mode<synchronous>, transform_indices = @transform_7, window_bounds = array<i64: 32, 64>}, {pipeline_mode = #tpu.pipeline_mode<synchronous>, transform_indices = @transform_8, window_bounds = array<i64: 64, 32>}, {transform_indices = @transform_9, window_bounds = array<i64: 16, 32>}, {transform_indices = @transform_10, window_bounds = array<i64: 2, 8, 8>}]} {
    %c0 = arith.constant 0 : index
    %c0_0 = arith.constant 0 : index
    %0 = vector.load %arg1[%c0, %c0_0] : memref<16x32xf32, #tpu.memory_space<vmem>>, vector<16x32xf32>
    %c0_1 = arith.constant 0 : index
    %c0_2 = arith.constant 0 : index
    %c0_3 = arith.constant 0 : index
    %1 = vector.load %arg2[%c0_1, %c0_2, %c0_3] : memref<2x1x8xi32, #tpu.memory_space<vmem>>, vector<2x1x8xi32>
    %c0_4 = arith.constant 0 : index
    %c0_5 = arith.constant 0 : index
    %2 = vector.load %arg3[%c0_4, %c0_5] : memref<16x64xf32, #tpu.memory_space<vmem>>, vector<16x64xf32>
    %3 = vector.extract_strided_slice %2 {offsets = [0, 0], sizes = [1, 32], strides = [1, 1]} : vector<16x64xf32> to vector<1x32xf32>
    %4 = vector.extract_strided_slice %2 {offsets = [1, 0], sizes = [1, 32], strides = [1, 1]} : vector<16x64xf32> to vector<1x32xf32>
    %5 = vector.extract_strided_slice %2 {offsets = [2, 0], sizes = [1, 32], strides = [1, 1]} : vector<16x64xf32> to vector<1x32xf32>
    %6 = vector.extract_strided_slice %2 {offsets = [3, 0], sizes = [1, 32], strides = [1, 1]} : vector<16x64xf32> to vector<1x32xf32>
    %7 = vector.extract_strided_slice %2 {offsets = [4, 0], sizes = [1, 32], strides = [1, 1]} : vector<16x64xf32> to vector<1x32xf32>
    %8 = vector.extract_strided_slice %2 {offsets = [5, 0], sizes = [1, 32], strides = [1, 1]} : vector<16x64xf32> to vector<1x32xf32>
    %9 = vector.extract_strided_slice %2 {offsets = [6, 0], sizes = [1, 32], strides = [1, 1]} : vector<16x64xf32> to vector<1x32xf32>
    %10 = vector.extract_strided_slice %2 {offsets = [7, 0], sizes = [1, 32], strides = [1, 1]} : vector<16x64xf32> to vector<1x32xf32>
    %11 = vector.extract_strided_slice %2 {offsets = [8, 0], sizes = [1, 32], strides = [1, 1]} : vector<16x64xf32> to vector<1x32xf32>
    %12 = vector.extract_strided_slice %2 {offsets = [9, 0], sizes = [1, 64], strides = [1, 1]} : vector<16x64xf32> to vector<1x64xf32>
    %cst = arith.constant dense<0.000000e+00> : vector<16xf32>
    %13 = vector.multi_reduction <add>, %0, %cst [1] : vector<16x32xf32> to vector<16xf32>
    %14 = vector.shape_cast %13 : vector<16xf32> to vector<16x1xf32>
    %cst_6 = arith.constant 3.200000e+01 : f32
    %15 = vector.broadcast %cst_6 : f32 to vector<16x1xf32>
    %16 = arith.divf %14, %15 : vector<16x1xf32>
    %17 = vector.broadcast %16 : vector<16x1xf32> to vector<16x32xf32>
    %18 = arith.subf %0, %17 : vector<16x32xf32>
    %19 = arith.mulf %18, %18 : vector<16x32xf32>
    %cst_7 = arith.constant dense<0.000000e+00> : vector<16xf32>
    %20 = vector.multi_reduction <add>, %19, %cst_7 [1] : vector<16x32xf32> to vector<16xf32>
    %21 = vector.shape_cast %20 : vector<16xf32> to vector<16x1xf32>
    %cst_8 = arith.constant 3.200000e+01 : f32
    %22 = vector.broadcast %cst_8 : f32 to vector<16x1xf32>
    %23 = arith.divf %21, %22 : vector<16x1xf32>
    %24 = vector.broadcast %16 : vector<16x1xf32> to vector<16x32xf32>
    %25 = arith.subf %0, %24 : vector<16x32xf32>
    %cst_9 = arith.constant 9.99999997E-7 : f32
    %26 = vector.broadcast %cst_9 : f32 to vector<16x1xf32>
    %27 = arith.addf %23, %26 : vector<16x1xf32>
    %28 = math.rsqrt %27 : vector<16x1xf32>
    %29 = vector.broadcast %28 : vector<16x1xf32> to vector<16x32xf32>
    %30 = arith.mulf %25, %29 : vector<16x32xf32>
    %31 = vector.broadcast %3 : vector<1x32xf32> to vector<16x32xf32>
    %32 = arith.mulf %30, %31 : vector<16x32xf32>
    %33 = vector.broadcast %4 : vector<1x32xf32> to vector<16x32xf32>
    %34 = arith.addf %32, %33 : vector<16x32xf32>
    %c0_10 = arith.constant 0 : index
    %c0_11 = arith.constant 0 : index
    %35 = vector.load %arg4[%c0_10, %c0_11] : memref<32x32xf32, #tpu.memory_space<vmem>>, vector<32x32xf32>
    %cst_12 = arith.constant dense<0.000000e+00> : vector<16x32xf32>
    %36 = tpu.matmul %34, %35, %cst_12 {dimension_numbers = #tpu.dot_dimension_numbers<[1], [0], [0], [1], [0, 0, 1, 1], [], []>} : vector<16x32xf32>, vector<32x32xf32>, vector<16x32xf32> -> vector<16x32xf32>
    %37 = vector.broadcast %5 : vector<1x32xf32> to vector<16x32xf32>
    %38 = arith.addf %36, %37 : vector<16x32xf32>
    %c0_13 = arith.constant 0 : index
    %c0_14 = arith.constant 0 : index
    %39 = vector.load %arg5[%c0_13, %c0_14] : memref<32x32xf32, #tpu.memory_space<vmem>>, vector<32x32xf32>
    %cst_15 = arith.constant dense<0.000000e+00> : vector<16x32xf32>
    %40 = tpu.matmul %34, %39, %cst_15 {dimension_numbers = #tpu.dot_dimension_numbers<[1], [0], [0], [1], [0, 0, 1, 1], [], []>} : vector<16x32xf32>, vector<32x32xf32>, vector<16x32xf32> -> vector<16x32xf32>
    %41 = vector.broadcast %6 : vector<1x32xf32> to vector<16x32xf32>
    %42 = arith.addf %40, %41 : vector<16x32xf32>
    %c0_16 = arith.constant 0 : index
    %c0_17 = arith.constant 0 : index
    %43 = vector.load %arg6[%c0_16, %c0_17] : memref<32x32xf32, #tpu.memory_space<vmem>>, vector<32x32xf32>
    %cst_18 = arith.constant dense<0.000000e+00> : vector<16x32xf32>
    %44 = tpu.matmul %34, %43, %cst_18 {dimension_numbers = #tpu.dot_dimension_numbers<[1], [0], [0], [1], [0, 0, 1, 1], [], []>} : vector<16x32xf32>, vector<32x32xf32>, vector<16x32xf32> -> vector<16x32xf32>
    %45 = vector.broadcast %7 : vector<1x32xf32> to vector<16x32xf32>
    %46 = arith.addf %44, %45 : vector<16x32xf32>
    %47 = tpu.iota {dimensions = array<i32: 0>} : vector<8x8xi32>
    %48 = tpu.iota {dimensions = array<i32: 1>} : vector<8x8xi32>
    %49 = arith.cmpi sgt, %48, %47 : vector<8x8xi32>
    %c0_19 = arith.constant 0 : index
    %c0_20 = arith.constant 0 : index
    %50 = vector.load %arg7[%c0_19, %c0_20] : memref<32x32xf32, #tpu.memory_space<vmem>>, vector<32x32xf32>
    %51 = vector.extract_strided_slice %38 {offsets = [0, 0], sizes = [8, 8], strides = [1, 1]} : vector<16x32xf32> to vector<8x8xf32>
    %52 = vector.extract_strided_slice %38 {offsets = [0, 8], sizes = [8, 8], strides = [1, 1]} : vector<16x32xf32> to vector<8x8xf32>
    %53 = vector.extract_strided_slice %38 {offsets = [0, 16], sizes = [8, 8], strides = [1, 1]} : vector<16x32xf32> to vector<8x8xf32>
    %54 = vector.extract_strided_slice %38 {offsets = [0, 24], sizes = [8, 8], strides = [1, 1]} : vector<16x32xf32> to vector<8x8xf32>
    %55 = vector.shape_cast %51 : vector<8x8xf32> to vector<1x8x8xf32>
    %56 = vector.shape_cast %52 : vector<8x8xf32> to vector<1x8x8xf32>
    %57 = vector.shape_cast %53 : vector<8x8xf32> to vector<1x8x8xf32>
    %58 = vector.shape_cast %54 : vector<8x8xf32> to vector<1x8x8xf32>
    %59 = tpu.concatenate %55, %56, %57, %58 in 0 : vector<1x8x8xf32>, vector<1x8x8xf32>, vector<1x8x8xf32>, vector<1x8x8xf32> -> vector<4x8x8xf32>
    %60 = vector.extract_strided_slice %42 {offsets = [0, 0], sizes = [8, 8], strides = [1, 1]} : vector<16x32xf32> to vector<8x8xf32>
    %61 = vector.extract_strided_slice %42 {offsets = [0, 8], sizes = [8, 8], strides = [1, 1]} : vector<16x32xf32> to vector<8x8xf32>
    %62 = vector.extract_strided_slice %42 {offsets = [0, 16], sizes = [8, 8], strides = [1, 1]} : vector<16x32xf32> to vector<8x8xf32>
    %63 = vector.extract_strided_slice %42 {offsets = [0, 24], sizes = [8, 8], strides = [1, 1]} : vector<16x32xf32> to vector<8x8xf32>
    %64 = vector.shape_cast %60 : vector<8x8xf32> to vector<1x8x8xf32>
    %65 = vector.shape_cast %61 : vector<8x8xf32> to vector<1x8x8xf32>
    %66 = vector.shape_cast %62 : vector<8x8xf32> to vector<1x8x8xf32>
    %67 = vector.shape_cast %63 : vector<8x8xf32> to vector<1x8x8xf32>
    %68 = tpu.concatenate %64, %65, %66, %67 in 0 : vector<1x8x8xf32>, vector<1x8x8xf32>, vector<1x8x8xf32>, vector<1x8x8xf32> -> vector<4x8x8xf32>
    %69 = vector.extract_strided_slice %46 {offsets = [0, 0], sizes = [8, 8], strides = [1, 1]} : vector<16x32xf32> to vector<8x8xf32>
    %70 = vector.extract_strided_slice %46 {offsets = [0, 8], sizes = [8, 8], strides = [1, 1]} : vector<16x32xf32> to vector<8x8xf32>
    %71 = vector.extract_strided_slice %46 {offsets = [0, 16], sizes = [8, 8], strides = [1, 1]} : vector<16x32xf32> to vector<8x8xf32>
    %72 = vector.extract_strided_slice %46 {offsets = [0, 24], sizes = [8, 8], strides = [1, 1]} : vector<16x32xf32> to vector<8x8xf32>
    %73 = vector.shape_cast %69 : vector<8x8xf32> to vector<1x8x8xf32>
    %74 = vector.shape_cast %70 : vector<8x8xf32> to vector<1x8x8xf32>
    %75 = vector.shape_cast %71 : vector<8x8xf32> to vector<1x8x8xf32>
    %76 = vector.shape_cast %72 : vector<8x8xf32> to vector<1x8x8xf32>
    %77 = tpu.concatenate %73, %74, %75, %76 in 0 : vector<1x8x8xf32>, vector<1x8x8xf32>, vector<1x8x8xf32>, vector<1x8x8xf32> -> vector<4x8x8xf32>
    %cst_21 = arith.constant dense<0.000000e+00> : vector<4x8x8xf32>
    %78 = tpu.matmul %59, %68, %cst_21 {dimension_numbers = #tpu.dot_dimension_numbers<[2], [2], [1], [1], [0, 0, 0, 1, 1, 1], [0], [0]>} : vector<4x8x8xf32>, vector<4x8x8xf32>, vector<4x8x8xf32> -> vector<4x8x8xf32>
    %79 = vector.extract_strided_slice %1 {offsets = [0, 0, 0], sizes = [1, 1, 8], strides = [1, 1, 1]} : vector<2x1x8xi32> to vector<1x1x8xi32>
    %80 = vector.shape_cast %79 : vector<1x1x8xi32> to vector<1x8xi32>
    %c0_i32 = arith.constant 0 : i32
    %81 = vector.broadcast %c0_i32 : i32 to vector<1x8xi32>
    %82 = arith.cmpi sgt, %80, %81 : vector<1x8xi32>
    %83 = vector.broadcast %82 : vector<1x8xi1> to vector<8x8xi1>
    %84 = arith.ori %49, %83 : vector<8x8xi1>
    %85 = vector.shape_cast %84 : vector<8x8xi1> to vector<1x8x8xi1>
    %cst_22 = arith.constant -9.99999984E+17 : f32
    %86 = vector.shape_cast %85 : vector<1x8x8xi1> to vector<1x8x8xi1>
    %87 = vector.broadcast %86 : vector<1x8x8xi1> to vector<4x8x8xi1>
    %88 = vector.broadcast %cst_22 : f32 to vector<4x8x8xf32>
    %89 = arith.select %87, %88, %78 : vector<4x8x8xi1>, vector<4x8x8xf32>
    %cst_23 = arith.constant dense<0xFF800000> : vector<4x8xf32>
    %90 = vector.multi_reduction <maximumf>, %89, %cst_23 [2] : vector<4x8x8xf32> to vector<4x8xf32>
    %91 = vector.shape_cast %90 : vector<4x8xf32> to vector<4x8x1xf32>
    %92 = vector.broadcast %91 : vector<4x8x1xf32> to vector<4x8x8xf32>
    %93 = arith.subf %89, %92 : vector<4x8x8xf32>
    %94 = math.exp %93 : vector<4x8x8xf32>
    %cst_24 = arith.constant dense<0.000000e+00> : vector<4x8xf32>
    %95 = vector.multi_reduction <add>, %94, %cst_24 [2] : vector<4x8x8xf32> to vector<4x8xf32>
    %96 = vector.shape_cast %95 : vector<4x8xf32> to vector<4x8x1xf32>
    %97 = tpu.reciprocal %96 : vector<4x8x1xf32> -> vector<4x8x1xf32>
    %98 = vector.broadcast %97 : vector<4x8x1xf32> to vector<4x8x8xf32>
    %99 = arith.mulf %94, %98 : vector<4x8x8xf32>
    %100 = vector.extract_strided_slice %99 {offsets = [0, 0, 0], sizes = [1, 8, 8], strides = [1, 1, 1]} : vector<4x8x8xf32> to vector<1x8x8xf32>
    %101 = vector.shape_cast %100 : vector<1x8x8xf32> to vector<8x8xf32>
    %c0_25 = arith.constant 0 : index
    %c0_26 = arith.constant 0 : index
    %c0_27 = arith.constant 0 : index
    %102 = vector.load %arg11[%c0_25, %c0_26, %c0_27] : memref<2x8x8xf32, #tpu.memory_space<vmem>>, vector<1x8x8xf32>
    %103 = vector.shape_cast %102 : vector<1x8x8xf32> to vector<8x8xf32>
    %104 = vector.shape_cast %101 : vector<8x8xf32> to vector<1x8x8xf32>
    tpu.vector_store %arg11[%c0_25, %c0_26, %c0_27], %104 {strides = array<i32>} : memref<2x8x8xf32, #tpu.memory_space<vmem>>, vector<1x8x8xf32>,
    %cst_28 = arith.constant dense<0.000000e+00> : vector<4x8x8xf32>
    %105 = tpu.matmul %99, %77, %cst_28 {dimension_numbers = #tpu.dot_dimension_numbers<[2], [1], [1], [2], [0, 0, 0, 1, 1, 2], [0], [0]>} : vector<4x8x8xf32>, vector<4x8x8xf32>, vector<4x8x8xf32> -> vector<4x8x8xf32>
    %106 = vector.extract_strided_slice %105 {offsets = [0, 0, 0], sizes = [1, 8, 8], strides = [1, 1, 1]} : vector<4x8x8xf32> to vector<1x8x8xf32>
    %107 = vector.shape_cast %106 : vector<1x8x8xf32> to vector<8x8xf32>
    %108 = vector.extract_strided_slice %105 {offsets = [1, 0, 0], sizes = [1, 8, 8], strides = [1, 1, 1]} : vector<4x8x8xf32> to vector<1x8x8xf32>
    %109 = vector.shape_cast %108 : vector<1x8x8xf32> to vector<8x8xf32>
    %110 = vector.extract_strided_slice %105 {offsets = [2, 0, 0], sizes = [1, 8, 8], strides = [1, 1, 1]} : vector<4x8x8xf32> to vector<1x8x8xf32>
    %111 = vector.shape_cast %110 : vector<1x8x8xf32> to vector<8x8xf32>
    %112 = vector.extract_strided_slice %105 {offsets = [3, 0, 0], sizes = [1, 8, 8], strides = [1, 1, 1]} : vector<4x8x8xf32> to vector<1x8x8xf32>
    %113 = vector.shape_cast %112 : vector<1x8x8xf32> to vector<8x8xf32>
    %114 = tpu.concatenate %107, %109, %111, %113 in 1 : vector<8x8xf32>, vector<8x8xf32>, vector<8x8xf32>, vector<8x8xf32> -> vector<8x32xf32>
    %cst_29 = arith.constant dense<0.000000e+00> : vector<8x32xf32>
    %115 = tpu.matmul %114, %50, %cst_29 {dimension_numbers = #tpu.dot_dimension_numbers<[1], [0], [0], [1], [0, 0, 1, 1], [], []>} : vector<8x32xf32>, vector<32x32xf32>, vector<8x32xf32> -> vector<8x32xf32>
    %116 = vector.broadcast %8 : vector<1x32xf32> to vector<8x32xf32>
    %117 = arith.addf %115, %116 : vector<8x32xf32>
    %118 = vector.extract_strided_slice %0 {offsets = [0, 0], sizes = [8, 32], strides = [1, 1]} : vector<16x32xf32> to vector<8x32xf32>
    %119 = arith.addf %117, %118 : vector<8x32xf32>
    %120 = vector.extract_strided_slice %38 {offsets = [8, 0], sizes = [8, 8], strides = [1, 1]} : vector<16x32xf32> to vector<8x8xf32>
    %121 = vector.extract_strided_slice %38 {offsets = [8, 8], sizes = [8, 8], strides = [1, 1]} : vector<16x32xf32> to vector<8x8xf32>
    %122 = vector.extract_strided_slice %38 {offsets = [8, 16], sizes = [8, 8], strides = [1, 1]} : vector<16x32xf32> to vector<8x8xf32>
    %123 = vector.extract_strided_slice %38 {offsets = [8, 24], sizes = [8, 8], strides = [1, 1]} : vector<16x32xf32> to vector<8x8xf32>
    %124 = vector.shape_cast %120 : vector<8x8xf32> to vector<1x8x8xf32>
    %125 = vector.shape_cast %121 : vector<8x8xf32> to vector<1x8x8xf32>
    %126 = vector.shape_cast %122 : vector<8x8xf32> to vector<1x8x8xf32>
    %127 = vector.shape_cast %123 : vector<8x8xf32> to vector<1x8x8xf32>
    %128 = tpu.concatenate %124, %125, %126, %127 in 0 : vector<1x8x8xf32>, vector<1x8x8xf32>, vector<1x8x8xf32>, vector<1x8x8xf32> -> vector<4x8x8xf32>
    %129 = vector.extract_strided_slice %42 {offsets = [8, 0], sizes = [8, 8], strides = [1, 1]} : vector<16x32xf32> to vector<8x8xf32>
    %130 = vector.extract_strided_slice %42 {offsets = [8, 8], sizes = [8, 8], strides = [1, 1]} : vector<16x32xf32> to vector<8x8xf32>
    %131 = vector.extract_strided_slice %42 {offsets = [8, 16], sizes = [8, 8], strides = [1, 1]} : vector<16x32xf32> to vector<8x8xf32>
    %132 = vector.extract_strided_slice %42 {offsets = [8, 24], sizes = [8, 8], strides = [1, 1]} : vector<16x32xf32> to vector<8x8xf32>
    %133 = vector.shape_cast %129 : vector<8x8xf32> to vector<1x8x8xf32>
    %134 = vector.shape_cast %130 : vector<8x8xf32> to vector<1x8x8xf32>
    %135 = vector.shape_cast %131 : vector<8x8xf32> to vector<1x8x8xf32>
    %136 = vector.shape_cast %132 : vector<8x8xf32> to vector<1x8x8xf32>
    %137 = tpu.concatenate %133, %134, %135, %136 in 0 : vector<1x8x8xf32>, vector<1x8x8xf32>, vector<1x8x8xf32>, vector<1x8x8xf32> -> vector<4x8x8xf32>
    %138 = vector.extract_strided_slice %46 {offsets = [8, 0], sizes = [8, 8], strides = [1, 1]} : vector<16x32xf32> to vector<8x8xf32>
    %139 = vector.extract_strided_slice %46 {offsets = [8, 8], sizes = [8, 8], strides = [1, 1]} : vector<16x32xf32> to vector<8x8xf32>
    %140 = vector.extract_strided_slice %46 {offsets = [8, 16], sizes = [8, 8], strides = [1, 1]} : vector<16x32xf32> to vector<8x8xf32>
    %141 = vector.extract_strided_slice %46 {offsets = [8, 24], sizes = [8, 8], strides = [1, 1]} : vector<16x32xf32> to vector<8x8xf32>
    %142 = vector.shape_cast %138 : vector<8x8xf32> to vector<1x8x8xf32>
    %143 = vector.shape_cast %139 : vector<8x8xf32> to vector<1x8x8xf32>
    %144 = vector.shape_cast %140 : vector<8x8xf32> to vector<1x8x8xf32>
    %145 = vector.shape_cast %141 : vector<8x8xf32> to vector<1x8x8xf32>
    %146 = tpu.concatenate %142, %143, %144, %145 in 0 : vector<1x8x8xf32>, vector<1x8x8xf32>, vector<1x8x8xf32>, vector<1x8x8xf32> -> vector<4x8x8xf32>
    %cst_30 = arith.constant dense<0.000000e+00> : vector<4x8x8xf32>
    %147 = tpu.matmul %128, %137, %cst_30 {dimension_numbers = #tpu.dot_dimension_numbers<[2], [2], [1], [1], [0, 0, 0, 1, 1, 1], [0], [0]>} : vector<4x8x8xf32>, vector<4x8x8xf32>, vector<4x8x8xf32> -> vector<4x8x8xf32>
    %148 = vector.extract_strided_slice %1 {offsets = [1, 0, 0], sizes = [1, 1, 8], strides = [1, 1, 1]} : vector<2x1x8xi32> to vector<1x1x8xi32>
    %149 = vector.shape_cast %148 : vector<1x1x8xi32> to vector<1x8xi32>
    %c0_i32_31 = arith.constant 0 : i32
    %150 = vector.broadcast %c0_i32_31 : i32 to vector<1x8xi32>
    %151 = arith.cmpi sgt, %149, %150 : vector<1x8xi32>
    %152 = vector.broadcast %151 : vector<1x8xi1> to vector<8x8xi1>
    %153 = arith.ori %49, %152 : vector<8x8xi1>
    %154 = vector.shape_cast %153 : vector<8x8xi1> to vector<1x8x8xi1>
    %cst_32 = arith.constant -9.99999984E+17 : f32
    %155 = vector.shape_cast %154 : vector<1x8x8xi1> to vector<1x8x8xi1>
    %156 = vector.broadcast %155 : vector<1x8x8xi1> to vector<4x8x8xi1>
    %157 = vector.broadcast %cst_32 : f32 to vector<4x8x8xf32>
    %158 = arith.select %156, %157, %147 : vector<4x8x8xi1>, vector<4x8x8xf32>
    %cst_33 = arith.constant dense<0xFF800000> : vector<4x8xf32>
    %159 = vector.multi_reduction <maximumf>, %158, %cst_33 [2] : vector<4x8x8xf32> to vector<4x8xf32>
    %160 = vector.shape_cast %159 : vector<4x8xf32> to vector<4x8x1xf32>
    %161 = vector.broadcast %160 : vector<4x8x1xf32> to vector<4x8x8xf32>
    %162 = arith.subf %158, %161 : vector<4x8x8xf32>
    %163 = math.exp %162 : vector<4x8x8xf32>
    %cst_34 = arith.constant dense<0.000000e+00> : vector<4x8xf32>
    %164 = vector.multi_reduction <add>, %163, %cst_34 [2] : vector<4x8x8xf32> to vector<4x8xf32>
    %165 = vector.shape_cast %164 : vector<4x8xf32> to vector<4x8x1xf32>
    %166 = tpu.reciprocal %165 : vector<4x8x1xf32> -> vector<4x8x1xf32>
    %167 = vector.broadcast %166 : vector<4x8x1xf32> to vector<4x8x8xf32>
    %168 = arith.mulf %163, %167 : vector<4x8x8xf32>
    %169 = vector.extract_strided_slice %168 {offsets = [0, 0, 0], sizes = [1, 8, 8], strides = [1, 1, 1]} : vector<4x8x8xf32> to vector<1x8x8xf32>
    %170 = vector.shape_cast %169 : vector<1x8x8xf32> to vector<8x8xf32>
    %c1 = arith.constant 1 : index
    %c0_35 = arith.constant 0 : index
    %c0_36 = arith.constant 0 : index
    %171 = vector.load %arg11[%c1, %c0_35, %c0_36] : memref<2x8x8xf32, #tpu.memory_space<vmem>>, vector<1x8x8xf32>
    %172 = vector.shape_cast %171 : vector<1x8x8xf32> to vector<8x8xf32>
    %173 = vector.shape_cast %170 : vector<8x8xf32> to vector<1x8x8xf32>
    tpu.vector_store %arg11[%c1, %c0_35, %c0_36], %173 {strides = array<i32>} : memref<2x8x8xf32, #tpu.memory_space<vmem>>, vector<1x8x8xf32>,
    %cst_37 = arith.constant dense<0.000000e+00> : vector<4x8x8xf32>
    %174 = tpu.matmul %168, %146, %cst_37 {dimension_numbers = #tpu.dot_dimension_numbers<[2], [1], [1], [2], [0, 0, 0, 1, 1, 2], [0], [0]>} : vector<4x8x8xf32>, vector<4x8x8xf32>, vector<4x8x8xf32> -> vector<4x8x8xf32>
    %175 = vector.extract_strided_slice %174 {offsets = [0, 0, 0], sizes = [1, 8, 8], strides = [1, 1, 1]} : vector<4x8x8xf32> to vector<1x8x8xf32>
    %176 = vector.shape_cast %175 : vector<1x8x8xf32> to vector<8x8xf32>
    %177 = vector.extract_strided_slice %174 {offsets = [1, 0, 0], sizes = [1, 8, 8], strides = [1, 1, 1]} : vector<4x8x8xf32> to vector<1x8x8xf32>
    %178 = vector.shape_cast %177 : vector<1x8x8xf32> to vector<8x8xf32>
    %179 = vector.extract_strided_slice %174 {offsets = [2, 0, 0], sizes = [1, 8, 8], strides = [1, 1, 1]} : vector<4x8x8xf32> to vector<1x8x8xf32>
    %180 = vector.shape_cast %179 : vector<1x8x8xf32> to vector<8x8xf32>
    %181 = vector.extract_strided_slice %174 {offsets = [3, 0, 0], sizes = [1, 8, 8], strides = [1, 1, 1]} : vector<4x8x8xf32> to vector<1x8x8xf32>
    %182 = vector.shape_cast %181 : vector<1x8x8xf32> to vector<8x8xf32>
    %183 = tpu.concatenate %176, %178, %180, %182 in 1 : vector<8x8xf32>, vector<8x8xf32>, vector<8x8xf32>, vector<8x8xf32> -> vector<8x32xf32>
    %cst_38 = arith.constant dense<0.000000e+00> : vector<8x32xf32>
    %184 = tpu.matmul %183, %50, %cst_38 {dimension_numbers = #tpu.dot_dimension_numbers<[1], [0], [0], [1], [0, 0, 1, 1], [], []>} : vector<8x32xf32>, vector<32x32xf32>, vector<8x32xf32> -> vector<8x32xf32>
    %185 = vector.broadcast %8 : vector<1x32xf32> to vector<8x32xf32>
    %186 = arith.addf %184, %185 : vector<8x32xf32>
    %187 = vector.extract_strided_slice %0 {offsets = [8, 0], sizes = [8, 32], strides = [1, 1]} : vector<16x32xf32> to vector<8x32xf32>
    %188 = arith.addf %186, %187 : vector<8x32xf32>
    %189 = tpu.concatenate %119, %188 in 0 : vector<8x32xf32>, vector<8x32xf32> -> vector<16x32xf32>
    %cst_39 = arith.constant dense<0.000000e+00> : vector<16xf32>
    %190 = vector.multi_reduction <add>, %189, %cst_39 [1] : vector<16x32xf32> to vector<16xf32>
    %191 = vector.shape_cast %190 : vector<16xf32> to vector<16x1xf32>
    %cst_40 = arith.constant 3.200000e+01 : f32
    %192 = vector.broadcast %cst_40 : f32 to vector<16x1xf32>
    %193 = arith.divf %191, %192 : vector<16x1xf32>
    %194 = vector.broadcast %193 : vector<16x1xf32> to vector<16x32xf32>
    %195 = arith.subf %189, %194 : vector<16x32xf32>
    %196 = arith.mulf %195, %195 : vector<16x32xf32>
    %cst_41 = arith.constant dense<0.000000e+00> : vector<16xf32>
    %197 = vector.multi_reduction <add>, %196, %cst_41 [1] : vector<16x32xf32> to vector<16xf32>
    %198 = vector.shape_cast %197 : vector<16xf32> to vector<16x1xf32>
    %cst_42 = arith.constant 3.200000e+01 : f32
    %199 = vector.broadcast %cst_42 : f32 to vector<16x1xf32>
    %200 = arith.divf %198, %199 : vector<16x1xf32>
    %201 = vector.broadcast %193 : vector<16x1xf32> to vector<16x32xf32>
    %202 = arith.subf %189, %201 : vector<16x32xf32>
    %cst_43 = arith.constant 9.99999997E-7 : f32
    %203 = vector.broadcast %cst_43 : f32 to vector<16x1xf32>
    %204 = arith.addf %200, %203 : vector<16x1xf32>
    %205 = math.rsqrt %204 : vector<16x1xf32>
    %206 = vector.broadcast %205 : vector<16x1xf32> to vector<16x32xf32>
    %207 = arith.mulf %202, %206 : vector<16x32xf32>
    %208 = vector.broadcast %9 : vector<1x32xf32> to vector<16x32xf32>
    %209 = arith.mulf %207, %208 : vector<16x32xf32>
    %210 = vector.broadcast %10 : vector<1x32xf32> to vector<16x32xf32>
    %211 = arith.addf %209, %210 : vector<16x32xf32>
    %c0_44 = arith.constant 0 : index
    %c0_45 = arith.constant 0 : index
    %212 = vector.load %arg8[%c0_44, %c0_45] : memref<32x64xf32, #tpu.memory_space<vmem>>, vector<32x64xf32>
    %cst_46 = arith.constant dense<0.000000e+00> : vector<16x64xf32>
    %213 = tpu.matmul %211, %212, %cst_46 {dimension_numbers = #tpu.dot_dimension_numbers<[1], [0], [0], [1], [0, 0, 1, 1], [], []>} : vector<16x32xf32>, vector<32x64xf32>, vector<16x64xf32> -> vector<16x64xf32>
    %214 = vector.broadcast %12 : vector<1x64xf32> to vector<16x64xf32>
    %215 = arith.addf %213, %214 : vector<16x64xf32>
    %cst_47 = arith.constant 0.000000e+00 : f32
    %216 = vector.broadcast %cst_47 : f32 to vector<16x64xf32>
    %217 = arith.maximumf %215, %216 : vector<16x64xf32>
    %c0_48 = arith.constant 0 : index
    %c0_49 = arith.constant 0 : index
    %218 = vector.load %arg9[%c0_48, %c0_49] : memref<64x32xf32, #tpu.memory_space<vmem>>, vector<64x32xf32>
    %cst_50 = arith.constant dense<0.000000e+00> : vector<16x32xf32>
    %219 = tpu.matmul %217, %218, %cst_50 {dimension_numbers = #tpu.dot_dimension_numbers<[1], [0], [0], [1], [0, 0, 1, 1], [], []>} : vector<16x64xf32>, vector<64x32xf32>, vector<16x32xf32> -> vector<16x32xf32>
    %220 = vector.broadcast %11 : vector<1x32xf32> to vector<16x32xf32>
    %221 = arith.addf %219, %220 : vector<16x32xf32>
    %222 = arith.addf %221, %189 : vector<16x32xf32>
    %c0_51 = arith.constant 0 : index
    %c0_52 = arith.constant 0 : index
    %223 = vector.load %arg10[%c0_51, %c0_52] : memref<16x32xf32, #tpu.memory_space<vmem>>, vector<16x32xf32>
    tpu.vector_store %arg10[%c0_51, %c0_52], %222 {strides = array<i32>} : memref<16x32xf32, #tpu.memory_space<vmem>>, vector<16x32xf32>,
    return
  }
  func.func @transform_0(%arg0: i32) -> (i32, i32) {
    %c0_i32 = arith.constant 0 : i32
    %c0_i32_0 = arith.constant 0 : i32
    return %arg0, %c0_i32 : i32, i32
  }
  func.func @transform_1(%arg0: i32) -> (i32, i32, i32) {
    %c0_i32 = arith.constant 0 : i32
    %c0_i32_0 = arith.constant 0 : i32
    %c0_i32_1 = arith.constant 0 : i32
    return %arg0, %c0_i32, %c0_i32_0 : i32, i32, i32
  }
  func.func @transform_2(%arg0: i32) -> (i32, i32) {
    %c0_i32 = arith.constant 0 : i32
    %c0_i32_0 = arith.constant 0 : i32
    %c0_i32_1 = arith.constant 0 : i32
    return %c0_i32, %c0_i32_0 : i32, i32
  }
  func.func @transform_3(%arg0: i32) -> (i32, i32) {
    %c0_i32 = arith.constant 0 : i32
    %c0_i32_0 = arith.constant 0 : i32
    %c0_i32_1 = arith.constant 0 : i32
    return %c0_i32, %c0_i32_0 : i32, i32
  }
  func.func @transform_4(%arg0: i32) -> (i32, i32) {
    %c0_i32 = arith.constant 0 : i32
    %c0_i32_0 = arith.constant 0 : i32
    %c0_i32_1 = arith.constant 0 : i32
    return %c0_i32, %c0_i32_0 : i32, i32
  }
  func.func @transform_5(%arg0: i32) -> (i32, i32) {
    %c0_i32 = arith.constant 0 : i32
    %c0_i32_0 = arith.constant 0 : i32
    %c0_i32_1 = arith.constant 0 : i32
    return %c0_i32, %c0_i32_0 : i32, i32
  }
  func.func @transform_6(%arg0: i32) -> (i32, i32) {
    %c0_i32 = arith.constant 0 : i32
    %c0_i32_0 = arith.constant 0 : i32
    %c0_i32_1 = arith.constant 0 : i32
    return %c0_i32, %c0_i32_0 : i32, i32
  }
  func.func @transform_7(%arg0: i32) -> (i32, i32) {
    %c0_i32 = arith.constant 0 : i32
    %c0_i32_0 = arith.constant 0 : i32
    %c0_i32_1 = arith.constant 0 : i32
    return %c0_i32, %c0_i32_0 : i32, i32
  }
  func.func @transform_8(%arg0: i32) -> (i32, i32) {
    %c0_i32 = arith.constant 0 : i32
    %c0_i32_0 = arith.constant 0 : i32
    %c0_i32_1 = arith.constant 0 : i32
    return %c0_i32, %c0_i32_0 : i32, i32
  }
  func.func @transform_9(%arg0: i32) -> (i32, i32) {
    %c0_i32 = arith.constant 0 : i32
    %c0_i32_0 = arith.constant 0 : i32
    return %arg0, %c0_i32 : i32, i32
  }
  func.func @transform_10(%arg0: i32) -> (i32, i32, i32) {
    %c0_i32 = arith.constant 0 : i32
    %c0_i32_0 = arith.constant 0 : i32
    %c0_i32_1 = arith.constant 0 : i32
    return %arg0, %c0_i32, %c0_i32_0 : i32, i32, i32
  }
}

module attributes {stable_mosaic.version = 11 : i64} {
  func.func @kernel(%arg0: i32, %arg1: memref<16x32xf32, #tpu.memory_space<vmem>>, %arg2: memref<2x1x8xi32, #tpu.memory_space<vmem>>, %arg3: memref<16x64xf32, #tpu.memory_space<vmem>>, %arg4: memref<32x32xf32, #tpu.memory_space<vmem>>, %arg5: memref<32x32xf32, #tpu.memory_space<vmem>>, %arg6: memref<32x32xf32, #tpu.memory_space<vmem>>, %arg7: memref<32x32xf32, #tpu.memory_space<vmem>>, %arg8: memref<32x64xf32, #tpu.memory_space<vmem>>, %arg9: memref<64x32xf32, #tpu.memory_space<vmem>>, %arg10: memref<16x32xf32, #tpu.memory_space<vmem>>, %arg11: memref<2x8x8xf32, #tpu.memory_space<vmem>>) attributes {dimension_semantics = [#tpu.dimension_semantics<parallel>], iteration_bounds = array<i64: 1>, scalar_prefetch = 0 : i64, scratch_operands = 0 : i64, tpu.core_type = #tpu.core_type<tc>, window_params = [{transform_indices = @transform_0, window_bounds = array<i64: 16, 32>}, {transform_indices = @transform_1, window_bounds = array<i64: 2, 1, 8>}, {pipeline_mode = #tpu.pipeline_mode<synchronous>, transform_indices = @transform_2, window_bounds = array<i64: 16, 64>}, {pipeline_mode = #tpu.pipeline_mode<synchronous>, transform_indices = @transform_3, window_bounds = array<i64: 32, 32>}, {pipeline_mode = #tpu.pipeline_mode<synchronous>, transform_indices = @transform_4, window_bounds = array<i64: 32, 32>}, {pipeline_mode = #tpu.pipeline_mode<synchronous>, transform_indices = @transform_5, window_bounds = array<i64: 32, 32>}, {pipeline_mode = #tpu.pipeline_mode<synchronous>, transform_indices = @transform_6, window_bounds = array<i64: 32, 32>}, {pipeline_mode = #tpu.pipeline_mode<synchronous>, transform_indices = @transform_7, window_bounds = array<i64: 32, 64>}, {pipeline_mode = #tpu.pipeline_mode<synchronous>, transform_indices = @transform_8, window_bounds = array<i64: 64, 32>}, {transform_indices = @transform_9, window_bounds = array<i64: 16, 32>}, {transform_indices = @transform_10, window_bounds = array<i64: 2, 8, 8>}]} {
    %c0 = arith.constant 0 : index
    %c0_0 = arith.constant 0 : index
    %0 = vector.load %arg1[%c0, %c0_0] : memref<16x32xf32, #tpu.memory_space<vmem>>, vector<16x32xf32>
    %c0_1 = arith.constant 0 : index
    %c0_2 = arith.constant 0 : index
    %c0_3 = arith.constant 0 : index
    %1 = vector.load %arg2[%c0_1, %c0_2, %c0_3] : memref<2x1x8xi32, #tpu.memory_space<vmem>>, vector<2x1x8xi32>
    %c0_4 = arith.constant 0 : index
    %c0_5 = arith.constant 0 : index
    %2 = vector.load %arg3[%c0_4, %c0_5] : memref<16x64xf32, #tpu.memory_space<vmem>>, vector<16x64xf32>
    %3 = vector.extract_strided_slice %2 {offsets = [0, 0], sizes = [1, 32], strides = [1, 1]} : vector<16x64xf32> to vector<1x32xf32>
    %4 = vector.extract_strided_slice %2 {offsets = [1, 0], sizes = [1, 32], strides = [1, 1]} : vector<16x64xf32> to vector<1x32xf32>
    %5 = vector.extract_strided_slice %2 {offsets = [2, 0], sizes = [1, 32], strides = [1, 1]} : vector<16x64xf32> to vector<1x32xf32>
    %6 = vector.extract_strided_slice %2 {offsets = [3, 0], sizes = [1, 32], strides = [1, 1]} : vector<16x64xf32> to vector<1x32xf32>
    %7 = vector.extract_strided_slice %2 {offsets = [4, 0], sizes = [1, 32], strides = [1, 1]} : vector<16x64xf32> to vector<1x32xf32>
    %8 = vector.extract_strided_slice %2 {offsets = [5, 0], sizes = [1, 32], strides = [1, 1]} : vector<16x64xf32> to vector<1x32xf32>
    %9 = vector.extract_strided_slice %2 {offsets = [6, 0], sizes = [1, 32], strides = [1, 1]} : vector<16x64xf32> to vector<1x32xf32>
    %10 = vector.extract_strided_slice %2 {offsets = [7, 0], sizes = [1, 32], strides = [1, 1]} : vector<16x64xf32> to vector<1x32xf32>
    %11 = vector.extract_strided_slice %2 {offsets = [8, 0], sizes = [1, 32], strides = [1, 1]} : vector<16x64xf32> to vector<1x32xf32>
    %12 = vector.extract_strided_slice %2 {offsets = [9, 0], sizes = [1, 64], strides = [1, 1]} : vector<16x64xf32> to vector<1x64xf32>
    %cst = arith.constant dense<0.000000e+00> : vector<16xf32>
    %13 = vector.multi_reduction <add>, %0, %cst [1] : vector<16x32xf32> to vector<16xf32>
    %14 = vector.shape_cast %13 : vector<16xf32> to vector<16x1xf32>
    %cst_6 = arith.constant 3.200000e+01 : f32
    %15 = vector.broadcast %cst_6 : f32 to vector<16x1xf32>
    %16 = arith.divf %14, %15 : vector<16x1xf32>
    %17 = vector.broadcast %16 : vector<16x1xf32> to vector<16x32xf32>
    %18 = arith.subf %0, %17 : vector<16x32xf32>
    %19 = arith.mulf %18, %18 : vector<16x32xf32>
    %cst_7 = arith.constant dense<0.000000e+00> : vector<16xf32>
    %20 = vector.multi_reduction <add>, %19, %cst_7 [1] : vector<16x32xf32> to vector<16xf32>
    %21 = vector.shape_cast %20 : vector<16xf32> to vector<16x1xf32>
    %cst_8 = arith.constant 3.200000e+01 : f32
    %22 = vector.broadcast %cst_8 : f32 to vector<16x1xf32>
    %23 = arith.divf %21, %22 : vector<16x1xf32>
    %24 = vector.broadcast %16 : vector<16x1xf32> to vector<16x32xf32>
    %25 = arith.subf %0, %24 : vector<16x32xf32>
    %cst_9 = arith.constant 9.99999997E-7 : f32
    %26 = vector.broadcast %cst_9 : f32 to vector<16x1xf32>
    %27 = arith.addf %23, %26 : vector<16x1xf32>
    %28 = math.rsqrt %27 : vector<16x1xf32>
    %29 = vector.broadcast %28 : vector<16x1xf32> to vector<16x32xf32>
    %30 = arith.mulf %25, %29 : vector<16x32xf32>
    %31 = vector.broadcast %3 : vector<1x32xf32> to vector<16x32xf32>
    %32 = arith.mulf %30, %31 : vector<16x32xf32>
    %33 = vector.broadcast %4 : vector<1x32xf32> to vector<16x32xf32>
    %34 = arith.addf %32, %33 : vector<16x32xf32>
    %c0_10 = arith.constant 0 : index
    %c0_11 = arith.constant 0 : index
    %35 = vector.load %arg4[%c0_10, %c0_11] : memref<32x32xf32, #tpu.memory_space<vmem>>, vector<32x32xf32>
    %cst_12 = arith.constant dense<0.000000e+00> : vector<16x32xf32>
    %36 = tpu.matmul %34, %35, %cst_12 {dimension_numbers = #tpu.dot_dimension_numbers<[1], [0], [0], [1], [0, 0, 1, 1], [], []>} : vector<16x32xf32>, vector<32x32xf32>, vector<16x32xf32> -> vector<16x32xf32>
    %37 = vector.broadcast %5 : vector<1x32xf32> to vector<16x32xf32>
    %38 = arith.addf %36, %37 : vector<16x32xf32>
    %c0_13 = arith.constant 0 : index
    %c0_14 = arith.constant 0 : index
    %39 = vector.load %arg5[%c0_13, %c0_14] : memref<32x32xf32, #tpu.memory_space<vmem>>, vector<32x32xf32>
    %cst_15 = arith.constant dense<0.000000e+00> : vector<16x32xf32>
    %40 = tpu.matmul %34, %39, %cst_15 {dimension_numbers = #tpu.dot_dimension_numbers<[1], [0], [0], [1], [0, 0, 1, 1], [], []>} : vector<16x32xf32>, vector<32x32xf32>, vector<16x32xf32> -> vector<16x32xf32>
    %41 = vector.broadcast %6 : vector<1x32xf32> to vector<16x32xf32>
    %42 = arith.addf %40, %41 : vector<16x32xf32>
    %c0_16 = arith.constant 0 : index
    %c0_17 = arith.constant 0 : index
    %43 = vector.load %arg6[%c0_16, %c0_17] : memref<32x32xf32, #tpu.memory_space<vmem>>, vector<32x32xf32>
    %cst_18 = arith.constant dense<0.000000e+00> : vector<16x32xf32>
    %44 = tpu.matmul %34, %43, %cst_18 {dimension_numbers = #tpu.dot_dimension_numbers<[1], [0], [0], [1], [0, 0, 1, 1], [], []>} : vector<16x32xf32>, vector<32x32xf32>, vector<16x32xf32> -> vector<16x32xf32>
    %45 = vector.broadcast %7 : vector<1x32xf32> to vector<16x32xf32>
    %46 = arith.addf %44, %45 : vector<16x32xf32>
    %47 = tpu.iota {dimensions = array<i32: 0>} : vector<8x8xi32>
    %48 = tpu.iota {dimensions = array<i32: 1>} : vector<8x8xi32>
    %49 = arith.cmpi sgt, %48, %47 : vector<8x8xi32>
    %c0_19 = arith.constant 0 : index
    %c0_20 = arith.constant 0 : index
    %50 = vector.load %arg7[%c0_19, %c0_20] : memref<32x32xf32, #tpu.memory_space<vmem>>, vector<32x32xf32>
    %51 = vector.extract_strided_slice %38 {offsets = [0, 0], sizes = [8, 8], strides = [1, 1]} : vector<16x32xf32> to vector<8x8xf32>
    %52 = vector.extract_strided_slice %38 {offsets = [0, 8], sizes = [8, 8], strides = [1, 1]} : vector<16x32xf32> to vector<8x8xf32>
    %53 = vector.extract_strided_slice %38 {offsets = [0, 16], sizes = [8, 8], strides = [1, 1]} : vector<16x32xf32> to vector<8x8xf32>
    %54 = vector.extract_strided_slice %38 {offsets = [0, 24], sizes = [8, 8], strides = [1, 1]} : vector<16x32xf32> to vector<8x8xf32>
    %55 = vector.shape_cast %51 : vector<8x8xf32> to vector<1x8x8xf32>
    %56 = vector.shape_cast %52 : vector<8x8xf32> to vector<1x8x8xf32>
    %57 = vector.shape_cast %53 : vector<8x8xf32> to vector<1x8x8xf32>
    %58 = vector.shape_cast %54 : vector<8x8xf32> to vector<1x8x8xf32>
    %59 = tpu.concatenate %55, %56, %57, %58 in 0 : vector<1x8x8xf32>, vector<1x8x8xf32>, vector<1x8x8xf32>, vector<1x8x8xf32> -> vector<4x8x8xf32>
    %60 = vector.extract_strided_slice %42 {offsets = [0, 0], sizes = [8, 8], strides = [1, 1]} : vector<16x32xf32> to vector<8x8xf32>
    %61 = vector.extract_strided_slice %42 {offsets = [0, 8], sizes = [8, 8], strides = [1, 1]} : vector<16x32xf32> to vector<8x8xf32>
    %62 = vector.extract_strided_slice %42 {offsets = [0, 16], sizes = [8, 8], strides = [1, 1]} : vector<16x32xf32> to vector<8x8xf32>
    %63 = vector.extract_strided_slice %42 {offsets = [0, 24], sizes = [8, 8], strides = [1, 1]} : vector<16x32xf32> to vector<8x8xf32>
    %64 = vector.shape_cast %60 : vector<8x8xf32> to vector<1x8x8xf32>
    %65 = vector.shape_cast %61 : vector<8x8xf32> to vector<1x8x8xf32>
    %66 = vector.shape_cast %62 : vector<8x8xf32> to vector<1x8x8xf32>
    %67 = vector.shape_cast %63 : vector<8x8xf32> to vector<1x8x8xf32>
    %68 = tpu.concatenate %64, %65, %66, %67 in 0 : vector<1x8x8xf32>, vector<1x8x8xf32>, vector<1x8x8xf32>, vector<1x8x8xf32> -> vector<4x8x8xf32>
    %69 = vector.extract_strided_slice %46 {offsets = [0, 0], sizes = [8, 8], strides = [1, 1]} : vector<16x32xf32> to vector<8x8xf32>
    %70 = vector.extract_strided_slice %46 {offsets = [0, 8], sizes = [8, 8], strides = [1, 1]} : vector<16x32xf32> to vector<8x8xf32>
    %71 = vector.extract_strided_slice %46 {offsets = [0, 16], sizes = [8, 8], strides = [1, 1]} : vector<16x32xf32> to vector<8x8xf32>
    %72 = vector.extract_strided_slice %46 {offsets = [0, 24], sizes = [8, 8], strides = [1, 1]} : vector<16x32xf32> to vector<8x8xf32>
    %73 = vector.shape_cast %69 : vector<8x8xf32> to vector<1x8x8xf32>
    %74 = vector.shape_cast %70 : vector<8x8xf32> to vector<1x8x8xf32>
    %75 = vector.shape_cast %71 : vector<8x8xf32> to vector<1x8x8xf32>
    %76 = vector.shape_cast %72 : vector<8x8xf32> to vector<1x8x8xf32>
    %77 = tpu.concatenate %73, %74, %75, %76 in 0 : vector<1x8x8xf32>, vector<1x8x8xf32>, vector<1x8x8xf32>, vector<1x8x8xf32> -> vector<4x8x8xf32>
    %cst_21 = arith.constant dense<0.000000e+00> : vector<4x8x8xf32>
    %78 = tpu.matmul %59, %68, %cst_21 {dimension_numbers = #tpu.dot_dimension_numbers<[2], [2], [1], [1], [0, 0, 0, 1, 1, 1], [0], [0]>} : vector<4x8x8xf32>, vector<4x8x8xf32>, vector<4x8x8xf32> -> vector<4x8x8xf32>
    %79 = vector.extract_strided_slice %1 {offsets = [0, 0, 0], sizes = [1, 1, 8], strides = [1, 1, 1]} : vector<2x1x8xi32> to vector<1x1x8xi32>
    %80 = vector.shape_cast %79 : vector<1x1x8xi32> to vector<1x8xi32>
    %c0_i32 = arith.constant 0 : i32
    %81 = vector.broadcast %c0_i32 : i32 to vector<1x8xi32>
    %82 = arith.cmpi sgt, %80, %81 : vector<1x8xi32>
    %83 = vector.broadcast %82 : vector<1x8xi1> to vector<8x8xi1>
    %84 = arith.ori %49, %83 : vector<8x8xi1>
    %85 = vector.shape_cast %84 : vector<8x8xi1> to vector<1x8x8xi1>
    %cst_22 = arith.constant -9.99999984E+17 : f32
    %86 = vector.shape_cast %85 : vector<1x8x8xi1> to vector<1x8x8xi1>
    %87 = vector.broadcast %86 : vector<1x8x8xi1> to vector<4x8x8xi1>
    %88 = vector.broadcast %cst_22 : f32 to vector<4x8x8xf32>
    %89 = arith.select %87, %88, %78 : vector<4x8x8xi1>, vector<4x8x8xf32>
    %cst_23 = arith.constant dense<0xFF800000> : vector<4x8xf32>
    %90 = vector.multi_reduction <maximumf>, %89, %cst_23 [2] : vector<4x8x8xf32> to vector<4x8xf32>
    %91 = vector.shape_cast %90 : vector<4x8xf32> to vector<4x8x1xf32>
    %92 = vector.broadcast %91 : vector<4x8x1xf32> to vector<4x8x8xf32>
    %93 = arith.subf %89, %92 : vector<4x8x8xf32>
    %94 = math.exp %93 : vector<4x8x8xf32>
    %cst_24 = arith.constant dense<0.000000e+00> : vector<4x8xf32>
    %95 = vector.multi_reduction <add>, %94, %cst_24 [2] : vector<4x8x8xf32> to vector<4x8xf32>
    %96 = vector.shape_cast %95 : vector<4x8xf32> to vector<4x8x1xf32>
    %97 = tpu.reciprocal %96 : vector<4x8x1xf32> -> vector<4x8x1xf32>
    %98 = vector.broadcast %97 : vector<4x8x1xf32> to vector<4x8x8xf32>
    %99 = arith.mulf %94, %98 : vector<4x8x8xf32>
    %100 = vector.extract_strided_slice %99 {offsets = [0, 0, 0], sizes = [1, 8, 8], strides = [1, 1, 1]} : vector<4x8x8xf32> to vector<1x8x8xf32>
    %101 = vector.shape_cast %100 : vector<1x8x8xf32> to vector<8x8xf32>
    %c0_25 = arith.constant 0 : index
    %c0_26 = arith.constant 0 : index
    %c0_27 = arith.constant 0 : index
    %102 = vector.load %arg11[%c0_25, %c0_26, %c0_27] : memref<2x8x8xf32, #tpu.memory_space<vmem>>, vector<1x8x8xf32>
    %103 = vector.shape_cast %102 : vector<1x8x8xf32> to vector<8x8xf32>
    %104 = vector.shape_cast %101 : vector<8x8xf32> to vector<1x8x8xf32>
    tpu.vector_store %arg11[%c0_25, %c0_26, %c0_27], %104 {strides = array<i32>} : memref<2x8x8xf32, #tpu.memory_space<vmem>>, vector<1x8x8xf32>,
    %cst_28 = arith.constant dense<0.000000e+00> : vector<4x8x8xf32>
    %105 = tpu.matmul %99, %77, %cst_28 {dimension_numbers = #tpu.dot_dimension_numbers<[2], [1], [1], [2], [0, 0, 0, 1, 1, 2], [0], [0]>} : vector<4x8x8xf32>, vector<4x8x8xf32>, vector<4x8x8xf32> -> vector<4x8x8xf32>
    %106 = vector.extract_strided_slice %105 {offsets = [0, 0, 0], sizes = [1, 8, 8], strides = [1, 1, 1]} : vector<4x8x8xf32> to vector<1x8x8xf32>
    %107 = vector.shape_cast %106 : vector<1x8x8xf32> to vector<8x8xf32>
    %108 = vector.extract_strided_slice %105 {offsets = [1, 0, 0], sizes = [1, 8, 8], strides = [1, 1, 1]} : vector<4x8x8xf32> to vector<1x8x8xf32>
    %109 = vector.shape_cast %108 : vector<1x8x8xf32> to vector<8x8xf32>
    %110 = vector.extract_strided_slice %105 {offsets = [2, 0, 0], sizes = [1, 8, 8], strides = [1, 1, 1]} : vector<4x8x8xf32> to vector<1x8x8xf32>
    %111 = vector.shape_cast %110 : vector<1x8x8xf32> to vector<8x8xf32>
    %112 = vector.extract_strided_slice %105 {offsets = [3, 0, 0], sizes = [1, 8, 8], strides = [1, 1, 1]} : vector<4x8x8xf32> to vector<1x8x8xf32>
    %113 = vector.shape_cast %112 : vector<1x8x8xf32> to vector<8x8xf32>
    %114 = tpu.concatenate %107, %109, %111, %113 in 1 : vector<8x8xf32>, vector<8x8xf32>, vector<8x8xf32>, vector<8x8xf32> -> vector<8x32xf32>
    %cst_29 = arith.constant dense<0.000000e+00> : vector<8x32xf32>
    %115 = tpu.matmul %114, %50, %cst_29 {dimension_numbers = #tpu.dot_dimension_numbers<[1], [0], [0], [1], [0, 0, 1, 1], [], []>} : vector<8x32xf32>, vector<32x32xf32>, vector<8x32xf32> -> vector<8x32xf32>
    %116 = vector.broadcast %8 : vector<1x32xf32> to vector<8x32xf32>
    %117 = arith.addf %115, %116 : vector<8x32xf32>
    %118 = vector.extract_strided_slice %0 {offsets = [0, 0], sizes = [8, 32], strides = [1, 1]} : vector<16x32xf32> to vector<8x32xf32>
    %119 = arith.addf %117, %118 : vector<8x32xf32>
    %120 = vector.extract_strided_slice %38 {offsets = [8, 0], sizes = [8, 8], strides = [1, 1]} : vector<16x32xf32> to vector<8x8xf32>
    %121 = vector.extract_strided_slice %38 {offsets = [8, 8], sizes = [8, 8], strides = [1, 1]} : vector<16x32xf32> to vector<8x8xf32>
    %122 = vector.extract_strided_slice %38 {offsets = [8, 16], sizes = [8, 8], strides = [1, 1]} : vector<16x32xf32> to vector<8x8xf32>
    %123 = vector.extract_strided_slice %38 {offsets = [8, 24], sizes = [8, 8], strides = [1, 1]} : vector<16x32xf32> to vector<8x8xf32>
    %124 = vector.shape_cast %120 : vector<8x8xf32> to vector<1x8x8xf32>
    %125 = vector.shape_cast %121 : vector<8x8xf32> to vector<1x8x8xf32>
    %126 = vector.shape_cast %122 : vector<8x8xf32> to vector<1x8x8xf32>
    %127 = vector.shape_cast %123 : vector<8x8xf32> to vector<1x8x8xf32>
    %128 = tpu.concatenate %124, %125, %126, %127 in 0 : vector<1x8x8xf32>, vector<1x8x8xf32>, vector<1x8x8xf32>, vector<1x8x8xf32> -> vector<4x8x8xf32>
    %129 = vector.extract_strided_slice %42 {offsets = [8, 0], sizes = [8, 8], strides = [1, 1]} : vector<16x32xf32> to vector<8x8xf32>
    %130 = vector.extract_strided_slice %42 {offsets = [8, 8], sizes = [8, 8], strides = [1, 1]} : vector<16x32xf32> to vector<8x8xf32>
    %131 = vector.extract_strided_slice %42 {offsets = [8, 16], sizes = [8, 8], strides = [1, 1]} : vector<16x32xf32> to vector<8x8xf32>
    %132 = vector.extract_strided_slice %42 {offsets = [8, 24], sizes = [8, 8], strides = [1, 1]} : vector<16x32xf32> to vector<8x8xf32>
    %133 = vector.shape_cast %129 : vector<8x8xf32> to vector<1x8x8xf32>
    %134 = vector.shape_cast %130 : vector<8x8xf32> to vector<1x8x8xf32>
    %135 = vector.shape_cast %131 : vector<8x8xf32> to vector<1x8x8xf32>
    %136 = vector.shape_cast %132 : vector<8x8xf32> to vector<1x8x8xf32>
    %137 = tpu.concatenate %133, %134, %135, %136 in 0 : vector<1x8x8xf32>, vector<1x8x8xf32>, vector<1x8x8xf32>, vector<1x8x8xf32> -> vector<4x8x8xf32>
    %138 = vector.extract_strided_slice %46 {offsets = [8, 0], sizes = [8, 8], strides = [1, 1]} : vector<16x32xf32> to vector<8x8xf32>
    %139 = vector.extract_strided_slice %46 {offsets = [8, 8], sizes = [8, 8], strides = [1, 1]} : vector<16x32xf32> to vector<8x8xf32>
    %140 = vector.extract_strided_slice %46 {offsets = [8, 16], sizes = [8, 8], strides = [1, 1]} : vector<16x32xf32> to vector<8x8xf32>
    %141 = vector.extract_strided_slice %46 {offsets = [8, 24], sizes = [8, 8], strides = [1, 1]} : vector<16x32xf32> to vector<8x8xf32>
    %142 = vector.shape_cast %138 : vector<8x8xf32> to vector<1x8x8xf32>
    %143 = vector.shape_cast %139 : vector<8x8xf32> to vector<1x8x8xf32>
    %144 = vector.shape_cast %140 : vector<8x8xf32> to vector<1x8x8xf32>
    %145 = vector.shape_cast %141 : vector<8x8xf32> to vector<1x8x8xf32>
    %146 = tpu.concatenate %142, %143, %144, %145 in 0 : vector<1x8x8xf32>, vector<1x8x8xf32>, vector<1x8x8xf32>, vector<1x8x8xf32> -> vector<4x8x8xf32>
    %cst_30 = arith.constant dense<0.000000e+00> : vector<4x8x8xf32>
    %147 = tpu.matmul %128, %137, %cst_30 {dimension_numbers = #tpu.dot_dimension_numbers<[2], [2], [1], [1], [0, 0, 0, 1, 1, 1], [0], [0]>} : vector<4x8x8xf32>, vector<4x8x8xf32>, vector<4x8x8xf32> -> vector<4x8x8xf32>
    %148 = vector.extract_strided_slice %1 {offsets = [1, 0, 0], sizes = [1, 1, 8], strides = [1, 1, 1]} : vector<2x1x8xi32> to vector<1x1x8xi32>
    %149 = vector.shape_cast %148 : vector<1x1x8xi32> to vector<1x8xi32>
    %c0_i32_31 = arith.constant 0 : i32
    %150 = vector.broadcast %c0_i32_31 : i32 to vector<1x8xi32>
    %151 = arith.cmpi sgt, %149, %150 : vector<1x8xi32>
    %152 = vector.broadcast %151 : vector<1x8xi1> to vector<8x8xi1>
    %153 = arith.ori %49, %152 : vector<8x8xi1>
    %154 = vector.shape_cast %153 : vector<8x8xi1> to vector<1x8x8xi1>
    %cst_32 = arith.constant -9.99999984E+17 : f32
    %155 = vector.shape_cast %154 : vector<1x8x8xi1> to vector<1x8x8xi1>
    %156 = vector.broadcast %155 : vector<1x8x8xi1> to vector<4x8x8xi1>
    %157 = vector.broadcast %cst_32 : f32 to vector<4x8x8xf32>
    %158 = arith.select %156, %157, %147 : vector<4x8x8xi1>, vector<4x8x8xf32>
    %cst_33 = arith.constant dense<0xFF800000> : vector<4x8xf32>
    %159 = vector.multi_reduction <maximumf>, %158, %cst_33 [2] : vector<4x8x8xf32> to vector<4x8xf32>
    %160 = vector.shape_cast %159 : vector<4x8xf32> to vector<4x8x1xf32>
    %161 = vector.broadcast %160 : vector<4x8x1xf32> to vector<4x8x8xf32>
    %162 = arith.subf %158, %161 : vector<4x8x8xf32>
    %163 = math.exp %162 : vector<4x8x8xf32>
    %cst_34 = arith.constant dense<0.000000e+00> : vector<4x8xf32>
    %164 = vector.multi_reduction <add>, %163, %cst_34 [2] : vector<4x8x8xf32> to vector<4x8xf32>
    %165 = vector.shape_cast %164 : vector<4x8xf32> to vector<4x8x1xf32>
    %166 = tpu.reciprocal %165 : vector<4x8x1xf32> -> vector<4x8x1xf32>
    %167 = vector.broadcast %166 : vector<4x8x1xf32> to vector<4x8x8xf32>
    %168 = arith.mulf %163, %167 : vector<4x8x8xf32>
    %169 = vector.extract_strided_slice %168 {offsets = [0, 0, 0], sizes = [1, 8, 8], strides = [1, 1, 1]} : vector<4x8x8xf32> to vector<1x8x8xf32>
    %170 = vector.shape_cast %169 : vector<1x8x8xf32> to vector<8x8xf32>
    %c1 = arith.constant 1 : index
    %c0_35 = arith.constant 0 : index
    %c0_36 = arith.constant 0 : index
    %171 = vector.load %arg11[%c1, %c0_35, %c0_36] : memref<2x8x8xf32, #tpu.memory_space<vmem>>, vector<1x8x8xf32>
    %172 = vector.shape_cast %171 : vector<1x8x8xf32> to vector<8x8xf32>
    %173 = vector.shape_cast %170 : vector<8x8xf32> to vector<1x8x8xf32>
    tpu.vector_store %arg11[%c1, %c0_35, %c0_36], %173 {strides = array<i32>} : memref<2x8x8xf32, #tpu.memory_space<vmem>>, vector<1x8x8xf32>,
    %cst_37 = arith.constant dense<0.000000e+00> : vector<4x8x8xf32>
    %174 = tpu.matmul %168, %146, %cst_37 {dimension_numbers = #tpu.dot_dimension_numbers<[2], [1], [1], [2], [0, 0, 0, 1, 1, 2], [0], [0]>} : vector<4x8x8xf32>, vector<4x8x8xf32>, vector<4x8x8xf32> -> vector<4x8x8xf32>
    %175 = vector.extract_strided_slice %174 {offsets = [0, 0, 0], sizes = [1, 8, 8], strides = [1, 1, 1]} : vector<4x8x8xf32> to vector<1x8x8xf32>
    %176 = vector.shape_cast %175 : vector<1x8x8xf32> to vector<8x8xf32>
    %177 = vector.extract_strided_slice %174 {offsets = [1, 0, 0], sizes = [1, 8, 8], strides = [1, 1, 1]} : vector<4x8x8xf32> to vector<1x8x8xf32>
    %178 = vector.shape_cast %177 : vector<1x8x8xf32> to vector<8x8xf32>
    %179 = vector.extract_strided_slice %174 {offsets = [2, 0, 0], sizes = [1, 8, 8], strides = [1, 1, 1]} : vector<4x8x8xf32> to vector<1x8x8xf32>
    %180 = vector.shape_cast %179 : vector<1x8x8xf32> to vector<8x8xf32>
    %181 = vector.extract_strided_slice %174 {offsets = [3, 0, 0], sizes = [1, 8, 8], strides = [1, 1, 1]} : vector<4x8x8xf32> to vector<1x8x8xf32>
    %182 = vector.shape_cast %181 : vector<1x8x8xf32> to vector<8x8xf32>
    %183 = tpu.concatenate %176, %178, %180, %182 in 1 : vector<8x8xf32>, vector<8x8xf32>, vector<8x8xf32>, vector<8x8xf32> -> vector<8x32xf32>
    %cst_38 = arith.constant dense<0.000000e+00> : vector<8x32xf32>
    %184 = tpu.matmul %183, %50, %cst_38 {dimension_numbers = #tpu.dot_dimension_numbers<[1], [0], [0], [1], [0, 0, 1, 1], [], []>} : vector<8x32xf32>, vector<32x32xf32>, vector<8x32xf32> -> vector<8x32xf32>
    %185 = vector.broadcast %8 : vector<1x32xf32> to vector<8x32xf32>
    %186 = arith.addf %184, %185 : vector<8x32xf32>
    %187 = vector.extract_strided_slice %0 {offsets = [8, 0], sizes = [8, 32], strides = [1, 1]} : vector<16x32xf32> to vector<8x32xf32>
    %188 = arith.addf %186, %187 : vector<8x32xf32>
    %189 = tpu.concatenate %119, %188 in 0 : vector<8x32xf32>, vector<8x32xf32> -> vector<16x32xf32>
    %cst_39 = arith.constant dense<0.000000e+00> : vector<16xf32>
    %190 = vector.multi_reduction <add>, %189, %cst_39 [1] : vector<16x32xf32> to vector<16xf32>
    %191 = vector.shape_cast %190 : vector<16xf32> to vector<16x1xf32>
    %cst_40 = arith.constant 3.200000e+01 : f32
    %192 = vector.broadcast %cst_40 : f32 to vector<16x1xf32>
    %193 = arith.divf %191, %192 : vector<16x1xf32>
    %194 = vector.broadcast %193 : vector<16x1xf32> to vector<16x32xf32>
    %195 = arith.subf %189, %194 : vector<16x32xf32>
    %196 = arith.mulf %195, %195 : vector<16x32xf32>
    %cst_41 = arith.constant dense<0.000000e+00> : vector<16xf32>
    %197 = vector.multi_reduction <add>, %196, %cst_41 [1] : vector<16x32xf32> to vector<16xf32>
    %198 = vector.shape_cast %197 : vector<16xf32> to vector<16x1xf32>
    %cst_42 = arith.constant 3.200000e+01 : f32
    %199 = vector.broadcast %cst_42 : f32 to vector<16x1xf32>
    %200 = arith.divf %198, %199 : vector<16x1xf32>
    %201 = vector.broadcast %193 : vector<16x1xf32> to vector<16x32xf32>
    %202 = arith.subf %189, %201 : vector<16x32xf32>
    %cst_43 = arith.constant 9.99999997E-7 : f32
    %203 = vector.broadcast %cst_43 : f32 to vector<16x1xf32>
    %204 = arith.addf %200, %203 : vector<16x1xf32>
    %205 = math.rsqrt %204 : vector<16x1xf32>
    %206 = vector.broadcast %205 : vector<16x1xf32> to vector<16x32xf32>
    %207 = arith.mulf %202, %206 : vector<16x32xf32>
    %208 = vector.broadcast %9 : vector<1x32xf32> to vector<16x32xf32>
    %209 = arith.mulf %207, %208 : vector<16x32xf32>
    %210 = vector.broadcast %10 : vector<1x32xf32> to vector<16x32xf32>
    %211 = arith.addf %209, %210 : vector<16x32xf32>
    %c0_44 = arith.constant 0 : index
    %c0_45 = arith.constant 0 : index
    %212 = vector.load %arg8[%c0_44, %c0_45] : memref<32x64xf32, #tpu.memory_space<vmem>>, vector<32x64xf32>
    %cst_46 = arith.constant dense<0.000000e+00> : vector<16x64xf32>
    %213 = tpu.matmul %211, %212, %cst_46 {dimension_numbers = #tpu.dot_dimension_numbers<[1], [0], [0], [1], [0, 0, 1, 1], [], []>} : vector<16x32xf32>, vector<32x64xf32>, vector<16x64xf32> -> vector<16x64xf32>
    %214 = vector.broadcast %12 : vector<1x64xf32> to vector<16x64xf32>
    %215 = arith.addf %213, %214 : vector<16x64xf32>
    %cst_47 = arith.constant 0.000000e+00 : f32
    %216 = vector.broadcast %cst_47 : f32 to vector<16x64xf32>
    %217 = arith.maximumf %215, %216 : vector<16x64xf32>
    %c0_48 = arith.constant 0 : index
    %c0_49 = arith.constant 0 : index
    %218 = vector.load %arg9[%c0_48, %c0_49] : memref<64x32xf32, #tpu.memory_space<vmem>>, vector<64x32xf32>
    %cst_50 = arith.constant dense<0.000000e+00> : vector<16x32xf32>
    %219 = tpu.matmul %217, %218, %cst_50 {dimension_numbers = #tpu.dot_dimension_numbers<[1], [0], [0], [1], [0, 0, 1, 1], [], []>} : vector<16x64xf32>, vector<64x32xf32>, vector<16x32xf32> -> vector<16x32xf32>
    %220 = vector.broadcast %11 : vector<1x32xf32> to vector<16x32xf32>
    %221 = arith.addf %219, %220 : vector<16x32xf32>
    %222 = arith.addf %221, %189 : vector<16x32xf32>
    %c0_51 = arith.constant 0 : index
    %c0_52 = arith.constant 0 : index
    %223 = vector.load %arg10[%c0_51, %c0_52] : memref<16x32xf32, #tpu.memory_space<vmem>>, vector<16x32xf32>
    tpu.vector_store %arg10[%c0_51, %c0_52], %222 {strides = array<i32>} : memref<16x32xf32, #tpu.memory_space<vmem>>, vector<16x32xf32>,
    return
  }
  func.func @transform_0(%arg0: i32) -> (i32, i32) {
    %c0_i32 = arith.constant 0 : i32
    %c0_i32_0 = arith.constant 0 : i32
    return %arg0, %c0_i32 : i32, i32
  }
  func.func @transform_1(%arg0: i32) -> (i32, i32, i32) {
    %c0_i32 = arith.constant 0 : i32
    %c0_i32_0 = arith.constant 0 : i32
    %c0_i32_1 = arith.constant 0 : i32
    return %arg0, %c0_i32, %c0_i32_0 : i32, i32, i32
  }
  func.func @transform_2(%arg0: i32) -> (i32, i32) {
    %c0_i32 = arith.constant 0 : i32
    %c0_i32_0 = arith.constant 0 : i32
    %c0_i32_1 = arith.constant 0 : i32
    return %c0_i32, %c0_i32_0 : i32, i32
  }
  func.func @transform_3(%arg0: i32) -> (i32, i32) {
    %c0_i32 = arith.constant 0 : i32
    %c0_i32_0 = arith.constant 0 : i32
    %c0_i32_1 = arith.constant 0 : i32
    return %c0_i32, %c0_i32_0 : i32, i32
  }
  func.func @transform_4(%arg0: i32) -> (i32, i32) {
    %c0_i32 = arith.constant 0 : i32
    %c0_i32_0 = arith.constant 0 : i32
    %c0_i32_1 = arith.constant 0 : i32
    return %c0_i32, %c0_i32_0 : i32, i32
  }
  func.func @transform_5(%arg0: i32) -> (i32, i32) {
    %c0_i32 = arith.constant 0 : i32
    %c0_i32_0 = arith.constant 0 : i32
    %c0_i32_1 = arith.constant 0 : i32
    return %c0_i32, %c0_i32_0 : i32, i32
  }
  func.func @transform_6(%arg0: i32) -> (i32, i32) {
    %c0_i32 = arith.constant 0 : i32
    %c0_i32_0 = arith.constant 0 : i32
    %c0_i32_1 = arith.constant 0 : i32
    return %c0_i32, %c0_i32_0 : i32, i32
  }
  func.func @transform_7(%arg0: i32) -> (i32, i32) {
    %c0_i32 = arith.constant 0 : i32
    %c0_i32_0 = arith.constant 0 : i32
    %c0_i32_1 = arith.constant 0 : i32
    return %c0_i32, %c0_i32_0 : i32, i32
  }
  func.func @transform_8(%arg0: i32) -> (i32, i32) {
    %c0_i32 = arith.constant 0 : i32
    %c0_i32_0 = arith.constant 0 : i32
    %c0_i32_1 = arith.constant 0 : i32
    return %c0_i32, %c0_i32_0 : i32, i32
  }
  func.func @transform_9(%arg0: i32) -> (i32, i32) {
    %c0_i32 = arith.constant 0 : i32
    %c0_i32_0 = arith.constant 0 : i32
    return %arg0, %c0_i32 : i32, i32
  }
  func.func @transform_10(%arg0: i32) -> (i32, i32, i32) {
    %c0_i32 = arith.constant 0 : i32
    %c0_i32_0 = arith.constant 0 : i32
    %c0_i32_1 = arith.constant 0 : i32
    return %arg0, %c0_i32, %c0_i32_0 : i32, i32, i32
  }
}

</mosaic_0001>

<llo_original>
// kernel: tpu_custom_call.1
$region0: #{tpu_custom_call.1}
  #allocation0 [shape = 'u32[]', space=smem, size = 0x4, offset = 0x4, fixed_abs, tag = 'smem constant byte address 0x4 - core index']
  #allocation1 [shape = 'u32[144,128]{1,0:T(1,128)}', space=vmem, size = 0x12000, scoped, tag = 'internal scratch']
  %s0 = inlined_call_operand.hbm [shape: f32[16,32], index: 0, kind: input, shape index: {}]
  %s1 = inlined_call_operand.vmem [shape: s32[2,1,8], index: 1, kind: input, shape index: {}]
  %s2 = inlined_call_operand.hbm [shape: f32[16,64], index: 2, kind: input, shape index: {}]
  %s3 = inlined_call_operand.vmem [shape: f32[32,32], index: 3, kind: input, shape index: {}]
  %s4 = inlined_call_operand.vmem [shape: f32[32,32], index: 4, kind: input, shape index: {}]
  %s5 = inlined_call_operand.vmem [shape: f32[32,32], index: 5, kind: input, shape index: {}]
  %s6 = inlined_call_operand.hbm [shape: f32[32,32], index: 6, kind: input, shape index: {}]
  %s7 = inlined_call_operand.hbm [shape: f32[32,64], index: 7, kind: input, shape index: {}]
  %s8 = inlined_call_operand.vmem [shape: f32[64,32], index: 8, kind: input, shape index: {}]
  %s9 = inlined_call_operand.hbm [shape: f32[16,32], index: 9, kind: output, shape index: {0}]
  %s10 = inlined_call_operand.hbm [shape: f32[2,8,8], index: 10, kind: output, shape index: {1}]
  %11 = xla_tuple %s9, %s10
  %s12 = sld [smem:[#allocation0]]
  $region70: #{tpu_custom_call.1} parent=0
    _
  %s14 = ssub.s32 1, %s12
  %s15 = scalar_select 0, %s14, %s12
  $region1: #{tpu_custom_call.1} parent=0
    #allocation2 [shape = 'u8[8192]{0}', space=vmem, size = 0x2000, scoped, tag = 'input window, operand 0, single buffered']
    #allocation3 [shape = 's32[1]{0}', space=sflag, size = 0x4, scoped, tag = 'scoped memory for tpu_custom_call.1']
    #allocation4 [shape = 's32[1]{0}', space=sflag, size = 0x4, scoped, tag = 'scoped memory for tpu_custom_call.1']
    #allocation5 [shape = 'u8[8192]{0}', space=vmem, size = 0x2000, scoped, tag = 'input window, operand 2, single buffered']
    #allocation6 [shape = 's32[1]{0}', space=sflag, size = 0x4, scoped, tag = 'scoped memory for tpu_custom_call.1']
    #allocation7 [shape = 'u8[16384]{0}', space=vmem, size = 0x4000, scoped, tag = 'input window, operand 6, single buffered']
    #allocation8 [shape = 'u8[16384]{0}', space=vmem, size = 0x4000, scoped, tag = 'input window, operand 7, single buffered']
    #allocation9 [shape = 's32[1]{0}', space=sflag, size = 0x4, scoped, tag = 'scoped memory for tpu_custom_call.1']
    #allocation10 [shape = 'u8[8192]{0}', space=vmem, size = 0x2000, scoped, tag = 'output window, operand 0, single buffered']
    #allocation11 [shape = 'u8[8192]{0}', space=vmem, size = 0x2000, scoped, tag = 'output window, operand 1, single buffered']
    #allocation12 [shape = 's32[1]{0}', space=sflag, size = 0x4, scoped, tag = 'scoped memory for tpu_custom_call.1']
    %16 = vsyncpa [#allocation3], 0
    %17 = vsyncpa [#allocation6], 0
    %18 = vsyncpa [#allocation9], 0
    %19 = vsyncpa [#allocation4], 0
    %20 = vsyncpa [#allocation12], 0
    // Predicated region
    $region2: #{tpu_custom_call.1} parent=1 // pred_check
      _
    $region3: #{tpu_custom_call.1} parent=1 // pred_check_branch
      %22 = sbr.rel (0) target = $region5
    $region4: #{tpu_custom_call.1} parent=1 // pred_region
      %s24 = ssub.s32 256, 256
      %25 = vsyncadd [#allocation3], %s24
      %s26 = sshll.u32 [#allocation2], 4
      %s27 = int_to_ptr.vmem [resolvable:$true] %s26
      %32 = dma.hbm_to_vmem [thread:$0]  %s0, 256, %s27, [#allocation3], 128, 128, 8
    $region5: #{tpu_custom_call.1} parent=1 // pred_fallthru
      _
    // Predicated region
    $region6: #{tpu_custom_call.1} parent=1 // pred_check
      _
    $region7: #{tpu_custom_call.1} parent=1 // pred_check_branch
      %34 = sbr.rel (0) target = $region9
    $region8: #{tpu_custom_call.1} parent=1 // pred_region
      _
    $region9: #{tpu_custom_call.1} parent=1 // pred_fallthru
      _
    // Predicated region
    $region10: #{tpu_custom_call.1} parent=1 // pred_check
      _
    $region11: #{tpu_custom_call.1} parent=1 // pred_check_branch
      %36 = sbr.rel (0) target = $region13
    $region12: #{tpu_custom_call.1} parent=1 // pred_region
      %s38 = ssub.s32 256, 256
      %39 = vsyncadd [#allocation6], %s38
      %s40 = sshll.u32 [#allocation5], 4
      %s41 = int_to_ptr.vmem [resolvable:$true] %s40
      %46 = dma.hbm_to_vmem [thread:$0]  %s2, 256, %s41, [#allocation6], 128, 128, 8
    $region13: #{tpu_custom_call.1} parent=1 // pred_fallthru
      _
    // Predicated region
    $region14: #{tpu_custom_call.1} parent=1 // pred_check
      _
    $region15: #{tpu_custom_call.1} parent=1 // pred_check_branch
      %48 = sbr.rel (0) target = $region17
    $region16: #{tpu_custom_call.1} parent=1 // pred_region
      _
    $region17: #{tpu_custom_call.1} parent=1 // pred_fallthru
      _
    // Predicated region
    $region18: #{tpu_custom_call.1} parent=1 // pred_check
      _
    $region19: #{tpu_custom_call.1} parent=1 // pred_check_branch
      %50 = sbr.rel (0) target = $region21
    $region20: #{tpu_custom_call.1} parent=1 // pred_region
      _
    $region21: #{tpu_custom_call.1} parent=1 // pred_fallthru
      _
    // Predicated region
    $region22: #{tpu_custom_call.1} parent=1 // pred_check
      _
    $region23: #{tpu_custom_call.1} parent=1 // pred_check_branch
      %52 = sbr.rel (0) target = $region25
    $region24: #{tpu_custom_call.1} parent=1 // pred_region
      _
    $region25: #{tpu_custom_call.1} parent=1 // pred_fallthru
      _
    // Predicated region
    $region26: #{tpu_custom_call.1} parent=1 // pred_check
      _
    $region27: #{tpu_custom_call.1} parent=1 // pred_check_branch
      %54 = sbr.rel (0) target = $region29
    $region28: #{tpu_custom_call.1} parent=1 // pred_region
      %s56 = ssub.s32 512, 512
      %57 = vsyncadd [#allocation6], %s56
      %s58 = sshll.u32 [#allocation7], 4
      %s59 = int_to_ptr.vmem [resolvable:$true] %s58
      %64 = dma.hbm_to_vmem [thread:$0]  %s6, 512, %s59, [#allocation6], 128, 128, 8
    $region29: #{tpu_custom_call.1} parent=1 // pred_fallthru
      _
    // Predicated region
    $region30: #{tpu_custom_call.1} parent=1 // pred_check
      _
    $region31: #{tpu_custom_call.1} parent=1 // pred_check_branch
      %66 = sbr.rel (0) target = $region33
    $region32: #{tpu_custom_call.1} parent=1 // pred_region
      %s68 = ssub.s32 512, 512
      %69 = vsyncadd [#allocation9], %s68
      %s70 = sshll.u32 [#allocation8], 4
      %s71 = int_to_ptr.vmem [resolvable:$true] %s70
      %76 = dma.hbm_to_vmem [thread:$0]  %s7, 512, %s71, [#allocation9], 128, 128, 8
    $region33: #{tpu_custom_call.1} parent=1 // pred_fallthru
      _
    // Predicated region
    $region34: #{tpu_custom_call.1} parent=1 // pred_check
      _
    $region35: #{tpu_custom_call.1} parent=1 // pred_check_branch
      %78 = sbr.rel (0) target = $region37
    $region36: #{tpu_custom_call.1} parent=1 // pred_region
      _
    $region37: #{tpu_custom_call.1} parent=1 // pred_fallthru
      _
    // Predicated region
    $region38: #{tpu_custom_call.1} parent=1 // pred_check
      _
    $region39: #{tpu_custom_call.1} parent=1 // pred_check_branch
      %80 = sbr.rel (0) target = $region41
    $region40: #{tpu_custom_call.1} parent=1 // pred_region
      %81 = dma.done [#allocation3], 256
    $region41: #{tpu_custom_call.1} parent=1 // pred_fallthru
      _
    // Predicated region
    $region42: #{tpu_custom_call.1} parent=1 // pred_check
      _
    $region43: #{tpu_custom_call.1} parent=1 // pred_check_branch
      %83 = sbr.rel (0) target = $region45
    $region44: #{tpu_custom_call.1} parent=1 // pred_region
      %84 = dma.done [#allocation6], 256
    $region45: #{tpu_custom_call.1} parent=1 // pred_fallthru
      _
    // Predicated region
    $region46: #{tpu_custom_call.1} parent=1 // pred_check
      _
    $region47: #{tpu_custom_call.1} parent=1 // pred_check_branch
      %86 = sbr.rel (0) target = $region49
    $region48: #{tpu_custom_call.1} parent=1 // pred_region
      %87 = dma.done [#allocation6], 512
    $region49: #{tpu_custom_call.1} parent=1 // pred_fallthru
      _
    // Predicated region
    $region50: #{tpu_custom_call.1} parent=1 // pred_check
      _
    $region51: #{tpu_custom_call.1} parent=1 // pred_check_branch
      %89 = sbr.rel (0) target = $region53
    $region52: #{tpu_custom_call.1} parent=1 // pred_region
      %90 = dma.done [#allocation9], 512
    $region53: #{tpu_custom_call.1} parent=1 // pred_fallthru
      _
    %v91 = vld [vmem:[#allocation2] sm:$0xff]
    %v92 = vld [vmem:[#allocation2 + $0x8] sm:$0xff]
    %v93 = vld [vmem:[%s1] sm:$0x1]
    %v94 = vld [vmem:[%s1 + $0x1] sm:$0x1]
    %v95 = vld [vmem:[#allocation5] sm:$0xff]
    %v96 = vld [vmem:[#allocation5 + $0x8] sm:$0xff]
    %vm97 = vcmask 261120
    %v98 = vsel %vm97, %v91, 0.0
    %99 = vadd.xlane.f32.xlu0 %v98
    %v100 = vpop.xlane.xlu0 %99
    %v101 = vsel %vm97, %v92, 0.0
    %102 = vadd.xlane.f32.xlu0 %v101
    %v103 = vpop.xlane.xlu0 %102
    %v104 = vrcp.pop 32.0
    %v105 = vmul.f32 %v100, %v104
    %v106 = vmul.f32 %v103, %v104
    %v107 = vsub.f32 %v91, %v105
    %v108 = vsub.f32 %v92, %v106
    %v109 = vmul.f32 %v107, %v107
    %v110 = vmul.f32 %v108, %v108
    %v111 = vsel %vm97, %v109, 0.0
    %112 = vadd.xlane.f32.xlu0 %v111
    %v113 = vpop.xlane.xlu0 %112
    %v114 = vsel %vm97, %v110, 0.0
    %115 = vadd.xlane.f32.xlu0 %v114
    %v116 = vpop.xlane.xlu0 %115
    %v117 = vmul.f32 %v113, %v104
    %v118 = vmul.f32 %v116, %v104
    %v119 = vadd.f32 %v117, 1e-06
    %v120 = vadd.f32 %v118, 1e-06
    %v121 = vrsqrt.pop %v119
    %v122 = vrsqrt.pop %v120
    %v123 = vmul.f32 %v107, %v121
    %v124 = vmul.f32 %v108, %v122
    %v125 = vlaneseq
    %v126 = vshrl.u32 %v125, 7
    %v127 = vsub.s32 0, %v126
    %v128 = vrot.slane %v95, %v127
    %v129 = vmul.f32 %v123, %v128
    %v130 = vmul.f32 %v124, %v128
    %v131 = vlaneseq
    %v132 = vshrl.u32 %v131, 7
    %v133 = vsub.s32 1, %v132
    %v134 = vrot.slane %v95, %v133
    %v135 = vadd.f32 %v129, %v134
    %v136 = vadd.f32 %v130, %v134
    %v137 = vld [vmem:[%s3] sm:$0xff]
    %v138 = vld [vmem:[%s3 + $0x8] sm:$0xff]
    %v139 = vld [vmem:[%s3 + $0x10] sm:$0xff]
    %v140 = vld [vmem:[%s3 + $0x18] sm:$0xff]
    %v141 = vlaneseq
    %v142 = vshrl.u32 %v141, 7
    %v143 = vsub.s32 2, %v142
    %v144 = vrot.slane %v95, %v143
    %v146 = vsel %vm97, %v135, 0
    %v149 = vsel %vm97, %v136, 0
    %151 = vmatprep.subr.mxu0 0.0
    %152 = vmatpush1.msra.mxu0 %v137
    %153 = vmatprep.subr.mxu0 0.0
    %154 = vmatpush1.msra.mxu0 %v138
    %155 = vmatprep.subr.mxu0 0.0
    %156 = vmatpush1.msra.mxu0 %v139
    %157 = vmatprep.subr.mxu0 0.0
    %158 = vmatpush1.msra.mxu0 %v140
    %159 = vmatprep.subr.mxu0 0.0
    %160 = vmatpush1.msra.mxu0 0.0
    %161 = vmatprep.subr.mxu0 0.0
    %162 = vmatpush1.msra.mxu0 0.0
    %163 = vmatprep.subr.mxu0 0.0
    %164 = vmatpush1.msra.mxu0 0.0
    %165 = vmatprep.subr.mxu0 0.0
    %166 = vmatpush1.msra.mxu0 0.0
    %167 = vmatprep.subr.mxu0 0.0
    %168 = vmatpush1.msra.mxu0 0.0
    %169 = vmatprep.subr.mxu0 0.0
    %170 = vmatpush1.msra.mxu0 0.0
    %171 = vmatprep.subr.mxu0 0.0
    %172 = vmatpush1.msra.mxu0 0.0
    %173 = vmatprep.subr.mxu0 0.0
    %174 = vmatpush1.msra.mxu0 0.0
    %175 = vmatprep.subr.mxu0 0.0
    %176 = vmatpush1.msra.mxu0 0.0
    %177 = vmatprep.subr.mxu0 0.0
    %178 = vmatpush1.msra.mxu0 0.0
    %179 = vmatprep.subr.mxu0 0.0
    %180 = vmatpush1.msra.mxu0 0.0
    %181 = vmatprep.subr.mxu0 0.0
    %182 = vmatpush1.msra.mxu0 0.0
    %183 = vmatprep.subr.mxu0 0.0
    %184 = vmatpush1.msra.mxu0 0.0
    %185 = vmatprep.subr.mxu0 0.0
    %186 = vmatpush1.msra.mxu0 0.0
    %187 = vmatprep.subr.mxu0 0.0
    %188 = vmatpush1.msra.mxu0 0.0
    %189 = vmatprep.subr.mxu0 0.0
    %190 = vmatpush1.msra.mxu0 0.0
    %191 = vmatprep.subr.mxu0 0.0
    %192 = vmatpush1.msra.mxu0 0.0
    %193 = vmatprep.subr.mxu0 0.0
    %194 = vmatpush1.msra.mxu0 0.0
    %195 = vmatprep.subr.mxu0 0.0
    %196 = vmatpush1.msra.mxu0 0.0
    %197 = vmatprep.subr.mxu0 0.0
    %198 = vmatpush1.msra.mxu0 0.0
    %199 = vmatprep.subr.mxu0 0.0
    %200 = vmatpush1.msra.mxu0 0.0
    %201 = vmatprep.subr.mxu0 0.0
    %202 = vmatpush1.msra.mxu0 0.0
    %203 = vmatprep.subr.mxu0 0.0
    %204 = vmatpush1.msra.mxu0 0.0
    %205 = vmatprep.subr.mxu0 0.0
    %206 = vmatpush1.msra.mxu0 0.0
    %207 = vmatprep.subr.mxu0 0.0
    %208 = vmatpush1.msra.mxu0 0.0
    %209 = vmatprep.subr.mxu0 0.0
    %210 = vmatpush1.msra.mxu0 0.0
    %211 = vmatprep.subr.mxu0 0.0
    %212 = vmatpush1.msra.mxu0 0.0
    %213 = vmatprep.subr.mxu0 0.0
    %214 = vmatpush1.msra.mxu0 0.0
    %215 = vmatprep.mubr.f32.mxu0 0.0
    %216 = vmatmul.mubr.f32.gmra.mrb[0].mxu0 %v146
    %v217 = vpop.f32.mrb[0].mxu0
    %v218 = vadd.f32 %v144, %v217
    %v219 = vpop.f32.mrb[0].mxu0
    %220 = vmatprep.mubr.f32.mxu0 0.0
    %221 = vmatmul.mubr.f32.gmra.mrb[0].mxu0 %v149
    %v222 = vpop.f32.mrb[0].mxu0
    %v223 = vadd.f32 %v144, %v222
    %v224 = vpop.f32.mrb[0].mxu0
    %225 = vdwg.mxu0
    %v226 = vld [vmem:[%s4] sm:$0xff]
    %v227 = vld [vmem:[%s4 + $0x8] sm:$0xff]
    %v228 = vld [vmem:[%s4 + $0x10] sm:$0xff]
    %v229 = vld [vmem:[%s4 + $0x18] sm:$0xff]
    %v230 = vlaneseq
    %v231 = vshrl.u32 %v230, 7
    %v232 = vsub.s32 3, %v231
    %v233 = vrot.slane %v95, %v232
    %234 = vmatprep.subr.mxu0 0.0
    %235 = vmatpush1.msra.mxu0 %v226
    %236 = vmatprep.subr.mxu0 0.0
    %237 = vmatpush1.msra.mxu0 %v227
    %238 = vmatprep.subr.mxu0 0.0
    %239 = vmatpush1.msra.mxu0 %v228
    %240 = vmatprep.subr.mxu0 0.0
    %241 = vmatpush1.msra.mxu0 %v229
    %242 = vmatprep.subr.mxu0 0.0
    %243 = vmatpush1.msra.mxu0 0.0
    %244 = vmatprep.subr.mxu0 0.0
    %245 = vmatpush1.msra.mxu0 0.0
    %246 = vmatprep.subr.mxu0 0.0
    %247 = vmatpush1.msra.mxu0 0.0
    %248 = vmatprep.subr.mxu0 0.0
    %249 = vmatpush1.msra.mxu0 0.0
    %250 = vmatprep.subr.mxu0 0.0
    %251 = vmatpush1.msra.mxu0 0.0
    %252 = vmatprep.subr.mxu0 0.0
    %253 = vmatpush1.msra.mxu0 0.0
    %254 = vmatprep.subr.mxu0 0.0
    %255 = vmatpush1.msra.mxu0 0.0
    %256 = vmatprep.subr.mxu0 0.0
    %257 = vmatpush1.msra.mxu0 0.0
    %258 = vmatprep.subr.mxu0 0.0
    %259 = vmatpush1.msra.mxu0 0.0
    %260 = vmatprep.subr.mxu0 0.0
    %261 = vmatpush1.msra.mxu0 0.0
    %262 = vmatprep.subr.mxu0 0.0
    %263 = vmatpush1.msra.mxu0 0.0
    %264 = vmatprep.subr.mxu0 0.0
    %265 = vmatpush1.msra.mxu0 0.0
    %266 = vmatprep.subr.mxu0 0.0
    %267 = vmatpush1.msra.mxu0 0.0
    %268 = vmatprep.subr.mxu0 0.0
    %269 = vmatpush1.msra.mxu0 0.0
    %270 = vmatprep.subr.mxu0 0.0
    %271 = vmatpush1.msra.mxu0 0.0
    %272 = vmatprep.subr.mxu0 0.0
    %273 = vmatpush1.msra.mxu0 0.0
    %274 = vmatprep.subr.mxu0 0.0
    %275 = vmatpush1.msra.mxu0 0.0
    %276 = vmatprep.subr.mxu0 0.0
    %277 = vmatpush1.msra.mxu0 0.0
    %278 = vmatprep.subr.mxu0 0.0
    %279 = vmatpush1.msra.mxu0 0.0
    %280 = vmatprep.subr.mxu0 0.0
    %281 = vmatpush1.msra.mxu0 0.0
    %282 = vmatprep.subr.mxu0 0.0
    %283 = vmatpush1.msra.mxu0 0.0
    %284 = vmatprep.subr.mxu0 0.0
    %285 = vmatpush1.msra.mxu0 0.0
    %286 = vmatprep.subr.mxu0 0.0
    %287 = vmatpush1.msra.mxu0 0.0
    %288 = vmatprep.subr.mxu0 0.0
    %289 = vmatpush1.msra.mxu0 0.0
    %290 = vmatprep.subr.mxu0 0.0
    %291 = vmatpush1.msra.mxu0 0.0
    %292 = vmatprep.subr.mxu0 0.0
    %293 = vmatpush1.msra.mxu0 0.0
    %294 = vmatprep.subr.mxu0 0.0
    %295 = vmatpush1.msra.mxu0 0.0
    %296 = vmatprep.subr.mxu0 0.0
    %297 = vmatpush1.msra.mxu0 0.0
    %298 = vmatprep.mubr.f32.mxu0 0.0
    %299 = vmatmul.mubr.f32.gmra.mrb[0].mxu0 %v146
    %v300 = vpop.f32.mrb[0].mxu0
    %v301 = vadd.f32 %v233, %v300
    %v302 = vpop.f32.mrb[0].mxu0
    %303 = vmatprep.mubr.f32.mxu0 0.0
    %304 = vmatmul.mubr.f32.gmra.mrb[0].mxu0 %v149
    %v305 = vpop.f32.mrb[0].mxu0
    %v306 = vadd.f32 %v233, %v305
    %v307 = vpop.f32.mrb[0].mxu0
    %308 = vdwg.mxu0
    %v309 = vld [vmem:[%s5] sm:$0xff]
    %v310 = vld [vmem:[%s5 + $0x8] sm:$0xff]
    %v311 = vld [vmem:[%s5 + $0x10] sm:$0xff]
    %v312 = vld [vmem:[%s5 + $0x18] sm:$0xff]
    %v313 = vlaneseq
    %v314 = vshrl.u32 %v313, 7
    %v315 = vsub.s32 4, %v314
    %v316 = vrot.slane %v95, %v315
    %317 = vmatprep.subr.mxu0 0.0
    %318 = vmatpush1.msra.mxu0 %v309
    %319 = vmatprep.subr.mxu0 0.0
    %320 = vmatpush1.msra.mxu0 %v310
    %321 = vmatprep.subr.mxu0 0.0
    %322 = vmatpush1.msra.mxu0 %v311
    %323 = vmatprep.subr.mxu0 0.0
    %324 = vmatpush1.msra.mxu0 %v312
    %325 = vmatprep.subr.mxu0 0.0
    %326 = vmatpush1.msra.mxu0 0.0
    %327 = vmatprep.subr.mxu0 0.0
    %328 = vmatpush1.msra.mxu0 0.0
    %329 = vmatprep.subr.mxu0 0.0
    %330 = vmatpush1.msra.mxu0 0.0
    %331 = vmatprep.subr.mxu0 0.0
    %332 = vmatpush1.msra.mxu0 0.0
    %333 = vmatprep.subr.mxu0 0.0
    %334 = vmatpush1.msra.mxu0 0.0
    %335 = vmatprep.subr.mxu0 0.0
    %336 = vmatpush1.msra.mxu0 0.0
    %337 = vmatprep.subr.mxu0 0.0
    %338 = vmatpush1.msra.mxu0 0.0
    %339 = vmatprep.subr.mxu0 0.0
    %340 = vmatpush1.msra.mxu0 0.0
    %341 = vmatprep.subr.mxu0 0.0
    %342 = vmatpush1.msra.mxu0 0.0
    %343 = vmatprep.subr.mxu0 0.0
    %344 = vmatpush1.msra.mxu0 0.0
    %345 = vmatprep.subr.mxu0 0.0
    %346 = vmatpush1.msra.mxu0 0.0
    %347 = vmatprep.subr.mxu0 0.0
    %348 = vmatpush1.msra.mxu0 0.0
    %349 = vmatprep.subr.mxu0 0.0
    %350 = vmatpush1.msra.mxu0 0.0
    %351 = vmatprep.subr.mxu0 0.0
    %352 = vmatpush1.msra.mxu0 0.0
    %353 = vmatprep.subr.mxu0 0.0
    %354 = vmatpush1.msra.mxu0 0.0
    %355 = vmatprep.subr.mxu0 0.0
    %356 = vmatpush1.msra.mxu0 0.0
    %357 = vmatprep.subr.mxu0 0.0
    %358 = vmatpush1.msra.mxu0 0.0
    %359 = vmatprep.subr.mxu0 0.0
    %360 = vmatpush1.msra.mxu0 0.0
    %361 = vmatprep.subr.mxu0 0.0
    %362 = vmatpush1.msra.mxu0 0.0
    %363 = vmatprep.subr.mxu0 0.0
    %364 = vmatpush1.msra.mxu0 0.0
    %365 = vmatprep.subr.mxu0 0.0
    %366 = vmatpush1.msra.mxu0 0.0
    %367 = vmatprep.subr.mxu0 0.0
    %368 = vmatpush1.msra.mxu0 0.0
    %369 = vmatprep.subr.mxu0 0.0
    %370 = vmatpush1.msra.mxu0 0.0
    %371 = vmatprep.subr.mxu0 0.0
    %372 = vmatpush1.msra.mxu0 0.0
    %373 = vmatprep.subr.mxu0 0.0
    %374 = vmatpush1.msra.mxu0 0.0
    %375 = vmatprep.subr.mxu0 0.0
    %376 = vmatpush1.msra.mxu0 0.0
    %377 = vmatprep.subr.mxu0 0.0
    %378 = vmatpush1.msra.mxu0 0.0
    %379 = vmatprep.subr.mxu0 0.0
    %380 = vmatpush1.msra.mxu0 0.0
    %381 = vmatprep.mubr.f32.mxu0 0.0
    %382 = vmatmul.mubr.f32.gmra.mrb[0].mxu0 %v146
    %v383 = vpop.f32.mrb[0].mxu0
    %v384 = vadd.f32 %v316, %v383
    %v385 = vpop.f32.mrb[0].mxu0
    %386 = vmatprep.mubr.f32.mxu0 0.0
    %387 = vmatmul.mubr.f32.gmra.mrb[0].mxu0 %v149
    %v388 = vpop.f32.mrb[0].mxu0
    %v389 = vadd.f32 %v316, %v388
    %v390 = vpop.f32.mrb[0].mxu0
    %391 = vdwg.mxu0
    %v392 = vlaneseq
    %v393 = vshrl.u32 %v392, 7
    %v394 = vlaneseq
    %v395 = vand.u32 %v394, 127
    %vm396 = vcmp.gt.s32.totalorder %v395, %v393
    %v397 = vld [vmem:[#allocation7] sm:$0xff]
    %v398 = vld [vmem:[#allocation7 + $0x8] sm:$0xff]
    %v399 = vld [vmem:[#allocation7 + $0x10] sm:$0xff]
    %v400 = vld [vmem:[#allocation7 + $0x18] sm:$0xff]
    %402 = vrot.lane.b32.xlu0 %v218, 120
    %v403 = vpop.permute.xlu0 %402
    %404 = vrot.lane.b32.xlu0 %v218, 112
    %v405 = vpop.permute.xlu0 %404
    %406 = vrot.lane.b32.xlu0 %v218, 104
    %v407 = vpop.permute.xlu0 %406
    %409 = vrot.lane.b32.xlu0 %v301, 120
    %v410 = vpop.permute.xlu0 %409
    %411 = vrot.lane.b32.xlu0 %v301, 112
    %v412 = vpop.permute.xlu0 %411
    %413 = vrot.lane.b32.xlu0 %v301, 104
    %v414 = vpop.permute.xlu0 %413
    %416 = vrot.lane.b32.xlu0 %v384, 120
    %v417 = vpop.permute.xlu0 %416
    %419 = vrot.lane.b32.xlu0 %v384, 112
    %v420 = vpop.permute.xlu0 %419
    %422 = vrot.lane.b32.xlu0 %v384, 104
    %v423 = vpop.permute.xlu0 %422
    %vm425 = vcmask 64512
    %v426 = vsel %vm425, %v218, 0
    %v428 = vsel %vm425, %v301, 0
    %430 = vmatprep.subr.mxu0 0.0
    %431 = vmatpush1.xpose.msra.mxu0 %v428
    %432 = vmatprep.subr.mxu0 0.0
    %433 = vmatpush1.xpose.msra.mxu0 0.0
    %434 = vmatprep.subr.mxu0 0.0
    %435 = vmatpush1.xpose.msra.mxu0 0.0
    %436 = vmatprep.subr.mxu0 0.0
    %437 = vmatpush1.xpose.msra.mxu0 0.0
    %438 = vmatprep.subr.mxu0 0.0
    %439 = vmatpush1.xpose.msra.mxu0 0.0
    %440 = vmatprep.subr.mxu0 0.0
    %441 = vmatpush1.xpose.msra.mxu0 0.0
    %442 = vmatprep.subr.mxu0 0.0
    %443 = vmatpush1.xpose.msra.mxu0 0.0
    %444 = vmatprep.subr.mxu0 0.0
    %445 = vmatpush1.xpose.msra.mxu0 0.0
    %446 = vmatprep.subr.mxu0 0.0
    %447 = vmatpush1.xpose.msra.mxu0 0.0
    %448 = vmatprep.subr.mxu0 0.0
    %449 = vmatpush1.xpose.msra.mxu0 0.0
    %450 = vmatprep.subr.mxu0 0.0
    %451 = vmatpush1.xpose.msra.mxu0 0.0
    %452 = vmatprep.subr.mxu0 0.0
    %453 = vmatpush1.xpose.msra.mxu0 0.0
    %454 = vmatprep.subr.mxu0 0.0
    %455 = vmatpush1.xpose.msra.mxu0 0.0
    %456 = vmatprep.subr.mxu0 0.0
    %457 = vmatpush1.xpose.msra.mxu0 0.0
    %458 = vmatprep.subr.mxu0 0.0
    %459 = vmatpush1.xpose.msra.mxu0 0.0
    %460 = vmatprep.subr.mxu0 0.0
    %461 = vmatpush1.xpose.msra.mxu0 0.0
    %462 = vmatprep.subr.mxu0 0.0
    %463 = vmatpush1.xpose.msra.mxu0 0.0
    %464 = vmatprep.subr.mxu0 0.0
    %465 = vmatpush1.xpose.msra.mxu0 0.0
    %466 = vmatprep.subr.mxu0 0.0
    %467 = vmatpush1.xpose.msra.mxu0 0.0
    %468 = vmatprep.subr.mxu0 0.0
    %469 = vmatpush1.xpose.msra.mxu0 0.0
    %470 = vmatprep.subr.mxu0 0.0
    %471 = vmatpush1.xpose.msra.mxu0 0.0
    %472 = vmatprep.subr.mxu0 0.0
    %473 = vmatpush1.xpose.msra.mxu0 0.0
    %474 = vmatprep.subr.mxu0 0.0
    %475 = vmatpush1.xpose.msra.mxu0 0.0
    %476 = vmatprep.subr.mxu0 0.0
    %477 = vmatpush1.xpose.msra.mxu0 0.0
    %478 = vmatprep.subr.mxu0 0.0
    %479 = vmatpush1.xpose.msra.mxu0 0.0
    %480 = vmatprep.subr.mxu0 0.0
    %481 = vmatpush1.xpose.msra.mxu0 0.0
    %482 = vmatprep.subr.mxu0 0.0
    %483 = vmatpush1.xpose.msra.mxu0 0.0
    %484 = vmatprep.subr.mxu0 0.0
    %485 = vmatpush1.xpose.msra.mxu0 0.0
    %486 = vmatprep.subr.mxu0 0.0
    %487 = vmatpush1.xpose.msra.mxu0 0.0
    %488 = vmatprep.subr.mxu0 0.0
    %489 = vmatpush1.xpose.msra.mxu0 0.0
    %490 = vmatprep.subr.mxu0 0.0
    %491 = vmatpush1.xpose.msra.mxu0 0.0
    %492 = vmatprep.subr.mxu0 0.0
    %493 = vmatpush1.xpose.msra.mxu0 0.0
    %494 = vmatprep.mubr.f32.mxu0 0.0
    %495 = vmatmul.mubr.f32.gmra.mrb[0].mxu0 %v426
    %v496 = vpop.f32.mrb[0].mxu0
    %v497 = vadd.f32 0.0, %v496
    %v498 = vpop.f32.mrb[0].mxu0
    %499 = vdwg.mxu0
    %v500 = vsel %vm425, %v403, 0
    %v502 = vsel %vm425, %v410, 0
    %504 = vmatprep.subr.mxu0 0.0
    %505 = vmatpush1.xpose.msra.mxu0 %v502
    %506 = vmatprep.subr.mxu0 0.0
    %507 = vmatpush1.xpose.msra.mxu0 0.0
    %508 = vmatprep.subr.mxu0 0.0
    %509 = vmatpush1.xpose.msra.mxu0 0.0
    %510 = vmatprep.subr.mxu0 0.0
    %511 = vmatpush1.xpose.msra.mxu0 0.0
    %512 = vmatprep.subr.mxu0 0.0
    %513 = vmatpush1.xpose.msra.mxu0 0.0
    %514 = vmatprep.subr.mxu0 0.0
    %515 = vmatpush1.xpose.msra.mxu0 0.0
    %516 = vmatprep.subr.mxu0 0.0
    %517 = vmatpush1.xpose.msra.mxu0 0.0
    %518 = vmatprep.subr.mxu0 0.0
    %519 = vmatpush1.xpose.msra.mxu0 0.0
    %520 = vmatprep.subr.mxu0 0.0
    %521 = vmatpush1.xpose.msra.mxu0 0.0
    %522 = vmatprep.subr.mxu0 0.0
    %523 = vmatpush1.xpose.msra.mxu0 0.0
    %524 = vmatprep.subr.mxu0 0.0
    %525 = vmatpush1.xpose.msra.mxu0 0.0
    %526 = vmatprep.subr.mxu0 0.0
    %527 = vmatpush1.xpose.msra.mxu0 0.0
    %528 = vmatprep.subr.mxu0 0.0
    %529 = vmatpush1.xpose.msra.mxu0 0.0
    %530 = vmatprep.subr.mxu0 0.0
    %531 = vmatpush1.xpose.msra.mxu0 0.0
    %532 = vmatprep.subr.mxu0 0.0
    %533 = vmatpush1.xpose.msra.mxu0 0.0
    %534 = vmatprep.subr.mxu0 0.0
    %535 = vmatpush1.xpose.msra.mxu0 0.0
    %536 = vmatprep.subr.mxu0 0.0
    %537 = vmatpush1.xpose.msra.mxu0 0.0
    %538 = vmatprep.subr.mxu0 0.0
    %539 = vmatpush1.xpose.msra.mxu0 0.0
    %540 = vmatprep.subr.mxu0 0.0
    %541 = vmatpush1.xpose.msra.mxu0 0.0
    %542 = vmatprep.subr.mxu0 0.0
    %543 = vmatpush1.xpose.msra.mxu0 0.0
    %544 = vmatprep.subr.mxu0 0.0
    %545 = vmatpush1.xpose.msra.mxu0 0.0
    %546 = vmatprep.subr.mxu0 0.0
    %547 = vmatpush1.xpose.msra.mxu0 0.0
    %548 = vmatprep.subr.mxu0 0.0
    %549 = vmatpush1.xpose.msra.mxu0 0.0
    %550 = vmatprep.subr.mxu0 0.0
    %551 = vmatpush1.xpose.msra.mxu0 0.0
    %552 = vmatprep.subr.mxu0 0.0
    %553 = vmatpush1.xpose.msra.mxu0 0.0
    %554 = vmatprep.subr.mxu0 0.0
    %555 = vmatpush1.xpose.msra.mxu0 0.0
    %556 = vmatprep.subr.mxu0 0.0
    %557 = vmatpush1.xpose.msra.mxu0 0.0
    %558 = vmatprep.subr.mxu0 0.0
    %559 = vmatpush1.xpose.msra.mxu0 0.0
    %560 = vmatprep.subr.mxu0 0.0
    %561 = vmatpush1.xpose.msra.mxu0 0.0
    %562 = vmatprep.subr.mxu0 0.0
    %563 = vmatpush1.xpose.msra.mxu0 0.0
    %564 = vmatprep.subr.mxu0 0.0
    %565 = vmatpush1.xpose.msra.mxu0 0.0
    %566 = vmatprep.subr.mxu0 0.0
    %567 = vmatpush1.xpose.msra.mxu0 0.0
    %568 = vmatprep.mubr.f32.mxu0 0.0
    %569 = vmatmul.mubr.f32.gmra.mrb[0].mxu0 %v500
    %v570 = vpop.f32.mrb[0].mxu0
    %v571 = vadd.f32 0.0, %v570
    %v572 = vpop.f32.mrb[0].mxu0
    %573 = vdwg.mxu0
    %v574 = vsel %vm425, %v405, 0
    %v576 = vsel %vm425, %v412, 0
    %578 = vmatprep.subr.mxu0 0.0
    %579 = vmatpush1.xpose.msra.mxu0 %v576
    %580 = vmatprep.subr.mxu0 0.0
    %581 = vmatpush1.xpose.msra.mxu0 0.0
    %582 = vmatprep.subr.mxu0 0.0
    %583 = vmatpush1.xpose.msra.mxu0 0.0
    %584 = vmatprep.subr.mxu0 0.0
    %585 = vmatpush1.xpose.msra.mxu0 0.0
    %586 = vmatprep.subr.mxu0 0.0
    %587 = vmatpush1.xpose.msra.mxu0 0.0
    %588 = vmatprep.subr.mxu0 0.0
    %589 = vmatpush1.xpose.msra.mxu0 0.0
    %590 = vmatprep.subr.mxu0 0.0
    %591 = vmatpush1.xpose.msra.mxu0 0.0
    %592 = vmatprep.subr.mxu0 0.0
    %593 = vmatpush1.xpose.msra.mxu0 0.0
    %594 = vmatprep.subr.mxu0 0.0
    %595 = vmatpush1.xpose.msra.mxu0 0.0
    %596 = vmatprep.subr.mxu0 0.0
    %597 = vmatpush1.xpose.msra.mxu0 0.0
    %598 = vmatprep.subr.mxu0 0.0
    %599 = vmatpush1.xpose.msra.mxu0 0.0
    %600 = vmatprep.subr.mxu0 0.0
    %601 = vmatpush1.xpose.msra.mxu0 0.0
    %602 = vmatprep.subr.mxu0 0.0
    %603 = vmatpush1.xpose.msra.mxu0 0.0
    %604 = vmatprep.subr.mxu0 0.0
    %605 = vmatpush1.xpose.msra.mxu0 0.0
    %606 = vmatprep.subr.mxu0 0.0
    %607 = vmatpush1.xpose.msra.mxu0 0.0
    %608 = vmatprep.subr.mxu0 0.0
    %609 = vmatpush1.xpose.msra.mxu0 0.0
    %610 = vmatprep.subr.mxu0 0.0
    %611 = vmatpush1.xpose.msra.mxu0 0.0
    %612 = vmatprep.subr.mxu0 0.0
    %613 = vmatpush1.xpose.msra.mxu0 0.0
    %614 = vmatprep.subr.mxu0 0.0
    %615 = vmatpush1.xpose.msra.mxu0 0.0
    %616 = vmatprep.subr.mxu0 0.0
    %617 = vmatpush1.xpose.msra.mxu0 0.0
    %618 = vmatprep.subr.mxu0 0.0
    %619 = vmatpush1.xpose.msra.mxu0 0.0
    %620 = vmatprep.subr.mxu0 0.0
    %621 = vmatpush1.xpose.msra.mxu0 0.0
    %622 = vmatprep.subr.mxu0 0.0
    %623 = vmatpush1.xpose.msra.mxu0 0.0
    %624 = vmatprep.subr.mxu0 0.0
    %625 = vmatpush1.xpose.msra.mxu0 0.0
    %626 = vmatprep.subr.mxu0 0.0
    %627 = vmatpush1.xpose.msra.mxu0 0.0
    %628 = vmatprep.subr.mxu0 0.0
    %629 = vmatpush1.xpose.msra.mxu0 0.0
    %630 = vmatprep.subr.mxu0 0.0
    %631 = vmatpush1.xpose.msra.mxu0 0.0
    %632 = vmatprep.subr.mxu0 0.0
    %633 = vmatpush1.xpose.msra.mxu0 0.0
    %634 = vmatprep.subr.mxu0 0.0
    %635 = vmatpush1.xpose.msra.mxu0 0.0
    %636 = vmatprep.subr.mxu0 0.0
    %637 = vmatpush1.xpose.msra.mxu0 0.0
    %638 = vmatprep.subr.mxu0 0.0
    %639 = vmatpush1.xpose.msra.mxu0 0.0
    %640 = vmatprep.subr.mxu0 0.0
    %641 = vmatpush1.xpose.msra.mxu0 0.0
    %642 = vmatprep.mubr.f32.mxu0 0.0
    %643 = vmatmul.mubr.f32.gmra.mrb[0].mxu0 %v574
    %v644 = vpop.f32.mrb[0].mxu0
    %v645 = vadd.f32 0.0, %v644
    %v646 = vpop.f32.mrb[0].mxu0
    %647 = vdwg.mxu0
    %v648 = vsel %vm425, %v407, 0
    %v650 = vsel %vm425, %v414, 0
    %652 = vmatprep.subr.mxu0 0.0
    %653 = vmatpush1.xpose.msra.mxu0 %v650
    %654 = vmatprep.subr.mxu0 0.0
    %655 = vmatpush1.xpose.msra.mxu0 0.0
    %656 = vmatprep.subr.mxu0 0.0
    %657 = vmatpush1.xpose.msra.mxu0 0.0
    %658 = vmatprep.subr.mxu0 0.0
    %659 = vmatpush1.xpose.msra.mxu0 0.0
    %660 = vmatprep.subr.mxu0 0.0
    %661 = vmatpush1.xpose.msra.mxu0 0.0
    %662 = vmatprep.subr.mxu0 0.0
    %663 = vmatpush1.xpose.msra.mxu0 0.0
    %664 = vmatprep.subr.mxu0 0.0
    %665 = vmatpush1.xpose.msra.mxu0 0.0
    %666 = vmatprep.subr.mxu0 0.0
    %667 = vmatpush1.xpose.msra.mxu0 0.0
    %668 = vmatprep.subr.mxu0 0.0
    %669 = vmatpush1.xpose.msra.mxu0 0.0
    %670 = vmatprep.subr.mxu0 0.0
    %671 = vmatpush1.xpose.msra.mxu0 0.0
    %672 = vmatprep.subr.mxu0 0.0
    %673 = vmatpush1.xpose.msra.mxu0 0.0
    %674 = vmatprep.subr.mxu0 0.0
    %675 = vmatpush1.xpose.msra.mxu0 0.0
    %676 = vmatprep.subr.mxu0 0.0
    %677 = vmatpush1.xpose.msra.mxu0 0.0
    %678 = vmatprep.subr.mxu0 0.0
    %679 = vmatpush1.xpose.msra.mxu0 0.0
    %680 = vmatprep.subr.mxu0 0.0
    %681 = vmatpush1.xpose.msra.mxu0 0.0
    %682 = vmatprep.subr.mxu0 0.0
    %683 = vmatpush1.xpose.msra.mxu0 0.0
    %684 = vmatprep.subr.mxu0 0.0
    %685 = vmatpush1.xpose.msra.mxu0 0.0
    %686 = vmatprep.subr.mxu0 0.0
    %687 = vmatpush1.xpose.msra.mxu0 0.0
    %688 = vmatprep.subr.mxu0 0.0
    %689 = vmatpush1.xpose.msra.mxu0 0.0
    %690 = vmatprep.subr.mxu0 0.0
    %691 = vmatpush1.xpose.msra.mxu0 0.0
    %692 = vmatprep.subr.mxu0 0.0
    %693 = vmatpush1.xpose.msra.mxu0 0.0
    %694 = vmatprep.subr.mxu0 0.0
    %695 = vmatpush1.xpose.msra.mxu0 0.0
    %696 = vmatprep.subr.mxu0 0.0
    %697 = vmatpush1.xpose.msra.mxu0 0.0
    %698 = vmatprep.subr.mxu0 0.0
    %699 = vmatpush1.xpose.msra.mxu0 0.0
    %700 = vmatprep.subr.mxu0 0.0
    %701 = vmatpush1.xpose.msra.mxu0 0.0
    %702 = vmatprep.subr.mxu0 0.0
    %703 = vmatpush1.xpose.msra.mxu0 0.0
    %704 = vmatprep.subr.mxu0 0.0
    %705 = vmatpush1.xpose.msra.mxu0 0.0
    %706 = vmatprep.subr.mxu0 0.0
    %707 = vmatpush1.xpose.msra.mxu0 0.0
    %708 = vmatprep.subr.mxu0 0.0
    %709 = vmatpush1.xpose.msra.mxu0 0.0
    %710 = vmatprep.subr.mxu0 0.0
    %711 = vmatpush1.xpose.msra.mxu0 0.0
    %712 = vmatprep.subr.mxu0 0.0
    %713 = vmatpush1.xpose.msra.mxu0 0.0
    %714 = vmatprep.subr.mxu0 0.0
    %715 = vmatpush1.xpose.msra.mxu0 0.0
    %716 = vmatprep.mubr.f32.mxu0 0.0
    %717 = vmatmul.mubr.f32.gmra.mrb[0].mxu0 %v648
    %v718 = vpop.f32.mrb[0].mxu0
    %v719 = vadd.f32 0.0, %v718
    %v720 = vpop.f32.mrb[0].mxu0
    %721 = vdwg.mxu0
    %vm722 = vcmp.gt.s32.totalorder %v93, 0
    %v723 = vsel %vm722, 1, 0
    %v724 = vlaneseq
    %v725 = vshrl.u32 %v724, 7
    %v726 = vsub.s32 0, %v725
    %v727 = vrot.slane %v723, %v726
    %vm728 = vcmp.eq.s32.totalorder %v727, 1
    %vm729 = vmor %vm396, %vm728
    %v730 = vsel %vm729, 1, 0
    %vm731 = vcmp.eq.s32.totalorder %v730, 1
    %v732 = vsel %vm731, -1e+18, %v497
    %v733 = vsel %vm731, -1e+18, %v571
    %v734 = vsel %vm731, -1e+18, %v645
    %v735 = vsel %vm731, -1e+18, %v719
    %v736 = vsel %vm425, %v732, -inf
    %737 = vmax.xlane.f32.xlu0 %v736
    %v738 = vpop.xlane.xlu0 %737
    %v739 = vsel %vm425, %v733, -inf
    %740 = vmax.xlane.f32.xlu0 %v739
    %v741 = vpop.xlane.xlu0 %740
    %v742 = vsel %vm425, %v734, -inf
    %743 = vmax.xlane.f32.xlu0 %v742
    %v744 = vpop.xlane.xlu0 %743
    %v745 = vsel %vm425, %v735, -inf
    %746 = vmax.xlane.f32.xlu0 %v745
    %v747 = vpop.xlane.xlu0 %746
    %v748 = vsub.f32 %v732, %v738
    %v749 = vsub.f32 %v733, %v741
    %v750 = vsub.f32 %v734, %v744
    %v751 = vsub.f32 %v735, %v747
    %v752 = vmul.f32 %v748, 1.442695
    %v753 = vpow.pop %v752
    %v754 = vmul.f32 %v749, 1.442695
    %v755 = vpow.pop %v754
    %v756 = vmul.f32 %v750, 1.442695
    %v757 = vpow.pop %v756
    %v758 = vmul.f32 %v751, 1.442695
    %v759 = vpow.pop %v758
    %v760 = vsel %vm425, %v753, 0.0
    %761 = vadd.xlane.f32.xlu0 %v760
    %v762 = vpop.xlane.xlu0 %761
    %v763 = vsel %vm425, %v755, 0.0
    %764 = vadd.xlane.f32.xlu0 %v763
    %v765 = vpop.xlane.xlu0 %764
    %v766 = vsel %vm425, %v757, 0.0
    %767 = vadd.xlane.f32.xlu0 %v766
    %v768 = vpop.xlane.xlu0 %767
    %v769 = vsel %vm425, %v759, 0.0
    %770 = vadd.xlane.f32.xlu0 %v769
    %v771 = vpop.xlane.xlu0 %770
    %v772 = vrcp.pop %v762
    %v773 = vrcp.pop %v765
    %v774 = vrcp.pop %v768
    %v775 = vrcp.pop %v771
    %v776 = vmul.f32 %v753, %v772
    %v777 = vmul.f32 %v755, %v773
    %v778 = vmul.f32 %v757, %v774
    %v779 = vmul.f32 %v759, %v775
    %780 = vst.msk [vmem:[#allocation11] sm:$0xff] %vm425, %v776
    %v782 = vsel %vm425, %v776, 0
    %784 = vmatprep.subr.mxu0 0.0
    %785 = vmatpush1.msra.mxu0 %v384
    %786 = vmatprep.subr.mxu0 0.0
    %787 = vmatpush1.msra.mxu0 0.0
    %788 = vmatprep.subr.mxu0 0.0
    %789 = vmatpush1.msra.mxu0 0.0
    %790 = vmatprep.subr.mxu0 0.0
    %791 = vmatpush1.msra.mxu0 0.0
    %792 = vmatprep.subr.mxu0 0.0
    %793 = vmatpush1.msra.mxu0 0.0
    %794 = vmatprep.subr.mxu0 0.0
    %795 = vmatpush1.msra.mxu0 0.0
    %796 = vmatprep.subr.mxu0 0.0
    %797 = vmatpush1.msra.mxu0 0.0
    %798 = vmatprep.subr.mxu0 0.0
    %799 = vmatpush1.msra.mxu0 0.0
    %800 = vmatprep.subr.mxu0 0.0
    %801 = vmatpush1.msra.mxu0 0.0
    %802 = vmatprep.subr.mxu0 0.0
    %803 = vmatpush1.msra.mxu0 0.0
    %804 = vmatprep.subr.mxu0 0.0
    %805 = vmatpush1.msra.mxu0 0.0
    %806 = vmatprep.subr.mxu0 0.0
    %807 = vmatpush1.msra.mxu0 0.0
    %808 = vmatprep.subr.mxu0 0.0
    %809 = vmatpush1.msra.mxu0 0.0
    %810 = vmatprep.subr.mxu0 0.0
    %811 = vmatpush1.msra.mxu0 0.0
    %812 = vmatprep.subr.mxu0 0.0
    %813 = vmatpush1.msra.mxu0 0.0
    %814 = vmatprep.subr.mxu0 0.0
    %815 = vmatpush1.msra.mxu0 0.0
    %816 = vmatprep.subr.mxu0 0.0
    %817 = vmatpush1.msra.mxu0 0.0
    %818 = vmatprep.subr.mxu0 0.0
    %819 = vmatpush1.msra.mxu0 0.0
    %820 = vmatprep.subr.mxu0 0.0
    %821 = vmatpush1.msra.mxu0 0.0
    %822 = vmatprep.subr.mxu0 0.0
    %823 = vmatpush1.msra.mxu0 0.0
    %824 = vmatprep.subr.mxu0 0.0
    %825 = vmatpush1.msra.mxu0 0.0
    %826 = vmatprep.subr.mxu0 0.0
    %827 = vmatpush1.msra.mxu0 0.0
    %828 = vmatprep.subr.mxu0 0.0
    %829 = vmatpush1.msra.mxu0 0.0
    %830 = vmatprep.subr.mxu0 0.0
    %831 = vmatpush1.msra.mxu0 0.0
    %832 = vmatprep.subr.mxu0 0.0
    %833 = vmatpush1.msra.mxu0 0.0
    %834 = vmatprep.subr.mxu0 0.0
    %835 = vmatpush1.msra.mxu0 0.0
    %836 = vmatprep.subr.mxu0 0.0
    %837 = vmatpush1.msra.mxu0 0.0
    %838 = vmatprep.subr.mxu0 0.0
    %839 = vmatpush1.msra.mxu0 0.0
    %840 = vmatprep.subr.mxu0 0.0
    %841 = vmatpush1.msra.mxu0 0.0
    %842 = vmatprep.subr.mxu0 0.0
    %843 = vmatpush1.msra.mxu0 0.0
    %844 = vmatprep.subr.mxu0 0.0
    %845 = vmatpush1.msra.mxu0 0.0
    %846 = vmatprep.subr.mxu0 0.0
    %847 = vmatpush1.msra.mxu0 0.0
    %848 = vmatprep.mubr.f32.mxu0 0.0
    %849 = vmatmul.mubr.f32.gmra.mrb[0].mxu0 %v782
    %v850 = vpop.f32.mrb[0].mxu0
    %v851 = vadd.f32 0.0, %v850
    %v852 = vpop.f32.mrb[0].mxu0
    %853 = vdwg.mxu0
    %v855 = vsel %vm425, %v777, 0
    %857 = vmatprep.subr.mxu0 0.0
    %858 = vmatpush1.msra.mxu0 %v417
    %859 = vmatprep.subr.mxu0 0.0
    %860 = vmatpush1.msra.mxu0 0.0
    %861 = vmatprep.subr.mxu0 0.0
    %862 = vmatpush1.msra.mxu0 0.0
    %863 = vmatprep.subr.mxu0 0.0
    %864 = vmatpush1.msra.mxu0 0.0
    %865 = vmatprep.subr.mxu0 0.0
    %866 = vmatpush1.msra.mxu0 0.0
    %867 = vmatprep.subr.mxu0 0.0
    %868 = vmatpush1.msra.mxu0 0.0
    %869 = vmatprep.subr.mxu0 0.0
    %870 = vmatpush1.msra.mxu0 0.0
    %871 = vmatprep.subr.mxu0 0.0
    %872 = vmatpush1.msra.mxu0 0.0
    %873 = vmatprep.subr.mxu0 0.0
    %874 = vmatpush1.msra.mxu0 0.0
    %875 = vmatprep.subr.mxu0 0.0
    %876 = vmatpush1.msra.mxu0 0.0
    %877 = vmatprep.subr.mxu0 0.0
    %878 = vmatpush1.msra.mxu0 0.0
    %879 = vmatprep.subr.mxu0 0.0
    %880 = vmatpush1.msra.mxu0 0.0
    %881 = vmatprep.subr.mxu0 0.0
    %882 = vmatpush1.msra.mxu0 0.0
    %883 = vmatprep.subr.mxu0 0.0
    %884 = vmatpush1.msra.mxu0 0.0
    %885 = vmatprep.subr.mxu0 0.0
    %886 = vmatpush1.msra.mxu0 0.0
    %887 = vmatprep.subr.mxu0 0.0
    %888 = vmatpush1.msra.mxu0 0.0
    %889 = vmatprep.subr.mxu0 0.0
    %890 = vmatpush1.msra.mxu0 0.0
    %891 = vmatprep.subr.mxu0 0.0
    %892 = vmatpush1.msra.mxu0 0.0
    %893 = vmatprep.subr.mxu0 0.0
    %894 = vmatpush1.msra.mxu0 0.0
    %895 = vmatprep.subr.mxu0 0.0
    %896 = vmatpush1.msra.mxu0 0.0
    %897 = vmatprep.subr.mxu0 0.0
    %898 = vmatpush1.msra.mxu0 0.0
    %899 = vmatprep.subr.mxu0 0.0
    %900 = vmatpush1.msra.mxu0 0.0
    %901 = vmatprep.subr.mxu0 0.0
    %902 = vmatpush1.msra.mxu0 0.0
    %903 = vmatprep.subr.mxu0 0.0
    %904 = vmatpush1.msra.mxu0 0.0
    %905 = vmatprep.subr.mxu0 0.0
    %906 = vmatpush1.msra.mxu0 0.0
    %907 = vmatprep.subr.mxu0 0.0
    %908 = vmatpush1.msra.mxu0 0.0
    %909 = vmatprep.subr.mxu0 0.0
    %910 = vmatpush1.msra.mxu0 0.0
    %911 = vmatprep.subr.mxu0 0.0
    %912 = vmatpush1.msra.mxu0 0.0
    %913 = vmatprep.subr.mxu0 0.0
    %914 = vmatpush1.msra.mxu0 0.0
    %915 = vmatprep.subr.mxu0 0.0
    %916 = vmatpush1.msra.mxu0 0.0
    %917 = vmatprep.subr.mxu0 0.0
    %918 = vmatpush1.msra.mxu0 0.0
    %919 = vmatprep.subr.mxu0 0.0
    %920 = vmatpush1.msra.mxu0 0.0
    %921 = vmatprep.mubr.f32.mxu0 0.0
    %922 = vmatmul.mubr.f32.gmra.mrb[0].mxu0 %v855
    %v923 = vpop.f32.mrb[0].mxu0
    %v924 = vadd.f32 0.0, %v923
    %v925 = vpop.f32.mrb[0].mxu0
    %926 = vdwg.mxu0
    %v928 = vsel %vm425, %v778, 0
    %930 = vmatprep.subr.mxu0 0.0
    %931 = vmatpush1.msra.mxu0 %v420
    %932 = vmatprep.subr.mxu0 0.0
    %933 = vmatpush1.msra.mxu0 0.0
    %934 = vmatprep.subr.mxu0 0.0
    %935 = vmatpush1.msra.mxu0 0.0
    %936 = vmatprep.subr.mxu0 0.0
    %937 = vmatpush1.msra.mxu0 0.0
    %938 = vmatprep.subr.mxu0 0.0
    %939 = vmatpush1.msra.mxu0 0.0
    %940 = vmatprep.subr.mxu0 0.0
    %941 = vmatpush1.msra.mxu0 0.0
    %942 = vmatprep.subr.mxu0 0.0
    %943 = vmatpush1.msra.mxu0 0.0
    %944 = vmatprep.subr.mxu0 0.0
    %945 = vmatpush1.msra.mxu0 0.0
    %946 = vmatprep.subr.mxu0 0.0
    %947 = vmatpush1.msra.mxu0 0.0
    %948 = vmatprep.subr.mxu0 0.0
    %949 = vmatpush1.msra.mxu0 0.0
    %950 = vmatprep.subr.mxu0 0.0
    %951 = vmatpush1.msra.mxu0 0.0
    %952 = vmatprep.subr.mxu0 0.0
    %953 = vmatpush1.msra.mxu0 0.0
    %954 = vmatprep.subr.mxu0 0.0
    %955 = vmatpush1.msra.mxu0 0.0
    %956 = vmatprep.subr.mxu0 0.0
    %957 = vmatpush1.msra.mxu0 0.0
    %958 = vmatprep.subr.mxu0 0.0
    %959 = vmatpush1.msra.mxu0 0.0
    %960 = vmatprep.subr.mxu0 0.0
    %961 = vmatpush1.msra.mxu0 0.0
    %962 = vmatprep.subr.mxu0 0.0
    %963 = vmatpush1.msra.mxu0 0.0
    %964 = vmatprep.subr.mxu0 0.0
    %965 = vmatpush1.msra.mxu0 0.0
    %966 = vmatprep.subr.mxu0 0.0
    %967 = vmatpush1.msra.mxu0 0.0
    %968 = vmatprep.subr.mxu0 0.0
    %969 = vmatpush1.msra.mxu0 0.0
    %970 = vmatprep.subr.mxu0 0.0
    %971 = vmatpush1.msra.mxu0 0.0
    %972 = vmatprep.subr.mxu0 0.0
    %973 = vmatpush1.msra.mxu0 0.0
    %974 = vmatprep.subr.mxu0 0.0
    %975 = vmatpush1.msra.mxu0 0.0
    %976 = vmatprep.subr.mxu0 0.0
    %977 = vmatpush1.msra.mxu0 0.0
    %978 = vmatprep.subr.mxu0 0.0
    %979 = vmatpush1.msra.mxu0 0.0
    %980 = vmatprep.subr.mxu0 0.0
    %981 = vmatpush1.msra.mxu0 0.0
    %982 = vmatprep.subr.mxu0 0.0
    %983 = vmatpush1.msra.mxu0 0.0
    %984 = vmatprep.subr.mxu0 0.0
    %985 = vmatpush1.msra.mxu0 0.0
    %986 = vmatprep.subr.mxu0 0.0
    %987 = vmatpush1.msra.mxu0 0.0
    %988 = vmatprep.subr.mxu0 0.0
    %989 = vmatpush1.msra.mxu0 0.0
    %990 = vmatprep.subr.mxu0 0.0
    %991 = vmatpush1.msra.mxu0 0.0
    %992 = vmatprep.subr.mxu0 0.0
    %993 = vmatpush1.msra.mxu0 0.0
    %994 = vmatprep.mubr.f32.mxu0 0.0
    %995 = vmatmul.mubr.f32.gmra.mrb[0].mxu0 %v928
    %v996 = vpop.f32.mrb[0].mxu0
    %v997 = vadd.f32 0.0, %v996
    %v998 = vpop.f32.mrb[0].mxu0
    %999 = vdwg.mxu0
    %v1001 = vsel %vm425, %v779, 0
    %1003 = vmatprep.subr.mxu0 0.0
    %1004 = vmatpush1.msra.mxu0 %v423
    %1005 = vmatprep.subr.mxu0 0.0
    %1006 = vmatpush1.msra.mxu0 0.0
    %1007 = vmatprep.subr.mxu0 0.0
    %1008 = vmatpush1.msra.mxu0 0.0
    %1009 = vmatprep.subr.mxu0 0.0
    %1010 = vmatpush1.msra.mxu0 0.0
    %1011 = vmatprep.subr.mxu0 0.0
    %1012 = vmatpush1.msra.mxu0 0.0
    %1013 = vmatprep.subr.mxu0 0.0
    %1014 = vmatpush1.msra.mxu0 0.0
    %1015 = vmatprep.subr.mxu0 0.0
    %1016 = vmatpush1.msra.mxu0 0.0
    %1017 = vmatprep.subr.mxu0 0.0
    %1018 = vmatpush1.msra.mxu0 0.0
    %1019 = vmatprep.subr.mxu0 0.0
    %1020 = vmatpush1.msra.mxu0 0.0
    %1021 = vmatprep.subr.mxu0 0.0
    %1022 = vmatpush1.msra.mxu0 0.0
    %1023 = vmatprep.subr.mxu0 0.0
    %1024 = vmatpush1.msra.mxu0 0.0
    %1025 = vmatprep.subr.mxu0 0.0
    %1026 = vmatpush1.msra.mxu0 0.0
    %1027 = vmatprep.subr.mxu0 0.0
    %1028 = vmatpush1.msra.mxu0 0.0
    %1029 = vmatprep.subr.mxu0 0.0
    %1030 = vmatpush1.msra.mxu0 0.0
    %1031 = vmatprep.subr.mxu0 0.0
    %1032 = vmatpush1.msra.mxu0 0.0
    %1033 = vmatprep.subr.mxu0 0.0
    %1034 = vmatpush1.msra.mxu0 0.0
    %1035 = vmatprep.subr.mxu0 0.0
    %1036 = vmatpush1.msra.mxu0 0.0
    %1037 = vmatprep.subr.mxu0 0.0
    %1038 = vmatpush1.msra.mxu0 0.0
    %1039 = vmatprep.subr.mxu0 0.0
    %1040 = vmatpush1.msra.mxu0 0.0
    %1041 = vmatprep.subr.mxu0 0.0
    %1042 = vmatpush1.msra.mxu0 0.0
    %1043 = vmatprep.subr.mxu0 0.0
    %1044 = vmatpush1.msra.mxu0 0.0
    %1045 = vmatprep.subr.mxu0 0.0
    %1046 = vmatpush1.msra.mxu0 0.0
    %1047 = vmatprep.subr.mxu0 0.0
    %1048 = vmatpush1.msra.mxu0 0.0
    %1049 = vmatprep.subr.mxu0 0.0
    %1050 = vmatpush1.msra.mxu0 0.0
    %1051 = vmatprep.subr.mxu0 0.0
    %1052 = vmatpush1.msra.mxu0 0.0
    %1053 = vmatprep.subr.mxu0 0.0
    %1054 = vmatpush1.msra.mxu0 0.0
    %1055 = vmatprep.subr.mxu0 0.0
    %1056 = vmatpush1.msra.mxu0 0.0
    %1057 = vmatprep.subr.mxu0 0.0
    %1058 = vmatpush1.msra.mxu0 0.0
    %1059 = vmatprep.subr.mxu0 0.0
    %1060 = vmatpush1.msra.mxu0 0.0
    %1061 = vmatprep.subr.mxu0 0.0
    %1062 = vmatpush1.msra.mxu0 0.0
    %1063 = vmatprep.subr.mxu0 0.0
    %1064 = vmatpush1.msra.mxu0 0.0
    %1065 = vmatprep.subr.mxu0 0.0
    %1066 = vmatpush1.msra.mxu0 0.0
    %1067 = vmatprep.mubr.f32.mxu0 0.0
    %1068 = vmatmul.mubr.f32.gmra.mrb[0].mxu0 %v1001
    %v1069 = vpop.f32.mrb[0].mxu0
    %v1070 = vadd.f32 0.0, %v1069
    %v1071 = vpop.f32.mrb[0].mxu0
    %1072 = vdwg.mxu0
    %1074 = vrot.lane.b32.xlu0 %v924, 8
    %v1075 = vpop.permute.xlu0 %1074
    %1078 = vrot.lane.b32.xlu0 %v997, 16
    %v1079 = vpop.permute.xlu0 %1078
    %1082 = vrot.lane.b32.xlu0 %v1070, 24
    %v1083 = vpop.permute.xlu0 %1082
    %v1085 = vsel %vm425, %v851, %v1075
    %vm1086 = vcmask 130048
    %v1087 = vsel %vm1086, %v1085, %v1079
    %vm1088 = vcmask 195584
    %v1089 = vsel %vm1088, %v1087, %v1083
    %v1090 = vlaneseq
    %v1091 = vshrl.u32 %v1090, 7
    %v1092 = vsub.s32 5, %v1091
    %v1093 = vrot.slane %v95, %v1092
    %v1095 = vsel %vm97, %v1089, 0
    %1097 = vmatprep.subr.mxu0 0.0
    %1098 = vmatpush1.msra.mxu0 %v397
    %1099 = vmatprep.subr.mxu0 0.0
    %1100 = vmatpush1.msra.mxu0 %v398
    %1101 = vmatprep.subr.mxu0 0.0
    %1102 = vmatpush1.msra.mxu0 %v399
    %1103 = vmatprep.subr.mxu0 0.0
    %1104 = vmatpush1.msra.mxu0 %v400
    %1105 = vmatprep.subr.mxu0 0.0
    %1106 = vmatpush1.msra.mxu0 0.0
    %1107 = vmatprep.subr.mxu0 0.0
    %1108 = vmatpush1.msra.mxu0 0.0
    %1109 = vmatprep.subr.mxu0 0.0
    %1110 = vmatpush1.msra.mxu0 0.0
    %1111 = vmatprep.subr.mxu0 0.0
    %1112 = vmatpush1.msra.mxu0 0.0
    %1113 = vmatprep.subr.mxu0 0.0
    %1114 = vmatpush1.msra.mxu0 0.0
    %1115 = vmatprep.subr.mxu0 0.0
    %1116 = vmatpush1.msra.mxu0 0.0
    %1117 = vmatprep.subr.mxu0 0.0
    %1118 = vmatpush1.msra.mxu0 0.0
    %1119 = vmatprep.subr.mxu0 0.0
    %1120 = vmatpush1.msra.mxu0 0.0
    %1121 = vmatprep.subr.mxu0 0.0
    %1122 = vmatpush1.msra.mxu0 0.0
    %1123 = vmatprep.subr.mxu0 0.0
    %1124 = vmatpush1.msra.mxu0 0.0
    %1125 = vmatprep.subr.mxu0 0.0
    %1126 = vmatpush1.msra.mxu0 0.0
    %1127 = vmatprep.subr.mxu0 0.0
    %1128 = vmatpush1.msra.mxu0 0.0
    %1129 = vmatprep.subr.mxu0 0.0
    %1130 = vmatpush1.msra.mxu0 0.0
    %1131 = vmatprep.subr.mxu0 0.0
    %1132 = vmatpush1.msra.mxu0 0.0
    %1133 = vmatprep.subr.mxu0 0.0
    %1134 = vmatpush1.msra.mxu0 0.0
    %1135 = vmatprep.subr.mxu0 0.0
    %1136 = vmatpush1.msra.mxu0 0.0
    %1137 = vmatprep.subr.mxu0 0.0
    %1138 = vmatpush1.msra.mxu0 0.0
    %1139 = vmatprep.subr.mxu0 0.0
    %1140 = vmatpush1.msra.mxu0 0.0
    %1141 = vmatprep.subr.mxu0 0.0
    %1142 = vmatpush1.msra.mxu0 0.0
    %1143 = vmatprep.subr.mxu0 0.0
    %1144 = vmatpush1.msra.mxu0 0.0
    %1145 = vmatprep.subr.mxu0 0.0
    %1146 = vmatpush1.msra.mxu0 0.0
    %1147 = vmatprep.subr.mxu0 0.0
    %1148 = vmatpush1.msra.mxu0 0.0
    %1149 = vmatprep.subr.mxu0 0.0
    %1150 = vmatpush1.msra.mxu0 0.0
    %1151 = vmatprep.subr.mxu0 0.0
    %1152 = vmatpush1.msra.mxu0 0.0
    %1153 = vmatprep.subr.mxu0 0.0
    %1154 = vmatpush1.msra.mxu0 0.0
    %1155 = vmatprep.subr.mxu0 0.0
    %1156 = vmatpush1.msra.mxu0 0.0
    %1157 = vmatprep.subr.mxu0 0.0
    %1158 = vmatpush1.msra.mxu0 0.0
    %1159 = vmatprep.subr.mxu0 0.0
    %1160 = vmatpush1.msra.mxu0 0.0
    %1161 = vmatprep.mubr.f32.mxu0 0.0
    %1162 = vmatmul.mubr.f32.gmra.mrb[0].mxu0 %v1095
    %v1163 = vpop.f32.mrb[0].mxu0
    %v1164 = vadd.f32 %v1093, %v1163
    %v1165 = vpop.f32.mrb[0].mxu0
    %1166 = vdwg.mxu0
    %v1167 = vadd.f32 %v1164, %v91
    %1169 = vrot.lane.b32.xlu0 %v223, 120
    %v1170 = vpop.permute.xlu0 %1169
    %1171 = vrot.lane.b32.xlu0 %v223, 112
    %v1172 = vpop.permute.xlu0 %1171
    %1173 = vrot.lane.b32.xlu0 %v223, 104
    %v1174 = vpop.permute.xlu0 %1173
    %1176 = vrot.lane.b32.xlu0 %v306, 120
    %v1177 = vpop.permute.xlu0 %1176
    %1178 = vrot.lane.b32.xlu0 %v306, 112
    %v1179 = vpop.permute.xlu0 %1178
    %1180 = vrot.lane.b32.xlu0 %v306, 104
    %v1181 = vpop.permute.xlu0 %1180
    %1183 = vrot.lane.b32.xlu0 %v389, 120
    %v1184 = vpop.permute.xlu0 %1183
    %1186 = vrot.lane.b32.xlu0 %v389, 112
    %v1187 = vpop.permute.xlu0 %1186
    %1189 = vrot.lane.b32.xlu0 %v389, 104
    %v1190 = vpop.permute.xlu0 %1189
    %v1192 = vsel %vm425, %v223, 0
    %v1194 = vsel %vm425, %v306, 0
    %1196 = vmatprep.subr.mxu0 0.0
    %1197 = vmatpush1.xpose.msra.mxu0 %v1194
    %1198 = vmatprep.subr.mxu0 0.0
    %1199 = vmatpush1.xpose.msra.mxu0 0.0
    %1200 = vmatprep.subr.mxu0 0.0
    %1201 = vmatpush1.xpose.msra.mxu0 0.0
    %1202 = vmatprep.subr.mxu0 0.0
    %1203 = vmatpush1.xpose.msra.mxu0 0.0
    %1204 = vmatprep.subr.mxu0 0.0
    %1205 = vmatpush1.xpose.msra.mxu0 0.0
    %1206 = vmatprep.subr.mxu0 0.0
    %1207 = vmatpush1.xpose.msra.mxu0 0.0
    %1208 = vmatprep.subr.mxu0 0.0
    %1209 = vmatpush1.xpose.msra.mxu0 0.0
    %1210 = vmatprep.subr.mxu0 0.0
    %1211 = vmatpush1.xpose.msra.mxu0 0.0
    %1212 = vmatprep.subr.mxu0 0.0
    %1213 = vmatpush1.xpose.msra.mxu0 0.0
    %1214 = vmatprep.subr.mxu0 0.0
    %1215 = vmatpush1.xpose.msra.mxu0 0.0
    %1216 = vmatprep.subr.mxu0 0.0
    %1217 = vmatpush1.xpose.msra.mxu0 0.0
    %1218 = vmatprep.subr.mxu0 0.0
    %1219 = vmatpush1.xpose.msra.mxu0 0.0
    %1220 = vmatprep.subr.mxu0 0.0
    %1221 = vmatpush1.xpose.msra.mxu0 0.0
    %1222 = vmatprep.subr.mxu0 0.0
    %1223 = vmatpush1.xpose.msra.mxu0 0.0
    %1224 = vmatprep.subr.mxu0 0.0
    %1225 = vmatpush1.xpose.msra.mxu0 0.0
    %1226 = vmatprep.subr.mxu0 0.0
    %1227 = vmatpush1.xpose.msra.mxu0 0.0
    %1228 = vmatprep.subr.mxu0 0.0
    %1229 = vmatpush1.xpose.msra.mxu0 0.0
    %1230 = vmatprep.subr.mxu0 0.0
    %1231 = vmatpush1.xpose.msra.mxu0 0.0
    %1232 = vmatprep.subr.mxu0 0.0
    %1233 = vmatpush1.xpose.msra.mxu0 0.0
    %1234 = vmatprep.subr.mxu0 0.0
    %1235 = vmatpush1.xpose.msra.mxu0 0.0
    %1236 = vmatprep.subr.mxu0 0.0
    %1237 = vmatpush1.xpose.msra.mxu0 0.0
    %1238 = vmatprep.subr.mxu0 0.0
    %1239 = vmatpush1.xpose.msra.mxu0 0.0
    %1240 = vmatprep.subr.mxu0 0.0
    %1241 = vmatpush1.xpose.msra.mxu0 0.0
    %1242 = vmatprep.subr.mxu0 0.0
    %1243 = vmatpush1.xpose.msra.mxu0 0.0
    %1244 = vmatprep.subr.mxu0 0.0
    %1245 = vmatpush1.xpose.msra.mxu0 0.0
    %1246 = vmatprep.subr.mxu0 0.0
    %1247 = vmatpush1.xpose.msra.mxu0 0.0
    %1248 = vmatprep.subr.mxu0 0.0
    %1249 = vmatpush1.xpose.msra.mxu0 0.0
    %1250 = vmatprep.subr.mxu0 0.0
    %1251 = vmatpush1.xpose.msra.mxu0 0.0
    %1252 = vmatprep.subr.mxu0 0.0
    %1253 = vmatpush1.xpose.msra.mxu0 0.0
    %1254 = vmatprep.subr.mxu0 0.0
    %1255 = vmatpush1.xpose.msra.mxu0 0.0
    %1256 = vmatprep.subr.mxu0 0.0
    %1257 = vmatpush1.xpose.msra.mxu0 0.0
    %1258 = vmatprep.subr.mxu0 0.0
    %1259 = vmatpush1.xpose.msra.mxu0 0.0
    %1260 = vmatprep.mubr.f32.mxu0 0.0
    %1261 = vmatmul.mubr.f32.gmra.mrb[0].mxu0 %v1192
    %v1262 = vpop.f32.mrb[0].mxu0
    %v1263 = vadd.f32 0.0, %v1262
    %v1264 = vpop.f32.mrb[0].mxu0
    %1265 = vdwg.mxu0
    %v1266 = vsel %vm425, %v1170, 0
    %v1268 = vsel %vm425, %v1177, 0
    %1270 = vmatprep.subr.mxu0 0.0
    %1271 = vmatpush1.xpose.msra.mxu0 %v1268
    %1272 = vmatprep.subr.mxu0 0.0
    %1273 = vmatpush1.xpose.msra.mxu0 0.0
    %1274 = vmatprep.subr.mxu0 0.0
    %1275 = vmatpush1.xpose.msra.mxu0 0.0
    %1276 = vmatprep.subr.mxu0 0.0
    %1277 = vmatpush1.xpose.msra.mxu0 0.0
    %1278 = vmatprep.subr.mxu0 0.0
    %1279 = vmatpush1.xpose.msra.mxu0 0.0
    %1280 = vmatprep.subr.mxu0 0.0
    %1281 = vmatpush1.xpose.msra.mxu0 0.0
    %1282 = vmatprep.subr.mxu0 0.0
    %1283 = vmatpush1.xpose.msra.mxu0 0.0
    %1284 = vmatprep.subr.mxu0 0.0
    %1285 = vmatpush1.xpose.msra.mxu0 0.0
    %1286 = vmatprep.subr.mxu0 0.0
    %1287 = vmatpush1.xpose.msra.mxu0 0.0
    %1288 = vmatprep.subr.mxu0 0.0
    %1289 = vmatpush1.xpose.msra.mxu0 0.0
    %1290 = vmatprep.subr.mxu0 0.0
    %1291 = vmatpush1.xpose.msra.mxu0 0.0
    %1292 = vmatprep.subr.mxu0 0.0
    %1293 = vmatpush1.xpose.msra.mxu0 0.0
    %1294 = vmatprep.subr.mxu0 0.0
    %1295 = vmatpush1.xpose.msra.mxu0 0.0
    %1296 = vmatprep.subr.mxu0 0.0
    %1297 = vmatpush1.xpose.msra.mxu0 0.0
    %1298 = vmatprep.subr.mxu0 0.0
    %1299 = vmatpush1.xpose.msra.mxu0 0.0
    %1300 = vmatprep.subr.mxu0 0.0
    %1301 = vmatpush1.xpose.msra.mxu0 0.0
    %1302 = vmatprep.subr.mxu0 0.0
    %1303 = vmatpush1.xpose.msra.mxu0 0.0
    %1304 = vmatprep.subr.mxu0 0.0
    %1305 = vmatpush1.xpose.msra.mxu0 0.0
    %1306 = vmatprep.subr.mxu0 0.0
    %1307 = vmatpush1.xpose.msra.mxu0 0.0
    %1308 = vmatprep.subr.mxu0 0.0
    %1309 = vmatpush1.xpose.msra.mxu0 0.0
    %1310 = vmatprep.subr.mxu0 0.0
    %1311 = vmatpush1.xpose.msra.mxu0 0.0
    %1312 = vmatprep.subr.mxu0 0.0
    %1313 = vmatpush1.xpose.msra.mxu0 0.0
    %1314 = vmatprep.subr.mxu0 0.0
    %1315 = vmatpush1.xpose.msra.mxu0 0.0
    %1316 = vmatprep.subr.mxu0 0.0
    %1317 = vmatpush1.xpose.msra.mxu0 0.0
    %1318 = vmatprep.subr.mxu0 0.0
    %1319 = vmatpush1.xpose.msra.mxu0 0.0
    %1320 = vmatprep.subr.mxu0 0.0
    %1321 = vmatpush1.xpose.msra.mxu0 0.0
    %1322 = vmatprep.subr.mxu0 0.0
    %1323 = vmatpush1.xpose.msra.mxu0 0.0
    %1324 = vmatprep.subr.mxu0 0.0
    %1325 = vmatpush1.xpose.msra.mxu0 0.0
    %1326 = vmatprep.subr.mxu0 0.0
    %1327 = vmatpush1.xpose.msra.mxu0 0.0
    %1328 = vmatprep.subr.mxu0 0.0
    %1329 = vmatpush1.xpose.msra.mxu0 0.0
    %1330 = vmatprep.subr.mxu0 0.0
    %1331 = vmatpush1.xpose.msra.mxu0 0.0
    %1332 = vmatprep.subr.mxu0 0.0
    %1333 = vmatpush1.xpose.msra.mxu0 0.0
    %1334 = vmatprep.mubr.f32.mxu0 0.0
    %1335 = vmatmul.mubr.f32.gmra.mrb[0].mxu0 %v1266
    %v1336 = vpop.f32.mrb[0].mxu0
    %v1337 = vadd.f32 0.0, %v1336
    %v1338 = vpop.f32.mrb[0].mxu0
    %1339 = vdwg.mxu0
    %v1340 = vsel %vm425, %v1172, 0
    %v1342 = vsel %vm425, %v1179, 0
    %1344 = vmatprep.subr.mxu0 0.0
    %1345 = vmatpush1.xpose.msra.mxu0 %v1342
    %1346 = vmatprep.subr.mxu0 0.0
    %1347 = vmatpush1.xpose.msra.mxu0 0.0
    %1348 = vmatprep.subr.mxu0 0.0
    %1349 = vmatpush1.xpose.msra.mxu0 0.0
    %1350 = vmatprep.subr.mxu0 0.0
    %1351 = vmatpush1.xpose.msra.mxu0 0.0
    %1352 = vmatprep.subr.mxu0 0.0
    %1353 = vmatpush1.xpose.msra.mxu0 0.0
    %1354 = vmatprep.subr.mxu0 0.0
    %1355 = vmatpush1.xpose.msra.mxu0 0.0
    %1356 = vmatprep.subr.mxu0 0.0
    %1357 = vmatpush1.xpose.msra.mxu0 0.0
    %1358 = vmatprep.subr.mxu0 0.0
    %1359 = vmatpush1.xpose.msra.mxu0 0.0
    %1360 = vmatprep.subr.mxu0 0.0
    %1361 = vmatpush1.xpose.msra.mxu0 0.0
    %1362 = vmatprep.subr.mxu0 0.0
    %1363 = vmatpush1.xpose.msra.mxu0 0.0
    %1364 = vmatprep.subr.mxu0 0.0
    %1365 = vmatpush1.xpose.msra.mxu0 0.0
    %1366 = vmatprep.subr.mxu0 0.0
    %1367 = vmatpush1.xpose.msra.mxu0 0.0
    %1368 = vmatprep.subr.mxu0 0.0
    %1369 = vmatpush1.xpose.msra.mxu0 0.0
    %1370 = vmatprep.subr.mxu0 0.0
    %1371 = vmatpush1.xpose.msra.mxu0 0.0
    %1372 = vmatprep.subr.mxu0 0.0
    %1373 = vmatpush1.xpose.msra.mxu0 0.0
    %1374 = vmatprep.subr.mxu0 0.0
    %1375 = vmatpush1.xpose.msra.mxu0 0.0
    %1376 = vmatprep.subr.mxu0 0.0
    %1377 = vmatpush1.xpose.msra.mxu0 0.0
    %1378 = vmatprep.subr.mxu0 0.0
    %1379 = vmatpush1.xpose.msra.mxu0 0.0
    %1380 = vmatprep.subr.mxu0 0.0
    %1381 = vmatpush1.xpose.msra.mxu0 0.0
    %1382 = vmatprep.subr.mxu0 0.0
    %1383 = vmatpush1.xpose.msra.mxu0 0.0
    %1384 = vmatprep.subr.mxu0 0.0
    %1385 = vmatpush1.xpose.msra.mxu0 0.0
    %1386 = vmatprep.subr.mxu0 0.0
    %1387 = vmatpush1.xpose.msra.mxu0 0.0
    %1388 = vmatprep.subr.mxu0 0.0
    %1389 = vmatpush1.xpose.msra.mxu0 0.0
    %1390 = vmatprep.subr.mxu0 0.0
    %1391 = vmatpush1.xpose.msra.mxu0 0.0
    %1392 = vmatprep.subr.mxu0 0.0
    %1393 = vmatpush1.xpose.msra.mxu0 0.0
    %1394 = vmatprep.subr.mxu0 0.0
    %1395 = vmatpush1.xpose.msra.mxu0 0.0
    %1396 = vmatprep.subr.mxu0 0.0
    %1397 = vmatpush1.xpose.msra.mxu0 0.0
    %1398 = vmatprep.subr.mxu0 0.0
    %1399 = vmatpush1.xpose.msra.mxu0 0.0
    %1400 = vmatprep.subr.mxu0 0.0
    %1401 = vmatpush1.xpose.msra.mxu0 0.0
    %1402 = vmatprep.subr.mxu0 0.0
    %1403 = vmatpush1.xpose.msra.mxu0 0.0
    %1404 = vmatprep.subr.mxu0 0.0
    %1405 = vmatpush1.xpose.msra.mxu0 0.0
    %1406 = vmatprep.subr.mxu0 0.0
    %1407 = vmatpush1.xpose.msra.mxu0 0.0
    %1408 = vmatprep.mubr.f32.mxu0 0.0
    %1409 = vmatmul.mubr.f32.gmra.mrb[0].mxu0 %v1340
    %v1410 = vpop.f32.mrb[0].mxu0
    %v1411 = vadd.f32 0.0, %v1410
    %v1412 = vpop.f32.mrb[0].mxu0
    %1413 = vdwg.mxu0
    %v1414 = vsel %vm425, %v1174, 0
    %v1416 = vsel %vm425, %v1181, 0
    %1418 = vmatprep.subr.mxu0 0.0
    %1419 = vmatpush1.xpose.msra.mxu0 %v1416
    %1420 = vmatprep.subr.mxu0 0.0
    %1421 = vmatpush1.xpose.msra.mxu0 0.0
    %1422 = vmatprep.subr.mxu0 0.0
    %1423 = vmatpush1.xpose.msra.mxu0 0.0
    %1424 = vmatprep.subr.mxu0 0.0
    %1425 = vmatpush1.xpose.msra.mxu0 0.0
    %1426 = vmatprep.subr.mxu0 0.0
    %1427 = vmatpush1.xpose.msra.mxu0 0.0
    %1428 = vmatprep.subr.mxu0 0.0
    %1429 = vmatpush1.xpose.msra.mxu0 0.0
    %1430 = vmatprep.subr.mxu0 0.0
    %1431 = vmatpush1.xpose.msra.mxu0 0.0
    %1432 = vmatprep.subr.mxu0 0.0
    %1433 = vmatpush1.xpose.msra.mxu0 0.0
    %1434 = vmatprep.subr.mxu0 0.0
    %1435 = vmatpush1.xpose.msra.mxu0 0.0
    %1436 = vmatprep.subr.mxu0 0.0
    %1437 = vmatpush1.xpose.msra.mxu0 0.0
    %1438 = vmatprep.subr.mxu0 0.0
    %1439 = vmatpush1.xpose.msra.mxu0 0.0
    %1440 = vmatprep.subr.mxu0 0.0
    %1441 = vmatpush1.xpose.msra.mxu0 0.0
    %1442 = vmatprep.subr.mxu0 0.0
    %1443 = vmatpush1.xpose.msra.mxu0 0.0
    %1444 = vmatprep.subr.mxu0 0.0
    %1445 = vmatpush1.xpose.msra.mxu0 0.0
    %1446 = vmatprep.subr.mxu0 0.0
    %1447 = vmatpush1.xpose.msra.mxu0 0.0
    %1448 = vmatprep.subr.mxu0 0.0
    %1449 = vmatpush1.xpose.msra.mxu0 0.0
    %1450 = vmatprep.subr.mxu0 0.0
    %1451 = vmatpush1.xpose.msra.mxu0 0.0
    %1452 = vmatprep.subr.mxu0 0.0
    %1453 = vmatpush1.xpose.msra.mxu0 0.0
    %1454 = vmatprep.subr.mxu0 0.0
    %1455 = vmatpush1.xpose.msra.mxu0 0.0
    %1456 = vmatprep.subr.mxu0 0.0
    %1457 = vmatpush1.xpose.msra.mxu0 0.0
    %1458 = vmatprep.subr.mxu0 0.0
    %1459 = vmatpush1.xpose.msra.mxu0 0.0
    %1460 = vmatprep.subr.mxu0 0.0
    %1461 = vmatpush1.xpose.msra.mxu0 0.0
    %1462 = vmatprep.subr.mxu0 0.0
    %1463 = vmatpush1.xpose.msra.mxu0 0.0
    %1464 = vmatprep.subr.mxu0 0.0
    %1465 = vmatpush1.xpose.msra.mxu0 0.0
    %1466 = vmatprep.subr.mxu0 0.0
    %1467 = vmatpush1.xpose.msra.mxu0 0.0
    %1468 = vmatprep.subr.mxu0 0.0
    %1469 = vmatpush1.xpose.msra.mxu0 0.0
    %1470 = vmatprep.subr.mxu0 0.0
    %1471 = vmatpush1.xpose.msra.mxu0 0.0
    %1472 = vmatprep.subr.mxu0 0.0
    %1473 = vmatpush1.xpose.msra.mxu0 0.0
    %1474 = vmatprep.subr.mxu0 0.0
    %1475 = vmatpush1.xpose.msra.mxu0 0.0
    %1476 = vmatprep.subr.mxu0 0.0
    %1477 = vmatpush1.xpose.msra.mxu0 0.0
    %1478 = vmatprep.subr.mxu0 0.0
    %1479 = vmatpush1.xpose.msra.mxu0 0.0
    %1480 = vmatprep.subr.mxu0 0.0
    %1481 = vmatpush1.xpose.msra.mxu0 0.0
    %1482 = vmatprep.mubr.f32.mxu0 0.0
    %1483 = vmatmul.mubr.f32.gmra.mrb[0].mxu0 %v1414
    %v1484 = vpop.f32.mrb[0].mxu0
    %v1485 = vadd.f32 0.0, %v1484
    %v1486 = vpop.f32.mrb[0].mxu0
    %1487 = vdwg.mxu0
    %vm1488 = vcmp.gt.s32.totalorder %v94, 0
    %v1489 = vsel %vm1488, 1, 0
    %v1490 = vlaneseq
    %v1491 = vshrl.u32 %v1490, 7
    %v1492 = vsub.s32 0, %v1491
    %v1493 = vrot.slane %v1489, %v1492
    %vm1494 = vcmp.eq.s32.totalorder %v1493, 1
    %vm1495 = vmor %vm396, %vm1494
    %v1496 = vsel %vm1495, 1, 0
    %vm1497 = vcmp.eq.s32.totalorder %v1496, 1
    %v1498 = vsel %vm1497, -1e+18, %v1263
    %v1499 = vsel %vm1497, -1e+18, %v1337
    %v1500 = vsel %vm1497, -1e+18, %v1411
    %v1501 = vsel %vm1497, -1e+18, %v1485
    %v1502 = vsel %vm425, %v1498, -inf
    %1503 = vmax.xlane.f32.xlu0 %v1502
    %v1504 = vpop.xlane.xlu0 %1503
    %v1505 = vsel %vm425, %v1499, -inf
    %1506 = vmax.xlane.f32.xlu0 %v1505
    %v1507 = vpop.xlane.xlu0 %1506
    %v1508 = vsel %vm425, %v1500, -inf
    %1509 = vmax.xlane.f32.xlu0 %v1508
    %v1510 = vpop.xlane.xlu0 %1509
    %v1511 = vsel %vm425, %v1501, -inf
    %1512 = vmax.xlane.f32.xlu0 %v1511
    %v1513 = vpop.xlane.xlu0 %1512
    %v1514 = vsub.f32 %v1498, %v1504
    %v1515 = vsub.f32 %v1499, %v1507
    %v1516 = vsub.f32 %v1500, %v1510
    %v1517 = vsub.f32 %v1501, %v1513
    %v1518 = vmul.f32 %v1514, 1.442695
    %v1519 = vpow.pop %v1518
    %v1520 = vmul.f32 %v1515, 1.442695
    %v1521 = vpow.pop %v1520
    %v1522 = vmul.f32 %v1516, 1.442695
    %v1523 = vpow.pop %v1522
    %v1524 = vmul.f32 %v1517, 1.442695
    %v1525 = vpow.pop %v1524
    %v1526 = vsel %vm425, %v1519, 0.0
    %1527 = vadd.xlane.f32.xlu0 %v1526
    %v1528 = vpop.xlane.xlu0 %1527
    %v1529 = vsel %vm425, %v1521, 0.0
    %1530 = vadd.xlane.f32.xlu0 %v1529
    %v1531 = vpop.xlane.xlu0 %1530
    %v1532 = vsel %vm425, %v1523, 0.0
    %1533 = vadd.xlane.f32.xlu0 %v1532
    %v1534 = vpop.xlane.xlu0 %1533
    %v1535 = vsel %vm425, %v1525, 0.0
    %1536 = vadd.xlane.f32.xlu0 %v1535
    %v1537 = vpop.xlane.xlu0 %1536
    %v1538 = vrcp.pop %v1528
    %v1539 = vrcp.pop %v1531
    %v1540 = vrcp.pop %v1534
    %v1541 = vrcp.pop %v1537
    %v1542 = vmul.f32 %v1519, %v1538
    %v1543 = vmul.f32 %v1521, %v1539
    %v1544 = vmul.f32 %v1523, %v1540
    %v1545 = vmul.f32 %v1525, %v1541
    %s1546 = scalar_lea.vmem [#allocation11], 8
    %1547 = vst.msk [vmem:[%s1546] sm:$0xff] %vm425, %v1542
    %v1549 = vsel %vm425, %v1542, 0
    %1551 = vmatprep.subr.mxu0 0.0
    %1552 = vmatpush1.msra.mxu0 %v389
    %1553 = vmatprep.subr.mxu0 0.0
    %1554 = vmatpush1.msra.mxu0 0.0
    %1555 = vmatprep.subr.mxu0 0.0
    %1556 = vmatpush1.msra.mxu0 0.0
    %1557 = vmatprep.subr.mxu0 0.0
    %1558 = vmatpush1.msra.mxu0 0.0
    %1559 = vmatprep.subr.mxu0 0.0
    %1560 = vmatpush1.msra.mxu0 0.0
    %1561 = vmatprep.subr.mxu0 0.0
    %1562 = vmatpush1.msra.mxu0 0.0
    %1563 = vmatprep.subr.mxu0 0.0
    %1564 = vmatpush1.msra.mxu0 0.0
    %1565 = vmatprep.subr.mxu0 0.0
    %1566 = vmatpush1.msra.mxu0 0.0
    %1567 = vmatprep.subr.mxu0 0.0
    %1568 = vmatpush1.msra.mxu0 0.0
    %1569 = vmatprep.subr.mxu0 0.0
    %1570 = vmatpush1.msra.mxu0 0.0
    %1571 = vmatprep.subr.mxu0 0.0
    %1572 = vmatpush1.msra.mxu0 0.0
    %1573 = vmatprep.subr.mxu0 0.0
    %1574 = vmatpush1.msra.mxu0 0.0
    %1575 = vmatprep.subr.mxu0 0.0
    %1576 = vmatpush1.msra.mxu0 0.0
    %1577 = vmatprep.subr.mxu0 0.0
    %1578 = vmatpush1.msra.mxu0 0.0
    %1579 = vmatprep.subr.mxu0 0.0
    %1580 = vmatpush1.msra.mxu0 0.0
    %1581 = vmatprep.subr.mxu0 0.0
    %1582 = vmatpush1.msra.mxu0 0.0
    %1583 = vmatprep.subr.mxu0 0.0
    %1584 = vmatpush1.msra.mxu0 0.0
    %1585 = vmatprep.subr.mxu0 0.0
    %1586 = vmatpush1.msra.mxu0 0.0
    %1587 = vmatprep.subr.mxu0 0.0
    %1588 = vmatpush1.msra.mxu0 0.0
    %1589 = vmatprep.subr.mxu0 0.0
    %1590 = vmatpush1.msra.mxu0 0.0
    %1591 = vmatprep.subr.mxu0 0.0
    %1592 = vmatpush1.msra.mxu0 0.0
    %1593 = vmatprep.subr.mxu0 0.0
    %1594 = vmatpush1.msra.mxu0 0.0
    %1595 = vmatprep.subr.mxu0 0.0
    %1596 = vmatpush1.msra.mxu0 0.0
    %1597 = vmatprep.subr.mxu0 0.0
    %1598 = vmatpush1.msra.mxu0 0.0
    %1599 = vmatprep.subr.mxu0 0.0
    %1600 = vmatpush1.msra.mxu0 0.0
    %1601 = vmatprep.subr.mxu0 0.0
    %1602 = vmatpush1.msra.mxu0 0.0
    %1603 = vmatprep.subr.mxu0 0.0
    %1604 = vmatpush1.msra.mxu0 0.0
    %1605 = vmatprep.subr.mxu0 0.0
    %1606 = vmatpush1.msra.mxu0 0.0
    %1607 = vmatprep.subr.mxu0 0.0
    %1608 = vmatpush1.msra.mxu0 0.0
    %1609 = vmatprep.subr.mxu0 0.0
    %1610 = vmatpush1.msra.mxu0 0.0
    %1611 = vmatprep.subr.mxu0 0.0
    %1612 = vmatpush1.msra.mxu0 0.0
    %1613 = vmatprep.subr.mxu0 0.0
    %1614 = vmatpush1.msra.mxu0 0.0
    %1615 = vmatprep.mubr.f32.mxu0 0.0
    %1616 = vmatmul.mubr.f32.gmra.mrb[0].mxu0 %v1549
    %v1617 = vpop.f32.mrb[0].mxu0
    %v1618 = vadd.f32 0.0, %v1617
    %v1619 = vpop.f32.mrb[0].mxu0
    %1620 = vdwg.mxu0
    %v1622 = vsel %vm425, %v1543, 0
    %1624 = vmatprep.subr.mxu0 0.0
    %1625 = vmatpush1.msra.mxu0 %v1184
    %1626 = vmatprep.subr.mxu0 0.0
    %1627 = vmatpush1.msra.mxu0 0.0
    %1628 = vmatprep.subr.mxu0 0.0
    %1629 = vmatpush1.msra.mxu0 0.0
    %1630 = vmatprep.subr.mxu0 0.0
    %1631 = vmatpush1.msra.mxu0 0.0
    %1632 = vmatprep.subr.mxu0 0.0
    %1633 = vmatpush1.msra.mxu0 0.0
    %1634 = vmatprep.subr.mxu0 0.0
    %1635 = vmatpush1.msra.mxu0 0.0
    %1636 = vmatprep.subr.mxu0 0.0
    %1637 = vmatpush1.msra.mxu0 0.0
    %1638 = vmatprep.subr.mxu0 0.0
    %1639 = vmatpush1.msra.mxu0 0.0
    %1640 = vmatprep.subr.mxu0 0.0
    %1641 = vmatpush1.msra.mxu0 0.0
    %1642 = vmatprep.subr.mxu0 0.0
    %1643 = vmatpush1.msra.mxu0 0.0
    %1644 = vmatprep.subr.mxu0 0.0
    %1645 = vmatpush1.msra.mxu0 0.0
    %1646 = vmatprep.subr.mxu0 0.0
    %1647 = vmatpush1.msra.mxu0 0.0
    %1648 = vmatprep.subr.mxu0 0.0
    %1649 = vmatpush1.msra.mxu0 0.0
    %1650 = vmatprep.subr.mxu0 0.0
    %1651 = vmatpush1.msra.mxu0 0.0
    %1652 = vmatprep.subr.mxu0 0.0
    %1653 = vmatpush1.msra.mxu0 0.0
    %1654 = vmatprep.subr.mxu0 0.0
    %1655 = vmatpush1.msra.mxu0 0.0
    %1656 = vmatprep.subr.mxu0 0.0
    %1657 = vmatpush1.msra.mxu0 0.0
    %1658 = vmatprep.subr.mxu0 0.0
    %1659 = vmatpush1.msra.mxu0 0.0
    %1660 = vmatprep.subr.mxu0 0.0
    %1661 = vmatpush1.msra.mxu0 0.0
    %1662 = vmatprep.subr.mxu0 0.0
    %1663 = vmatpush1.msra.mxu0 0.0
    %1664 = vmatprep.subr.mxu0 0.0
    %1665 = vmatpush1.msra.mxu0 0.0
    %1666 = vmatprep.subr.mxu0 0.0
    %1667 = vmatpush1.msra.mxu0 0.0
    %1668 = vmatprep.subr.mxu0 0.0
    %1669 = vmatpush1.msra.mxu0 0.0
    %1670 = vmatprep.subr.mxu0 0.0
    %1671 = vmatpush1.msra.mxu0 0.0
    %1672 = vmatprep.subr.mxu0 0.0
    %1673 = vmatpush1.msra.mxu0 0.0
    %1674 = vmatprep.subr.mxu0 0.0
    %1675 = vmatpush1.msra.mxu0 0.0
    %1676 = vmatprep.subr.mxu0 0.0
    %1677 = vmatpush1.msra.mxu0 0.0
    %1678 = vmatprep.subr.mxu0 0.0
    %1679 = vmatpush1.msra.mxu0 0.0
    %1680 = vmatprep.subr.mxu0 0.0
    %1681 = vmatpush1.msra.mxu0 0.0
    %1682 = vmatprep.subr.mxu0 0.0
    %1683 = vmatpush1.msra.mxu0 0.0
    %1684 = vmatprep.subr.mxu0 0.0
    %1685 = vmatpush1.msra.mxu0 0.0
    %1686 = vmatprep.subr.mxu0 0.0
    %1687 = vmatpush1.msra.mxu0 0.0
    %1688 = vmatprep.mubr.f32.mxu0 0.0
    %1689 = vmatmul.mubr.f32.gmra.mrb[0].mxu0 %v1622
    %v1690 = vpop.f32.mrb[0].mxu0
    %v1691 = vadd.f32 0.0, %v1690
    %v1692 = vpop.f32.mrb[0].mxu0
    %1693 = vdwg.mxu0
    %v1695 = vsel %vm425, %v1544, 0
    %1697 = vmatprep.subr.mxu0 0.0
    %1698 = vmatpush1.msra.mxu0 %v1187
    %1699 = vmatprep.subr.mxu0 0.0
    %1700 = vmatpush1.msra.mxu0 0.0
    %1701 = vmatprep.subr.mxu0 0.0
    %1702 = vmatpush1.msra.mxu0 0.0
    %1703 = vmatprep.subr.mxu0 0.0
    %1704 = vmatpush1.msra.mxu0 0.0
    %1705 = vmatprep.subr.mxu0 0.0
    %1706 = vmatpush1.msra.mxu0 0.0
    %1707 = vmatprep.subr.mxu0 0.0
    %1708 = vmatpush1.msra.mxu0 0.0
    %1709 = vmatprep.subr.mxu0 0.0
    %1710 = vmatpush1.msra.mxu0 0.0
    %1711 = vmatprep.subr.mxu0 0.0
    %1712 = vmatpush1.msra.mxu0 0.0
    %1713 = vmatprep.subr.mxu0 0.0
    %1714 = vmatpush1.msra.mxu0 0.0
    %1715 = vmatprep.subr.mxu0 0.0
    %1716 = vmatpush1.msra.mxu0 0.0
    %1717 = vmatprep.subr.mxu0 0.0
    %1718 = vmatpush1.msra.mxu0 0.0
    %1719 = vmatprep.subr.mxu0 0.0
    %1720 = vmatpush1.msra.mxu0 0.0
    %1721 = vmatprep.subr.mxu0 0.0
    %1722 = vmatpush1.msra.mxu0 0.0
    %1723 = vmatprep.subr.mxu0 0.0
    %1724 = vmatpush1.msra.mxu0 0.0
    %1725 = vmatprep.subr.mxu0 0.0
    %1726 = vmatpush1.msra.mxu0 0.0
    %1727 = vmatprep.subr.mxu0 0.0
    %1728 = vmatpush1.msra.mxu0 0.0
    %1729 = vmatprep.subr.mxu0 0.0
    %1730 = vmatpush1.msra.mxu0 0.0
    %1731 = vmatprep.subr.mxu0 0.0
    %1732 = vmatpush1.msra.mxu0 0.0
    %1733 = vmatprep.subr.mxu0 0.0
    %1734 = vmatpush1.msra.mxu0 0.0
    %1735 = vmatprep.subr.mxu0 0.0
    %1736 = vmatpush1.msra.mxu0 0.0
    %1737 = vmatprep.subr.mxu0 0.0
    %1738 = vmatpush1.msra.mxu0 0.0
    %1739 = vmatprep.subr.mxu0 0.0
    %1740 = vmatpush1.msra.mxu0 0.0
    %1741 = vmatprep.subr.mxu0 0.0
    %1742 = vmatpush1.msra.mxu0 0.0
    %1743 = vmatprep.subr.mxu0 0.0
    %1744 = vmatpush1.msra.mxu0 0.0
    %1745 = vmatprep.subr.mxu0 0.0
    %1746 = vmatpush1.msra.mxu0 0.0
    %1747 = vmatprep.subr.mxu0 0.0
    %1748 = vmatpush1.msra.mxu0 0.0
    %1749 = vmatprep.subr.mxu0 0.0
    %1750 = vmatpush1.msra.mxu0 0.0
    %1751 = vmatprep.subr.mxu0 0.0
    %1752 = vmatpush1.msra.mxu0 0.0
    %1753 = vmatprep.subr.mxu0 0.0
    %1754 = vmatpush1.msra.mxu0 0.0
    %1755 = vmatprep.subr.mxu0 0.0
    %1756 = vmatpush1.msra.mxu0 0.0
    %1757 = vmatprep.subr.mxu0 0.0
    %1758 = vmatpush1.msra.mxu0 0.0
    %1759 = vmatprep.subr.mxu0 0.0
    %1760 = vmatpush1.msra.mxu0 0.0
    %1761 = vmatprep.mubr.f32.mxu0 0.0
    %1762 = vmatmul.mubr.f32.gmra.mrb[0].mxu0 %v1695
    %v1763 = vpop.f32.mrb[0].mxu0
    %v1764 = vadd.f32 0.0, %v1763
    %v1765 = vpop.f32.mrb[0].mxu0
    %1766 = vdwg.mxu0
    %v1768 = vsel %vm425, %v1545, 0
    %1770 = vmatprep.subr.mxu0 0.0
    %1771 = vmatpush1.msra.mxu0 %v1190
    %1772 = vmatprep.subr.mxu0 0.0
    %1773 = vmatpush1.msra.mxu0 0.0
    %1774 = vmatprep.subr.mxu0 0.0
    %1775 = vmatpush1.msra.mxu0 0.0
    %1776 = vmatprep.subr.mxu0 0.0
    %1777 = vmatpush1.msra.mxu0 0.0
    %1778 = vmatprep.subr.mxu0 0.0
    %1779 = vmatpush1.msra.mxu0 0.0
    %1780 = vmatprep.subr.mxu0 0.0
    %1781 = vmatpush1.msra.mxu0 0.0
    %1782 = vmatprep.subr.mxu0 0.0
    %1783 = vmatpush1.msra.mxu0 0.0
    %1784 = vmatprep.subr.mxu0 0.0
    %1785 = vmatpush1.msra.mxu0 0.0
    %1786 = vmatprep.subr.mxu0 0.0
    %1787 = vmatpush1.msra.mxu0 0.0
    %1788 = vmatprep.subr.mxu0 0.0
    %1789 = vmatpush1.msra.mxu0 0.0
    %1790 = vmatprep.subr.mxu0 0.0
    %1791 = vmatpush1.msra.mxu0 0.0
    %1792 = vmatprep.subr.mxu0 0.0
    %1793 = vmatpush1.msra.mxu0 0.0
    %1794 = vmatprep.subr.mxu0 0.0
    %1795 = vmatpush1.msra.mxu0 0.0
    %1796 = vmatprep.subr.mxu0 0.0
    %1797 = vmatpush1.msra.mxu0 0.0
    %1798 = vmatprep.subr.mxu0 0.0
    %1799 = vmatpush1.msra.mxu0 0.0
    %1800 = vmatprep.subr.mxu0 0.0
    %1801 = vmatpush1.msra.mxu0 0.0
    %1802 = vmatprep.subr.mxu0 0.0
    %1803 = vmatpush1.msra.mxu0 0.0
    %1804 = vmatprep.subr.mxu0 0.0
    %1805 = vmatpush1.msra.mxu0 0.0
    %1806 = vmatprep.subr.mxu0 0.0
    %1807 = vmatpush1.msra.mxu0 0.0
    %1808 = vmatprep.subr.mxu0 0.0
    %1809 = vmatpush1.msra.mxu0 0.0
    %1810 = vmatprep.subr.mxu0 0.0
    %1811 = vmatpush1.msra.mxu0 0.0
    %1812 = vmatprep.subr.mxu0 0.0
    %1813 = vmatpush1.msra.mxu0 0.0
    %1814 = vmatprep.subr.mxu0 0.0
    %1815 = vmatpush1.msra.mxu0 0.0
    %1816 = vmatprep.subr.mxu0 0.0
    %1817 = vmatpush1.msra.mxu0 0.0
    %1818 = vmatprep.subr.mxu0 0.0
    %1819 = vmatpush1.msra.mxu0 0.0
    %1820 = vmatprep.subr.mxu0 0.0
    %1821 = vmatpush1.msra.mxu0 0.0
    %1822 = vmatprep.subr.mxu0 0.0
    %1823 = vmatpush1.msra.mxu0 0.0
    %1824 = vmatprep.subr.mxu0 0.0
    %1825 = vmatpush1.msra.mxu0 0.0
    %1826 = vmatprep.subr.mxu0 0.0
    %1827 = vmatpush1.msra.mxu0 0.0
    %1828 = vmatprep.subr.mxu0 0.0
    %1829 = vmatpush1.msra.mxu0 0.0
    %1830 = vmatprep.subr.mxu0 0.0
    %1831 = vmatpush1.msra.mxu0 0.0
    %1832 = vmatprep.subr.mxu0 0.0
    %1833 = vmatpush1.msra.mxu0 0.0
    %1834 = vmatprep.mubr.f32.mxu0 0.0
    %1835 = vmatmul.mubr.f32.gmra.mrb[0].mxu0 %v1768
    %v1836 = vpop.f32.mrb[0].mxu0
    %v1837 = vadd.f32 0.0, %v1836
    %v1838 = vpop.f32.mrb[0].mxu0
    %1839 = vdwg.mxu0
    %1841 = vrot.lane.b32.xlu0 %v1691, 8
    %v1842 = vpop.permute.xlu0 %1841
    %1845 = vrot.lane.b32.xlu0 %v1764, 16
    %v1846 = vpop.permute.xlu0 %1845
    %1849 = vrot.lane.b32.xlu0 %v1837, 24
    %v1850 = vpop.permute.xlu0 %1849
    %v1852 = vsel %vm425, %v1618, %v1842
    %v1853 = vsel %vm1086, %v1852, %v1846
    %v1854 = vsel %vm1088, %v1853, %v1850
    %v1856 = vsel %vm97, %v1854, 0
    %1858 = vmatprep.subr.mxu0 0.0
    %1859 = vmatpush1.msra.mxu0 %v397
    %1860 = vmatprep.subr.mxu0 0.0
    %1861 = vmatpush1.msra.mxu0 %v398
    %1862 = vmatprep.subr.mxu0 0.0
    %1863 = vmatpush1.msra.mxu0 %v399
    %1864 = vmatprep.subr.mxu0 0.0
    %1865 = vmatpush1.msra.mxu0 %v400
    %1866 = vmatprep.subr.mxu0 0.0
    %1867 = vmatpush1.msra.mxu0 0.0
    %1868 = vmatprep.subr.mxu0 0.0
    %1869 = vmatpush1.msra.mxu0 0.0
    %1870 = vmatprep.subr.mxu0 0.0
    %1871 = vmatpush1.msra.mxu0 0.0
    %1872 = vmatprep.subr.mxu0 0.0
    %1873 = vmatpush1.msra.mxu0 0.0
    %1874 = vmatprep.subr.mxu0 0.0
    %1875 = vmatpush1.msra.mxu0 0.0
    %1876 = vmatprep.subr.mxu0 0.0
    %1877 = vmatpush1.msra.mxu0 0.0
    %1878 = vmatprep.subr.mxu0 0.0
    %1879 = vmatpush1.msra.mxu0 0.0
    %1880 = vmatprep.subr.mxu0 0.0
    %1881 = vmatpush1.msra.mxu0 0.0
    %1882 = vmatprep.subr.mxu0 0.0
    %1883 = vmatpush1.msra.mxu0 0.0
    %1884 = vmatprep.subr.mxu0 0.0
    %1885 = vmatpush1.msra.mxu0 0.0
    %1886 = vmatprep.subr.mxu0 0.0
    %1887 = vmatpush1.msra.mxu0 0.0
    %1888 = vmatprep.subr.mxu0 0.0
    %1889 = vmatpush1.msra.mxu0 0.0
    %1890 = vmatprep.subr.mxu0 0.0
    %1891 = vmatpush1.msra.mxu0 0.0
    %1892 = vmatprep.subr.mxu0 0.0
    %1893 = vmatpush1.msra.mxu0 0.0
    %1894 = vmatprep.subr.mxu0 0.0
    %1895 = vmatpush1.msra.mxu0 0.0
    %1896 = vmatprep.subr.mxu0 0.0
    %1897 = vmatpush1.msra.mxu0 0.0
    %1898 = vmatprep.subr.mxu0 0.0
    %1899 = vmatpush1.msra.mxu0 0.0
    %1900 = vmatprep.subr.mxu0 0.0
    %1901 = vmatpush1.msra.mxu0 0.0
    %1902 = vmatprep.subr.mxu0 0.0
    %1903 = vmatpush1.msra.mxu0 0.0
    %1904 = vmatprep.subr.mxu0 0.0
    %1905 = vmatpush1.msra.mxu0 0.0
    %1906 = vmatprep.subr.mxu0 0.0
    %1907 = vmatpush1.msra.mxu0 0.0
    %1908 = vmatprep.subr.mxu0 0.0
    %1909 = vmatpush1.msra.mxu0 0.0
    %1910 = vmatprep.subr.mxu0 0.0
    %1911 = vmatpush1.msra.mxu0 0.0
    %1912 = vmatprep.subr.mxu0 0.0
    %1913 = vmatpush1.msra.mxu0 0.0
    %1914 = vmatprep.subr.mxu0 0.0
    %1915 = vmatpush1.msra.mxu0 0.0
    %1916 = vmatprep.subr.mxu0 0.0
    %1917 = vmatpush1.msra.mxu0 0.0
    %1918 = vmatprep.subr.mxu0 0.0
    %1919 = vmatpush1.msra.mxu0 0.0
    %1920 = vmatprep.subr.mxu0 0.0
    %1921 = vmatpush1.msra.mxu0 0.0
    %1922 = vmatprep.mubr.f32.mxu0 0.0
    %1923 = vmatmul.mubr.f32.gmra.mrb[0].mxu0 %v1856
    %v1924 = vpop.f32.mrb[0].mxu0
    %v1925 = vadd.f32 %v1093, %v1924
    %v1926 = vpop.f32.mrb[0].mxu0
    %1927 = vdwg.mxu0
    %v1928 = vadd.f32 %v1925, %v92
    %v1929 = vsel %vm97, %v1167, 0.0
    %1930 = vadd.xlane.f32.xlu0 %v1929
    %v1931 = vpop.xlane.xlu0 %1930
    %v1932 = vsel %vm97, %v1928, 0.0
    %1933 = vadd.xlane.f32.xlu0 %v1932
    %v1934 = vpop.xlane.xlu0 %1933
    %v1935 = vmul.f32 %v1931, %v104
    %v1936 = vmul.f32 %v1934, %v104
    %v1937 = vsub.f32 %v1167, %v1935
    %v1938 = vsub.f32 %v1928, %v1936
    %v1939 = vmul.f32 %v1937, %v1937
    %v1940 = vmul.f32 %v1938, %v1938
    %v1941 = vsel %vm97, %v1939, 0.0
    %1942 = vadd.xlane.f32.xlu0 %v1941
    %v1943 = vpop.xlane.xlu0 %1942
    %v1944 = vsel %vm97, %v1940, 0.0
    %1945 = vadd.xlane.f32.xlu0 %v1944
    %v1946 = vpop.xlane.xlu0 %1945
    %v1947 = vmul.f32 %v1943, %v104
    %v1948 = vmul.f32 %v1946, %v104
    %v1949 = vadd.f32 %v1947, 1e-06
    %v1950 = vadd.f32 %v1948, 1e-06
    %v1951 = vrsqrt.pop %v1949
    %v1952 = vrsqrt.pop %v1950
    %v1953 = vmul.f32 %v1937, %v1951
    %v1954 = vmul.f32 %v1938, %v1952
    %v1955 = vlaneseq
    %v1956 = vshrl.u32 %v1955, 7
    %v1957 = vsub.s32 6, %v1956
    %v1958 = vrot.slane %v95, %v1957
    %v1959 = vmul.f32 %v1953, %v1958
    %v1960 = vmul.f32 %v1954, %v1958
    %v1961 = vlaneseq
    %v1962 = vshrl.u32 %v1961, 7
    %v1963 = vsub.s32 7, %v1962
    %v1964 = vrot.slane %v95, %v1963
    %v1965 = vadd.f32 %v1959, %v1964
    %v1966 = vadd.f32 %v1960, %v1964
    %v1967 = vld [vmem:[#allocation8] sm:$0xff]
    %v1968 = vld [vmem:[#allocation8 + $0x8] sm:$0xff]
    %v1969 = vld [vmem:[#allocation8 + $0x10] sm:$0xff]
    %v1970 = vld [vmem:[#allocation8 + $0x18] sm:$0xff]
    %v1971 = vlaneseq
    %v1972 = vshrl.u32 %v1971, 7
    %v1973 = vsub.s32 1, %v1972
    %v1974 = vrot.slane %v96, %v1973
    %v1976 = vsel %vm97, %v1965, 0
    %v1979 = vsel %vm97, %v1966, 0
    %1981 = vmatprep.subr.mxu0 0.0
    %1982 = vmatpush1.msra.mxu0 %v1967
    %1983 = vmatprep.subr.mxu0 0.0
    %1984 = vmatpush1.msra.mxu0 %v1968
    %1985 = vmatprep.subr.mxu0 0.0
    %1986 = vmatpush1.msra.mxu0 %v1969
    %1987 = vmatprep.subr.mxu0 0.0
    %1988 = vmatpush1.msra.mxu0 %v1970
    %1989 = vmatprep.subr.mxu0 0.0
    %1990 = vmatpush1.msra.mxu0 0.0
    %1991 = vmatprep.subr.mxu0 0.0
    %1992 = vmatpush1.msra.mxu0 0.0
    %1993 = vmatprep.subr.mxu0 0.0
    %1994 = vmatpush1.msra.mxu0 0.0
    %1995 = vmatprep.subr.mxu0 0.0
    %1996 = vmatpush1.msra.mxu0 0.0
    %1997 = vmatprep.subr.mxu0 0.0
    %1998 = vmatpush1.msra.mxu0 0.0
    %1999 = vmatprep.subr.mxu0 0.0
    %2000 = vmatpush1.msra.mxu0 0.0
    %2001 = vmatprep.subr.mxu0 0.0
    %2002 = vmatpush1.msra.mxu0 0.0
    %2003 = vmatprep.subr.mxu0 0.0
    %2004 = vmatpush1.msra.mxu0 0.0
    %2005 = vmatprep.subr.mxu0 0.0
    %2006 = vmatpush1.msra.mxu0 0.0
    %2007 = vmatprep.subr.mxu0 0.0
    %2008 = vmatpush1.msra.mxu0 0.0
    %2009 = vmatprep.subr.mxu0 0.0
    %2010 = vmatpush1.msra.mxu0 0.0
    %2011 = vmatprep.subr.mxu0 0.0
    %2012 = vmatpush1.msra.mxu0 0.0
    %2013 = vmatprep.subr.mxu0 0.0
    %2014 = vmatpush1.msra.mxu0 0.0
    %2015 = vmatprep.subr.mxu0 0.0
    %2016 = vmatpush1.msra.mxu0 0.0
    %2017 = vmatprep.subr.mxu0 0.0
    %2018 = vmatpush1.msra.mxu0 0.0
    %2019 = vmatprep.subr.mxu0 0.0
    %2020 = vmatpush1.msra.mxu0 0.0
    %2021 = vmatprep.subr.mxu0 0.0
    %2022 = vmatpush1.msra.mxu0 0.0
    %2023 = vmatprep.subr.mxu0 0.0
    %2024 = vmatpush1.msra.mxu0 0.0
    %2025 = vmatprep.subr.mxu0 0.0
    %2026 = vmatpush1.msra.mxu0 0.0
    %2027 = vmatprep.subr.mxu0 0.0
    %2028 = vmatpush1.msra.mxu0 0.0
    %2029 = vmatprep.subr.mxu0 0.0
    %2030 = vmatpush1.msra.mxu0 0.0
    %2031 = vmatprep.subr.mxu0 0.0
    %2032 = vmatpush1.msra.mxu0 0.0
    %2033 = vmatprep.subr.mxu0 0.0
    %2034 = vmatpush1.msra.mxu0 0.0
    %2035 = vmatprep.subr.mxu0 0.0
    %2036 = vmatpush1.msra.mxu0 0.0
    %2037 = vmatprep.subr.mxu0 0.0
    %2038 = vmatpush1.msra.mxu0 0.0
    %2039 = vmatprep.subr.mxu0 0.0
    %2040 = vmatpush1.msra.mxu0 0.0
    %2041 = vmatprep.subr.mxu0 0.0
    %2042 = vmatpush1.msra.mxu0 0.0
    %2043 = vmatprep.subr.mxu0 0.0
    %2044 = vmatpush1.msra.mxu0 0.0
    %2045 = vmatprep.mubr.f32.mxu0 0.0
    %2046 = vmatmul.mubr.f32.gmra.mrb[0].mxu0 %v1976
    %v2047 = vpop.f32.mrb[0].mxu0
    %v2048 = vadd.f32 %v1974, %v2047
    %v2049 = vpop.f32.mrb[0].mxu0
    %2050 = vmatprep.mubr.f32.mxu0 0.0
    %2051 = vmatmul.mubr.f32.gmra.mrb[0].mxu0 %v1979
    %v2052 = vpop.f32.mrb[0].mxu0
    %v2053 = vadd.f32 %v1974, %v2052
    %v2054 = vpop.f32.mrb[0].mxu0
    %2055 = vdwg.mxu0
    %v2056 = vmax.f32 %v2048, 0.0
    %v2057 = vmax.f32 %v2053, 0.0
    %v2058 = vld [vmem:[%s8] sm:$0xff]
    %v2059 = vld [vmem:[%s8 + $0x8] sm:$0xff]
    %v2060 = vld [vmem:[%s8 + $0x10] sm:$0xff]
    %v2061 = vld [vmem:[%s8 + $0x18] sm:$0xff]
    %v2062 = vld [vmem:[%s8 + $0x20] sm:$0xff]
    %v2063 = vld [vmem:[%s8 + $0x28] sm:$0xff]
    %v2064 = vld [vmem:[%s8 + $0x30] sm:$0xff]
    %v2065 = vld [vmem:[%s8 + $0x38] sm:$0xff]
    %v2066 = vlaneseq
    %v2067 = vshrl.u32 %v2066, 7
    %v2068 = vsub.s32 0, %v2067
    %v2069 = vrot.slane %v96, %v2068
    %vm2070 = vcmask 523264
    %v2072 = vsel %vm2070, %v2056, 0
    %v2075 = vsel %vm2070, %v2057, 0
    %2077 = vmatprep.subr.mxu0 0.0
    %2078 = vmatpush1.msra.mxu0 %v2058
    %2079 = vmatprep.subr.mxu0 0.0
    %2080 = vmatpush1.msra.mxu0 %v2059
    %2081 = vmatprep.subr.mxu0 0.0
    %2082 = vmatpush1.msra.mxu0 %v2060
    %2083 = vmatprep.subr.mxu0 0.0
    %2084 = vmatpush1.msra.mxu0 %v2061
    %2085 = vmatprep.subr.mxu0 0.0
    %2086 = vmatpush1.msra.mxu0 %v2062
    %2087 = vmatprep.subr.mxu0 0.0
    %2088 = vmatpush1.msra.mxu0 %v2063
    %2089 = vmatprep.subr.mxu0 0.0
    %2090 = vmatpush1.msra.mxu0 %v2064
    %2091 = vmatprep.subr.mxu0 0.0
    %2092 = vmatpush1.msra.mxu0 %v2065
    %2093 = vmatprep.subr.mxu0 0.0
    %2094 = vmatpush1.msra.mxu0 0.0
    %2095 = vmatprep.subr.mxu0 0.0
    %2096 = vmatpush1.msra.mxu0 0.0
    %2097 = vmatprep.subr.mxu0 0.0
    %2098 = vmatpush1.msra.mxu0 0.0
    %2099 = vmatprep.subr.mxu0 0.0
    %2100 = vmatpush1.msra.mxu0 0.0
    %2101 = vmatprep.subr.mxu0 0.0
    %2102 = vmatpush1.msra.mxu0 0.0
    %2103 = vmatprep.subr.mxu0 0.0
    %2104 = vmatpush1.msra.mxu0 0.0
    %2105 = vmatprep.subr.mxu0 0.0
    %2106 = vmatpush1.msra.mxu0 0.0
    %2107 = vmatprep.subr.mxu0 0.0
    %2108 = vmatpush1.msra.mxu0 0.0
    %2109 = vmatprep.subr.mxu0 0.0
    %2110 = vmatpush1.msra.mxu0 0.0
    %2111 = vmatprep.subr.mxu0 0.0
    %2112 = vmatpush1.msra.mxu0 0.0
    %2113 = vmatprep.subr.mxu0 0.0
    %2114 = vmatpush1.msra.mxu0 0.0
    %2115 = vmatprep.subr.mxu0 0.0
    %2116 = vmatpush1.msra.mxu0 0.0
    %2117 = vmatprep.subr.mxu0 0.0
    %2118 = vmatpush1.msra.mxu0 0.0
    %2119 = vmatprep.subr.mxu0 0.0
    %2120 = vmatpush1.msra.mxu0 0.0
    %2121 = vmatprep.subr.mxu0 0.0
    %2122 = vmatpush1.msra.mxu0 0.0
    %2123 = vmatprep.subr.mxu0 0.0
    %2124 = vmatpush1.msra.mxu0 0.0
    %2125 = vmatprep.subr.mxu0 0.0
    %2126 = vmatpush1.msra.mxu0 0.0
    %2127 = vmatprep.subr.mxu0 0.0
    %2128 = vmatpush1.msra.mxu0 0.0
    %2129 = vmatprep.subr.mxu0 0.0
    %2130 = vmatpush1.msra.mxu0 0.0
    %2131 = vmatprep.subr.mxu0 0.0
    %2132 = vmatpush1.msra.mxu0 0.0
    %2133 = vmatprep.subr.mxu0 0.0
    %2134 = vmatpush1.msra.mxu0 0.0
    %2135 = vmatprep.subr.mxu0 0.0
    %2136 = vmatpush1.msra.mxu0 0.0
    %2137 = vmatprep.subr.mxu0 0.0
    %2138 = vmatpush1.msra.mxu0 0.0
    %2139 = vmatprep.subr.mxu0 0.0
    %2140 = vmatpush1.msra.mxu0 0.0
    %2141 = vmatprep.mubr.f32.mxu0 0.0
    %2142 = vmatmul.mubr.f32.gmra.mrb[0].mxu0 %v2072
    %v2143 = vpop.f32.mrb[0].mxu0
    %v2144 = vadd.f32 %v2069, %v2143
    %v2145 = vpop.f32.mrb[0].mxu0
    %2146 = vmatprep.mubr.f32.mxu0 0.0
    %2147 = vmatmul.mubr.f32.gmra.mrb[0].mxu0 %v2075
    %v2148 = vpop.f32.mrb[0].mxu0
    %v2149 = vadd.f32 %v2069, %v2148
    %v2150 = vpop.f32.mrb[0].mxu0
    %2151 = vdwg.mxu0
    %v2152 = vadd.f32 %v2144, %v1167
    %v2153 = vadd.f32 %v2149, %v1928
    %2154 = vst.msk [vmem:[#allocation10] sm:$0xff] %vm97, %v2152
    %2155 = vst.msk [vmem:[#allocation10 + $0x8] sm:$0xff] %vm97, %v2153
    // Predicated region
    $region54: #{tpu_custom_call.1} parent=1 // pred_check
      _
    $region55: #{tpu_custom_call.1} parent=1 // pred_check_branch
      %2157 = sbr.rel (0) target = $region57
    $region56: #{tpu_custom_call.1} parent=1 // pred_region
      %s2159 = ssub.s32 256, 256
      %2160 = vsyncadd [#allocation4], %s2159
      %s2161 = sshll.u32 [#allocation10], 4
      %s2162 = int_to_ptr.vmem [resolvable:$true] %s2161
      %2167 = dma.vmem_to_hbm [thread:$0]  %s2162, 256, %s9, [#allocation4], 128, 128, 8
    $region57: #{tpu_custom_call.1} parent=1 // pred_fallthru
      _
    // Predicated region
    $region58: #{tpu_custom_call.1} parent=1 // pred_check
      _
    $region59: #{tpu_custom_call.1} parent=1 // pred_check_branch
      %2169 = sbr.rel (0) target = $region61
    $region60: #{tpu_custom_call.1} parent=1 // pred_region
      %s2171 = ssub.s32 256, 256
      %2172 = vsyncadd [#allocation12], %s2171
      %s2173 = sshll.u32 [#allocation11], 4
      %s2174 = int_to_ptr.vmem [resolvable:$true] %s2173
      %2179 = dma.vmem_to_hbm [thread:$0]  %s2174, 256, %s10, [#allocation12], 128, 128, 8
    $region61: #{tpu_custom_call.1} parent=1 // pred_fallthru
      _
    // Predicated region
    $region62: #{tpu_custom_call.1} parent=1 // pred_check
      _
    $region63: #{tpu_custom_call.1} parent=1 // pred_check_branch
      %2181 = sbr.rel (0) target = $region65
    $region64: #{tpu_custom_call.1} parent=1 // pred_region
      %2182 = dma.done [#allocation4], 256
    $region65: #{tpu_custom_call.1} parent=1 // pred_fallthru
      _
    // Predicated region
    $region66: #{tpu_custom_call.1} parent=1 // pred_check
      _
    $region67: #{tpu_custom_call.1} parent=1 // pred_check_branch
      %2184 = sbr.rel (0) target = $region69
    $region68: #{tpu_custom_call.1} parent=1 // pred_region
      %2185 = dma.done [#allocation12], 256
    $region69: #{tpu_custom_call.1} parent=1 // pred_fallthru
      _
    %2186 = vsyncpa [#allocation3], 1
    %2187 = vsyncpa [#allocation6], 1
    %2188 = vsyncpa [#allocation9], 1
    %2189 = vsyncpa [#allocation4], 1
    %2190 = vsyncpa [#allocation12], 1

// kernel: tpu_custom_call.1
$region0: #{tpu_custom_call.1}
  #allocation0 [shape = 'u32[]', space=smem, size = 0x4, offset = 0x4, fixed_abs, tag = 'smem constant byte address 0x4 - core index']
  #allocation1 [shape = 'u32[144,128]{1,0:T(1,128)}', space=vmem, size = 0x12000, scoped, tag = 'internal scratch']
  %s0 = inlined_call_operand.hbm [shape: f32[16,32], index: 0, kind: input, shape index: {}]
  %s1 = inlined_call_operand.vmem [shape: s32[2,1,8], index: 1, kind: input, shape index: {}]
  %s2 = inlined_call_operand.hbm [shape: f32[16,64], index: 2, kind: input, shape index: {}]
  %s3 = inlined_call_operand.vmem [shape: f32[32,32], index: 3, kind: input, shape index: {}]
  %s4 = inlined_call_operand.vmem [shape: f32[32,32], index: 4, kind: input, shape index: {}]
  %s5 = inlined_call_operand.vmem [shape: f32[32,32], index: 5, kind: input, shape index: {}]
  %s6 = inlined_call_operand.hbm [shape: f32[32,32], index: 6, kind: input, shape index: {}]
  %s7 = inlined_call_operand.hbm [shape: f32[32,64], index: 7, kind: input, shape index: {}]
  %s8 = inlined_call_operand.vmem [shape: f32[64,32], index: 8, kind: input, shape index: {}]
  %s9 = inlined_call_operand.hbm [shape: f32[16,32], index: 9, kind: output, shape index: {0}]
  %s10 = inlined_call_operand.hbm [shape: f32[2,8,8], index: 10, kind: output, shape index: {1}]
  %11 = xla_tuple %s9, %s10
  %s12 = sld [smem:[#allocation0]]
  $region70: #{tpu_custom_call.1} parent=0
    _
  %s14 = ssub.s32 1, %s12
  %s15 = scalar_select 0, %s14, %s12
  $region1: #{tpu_custom_call.1} parent=0
    #allocation2 [shape = 'u8[8192]{0}', space=vmem, size = 0x2000, scoped, tag = 'input window, operand 0, single buffered']
    #allocation3 [shape = 's32[1]{0}', space=sflag, size = 0x4, scoped, tag = 'scoped memory for tpu_custom_call.1']
    #allocation4 [shape = 's32[1]{0}', space=sflag, size = 0x4, scoped, tag = 'scoped memory for tpu_custom_call.1']
    #allocation5 [shape = 'u8[8192]{0}', space=vmem, size = 0x2000, scoped, tag = 'input window, operand 2, single buffered']
    #allocation6 [shape = 's32[1]{0}', space=sflag, size = 0x4, scoped, tag = 'scoped memory for tpu_custom_call.1']
    #allocation7 [shape = 'u8[16384]{0}', space=vmem, size = 0x4000, scoped, tag = 'input window, operand 6, single buffered']
    #allocation8 [shape = 'u8[16384]{0}', space=vmem, size = 0x4000, scoped, tag = 'input window, operand 7, single buffered']
    #allocation9 [shape = 's32[1]{0}', space=sflag, size = 0x4, scoped, tag = 'scoped memory for tpu_custom_call.1']
    #allocation10 [shape = 'u8[8192]{0}', space=vmem, size = 0x2000, scoped, tag = 'output window, operand 0, single buffered']
    #allocation11 [shape = 'u8[8192]{0}', space=vmem, size = 0x2000, scoped, tag = 'output window, operand 1, single buffered']
    #allocation12 [shape = 's32[1]{0}', space=sflag, size = 0x4, scoped, tag = 'scoped memory for tpu_custom_call.1']
    %16 = vsyncpa [#allocation3], 0
    %17 = vsyncpa [#allocation6], 0
    %18 = vsyncpa [#allocation9], 0
    %19 = vsyncpa [#allocation4], 0
    %20 = vsyncpa [#allocation12], 0
    // Predicated region
    $region2: #{tpu_custom_call.1} parent=1 // pred_check
      _
    $region3: #{tpu_custom_call.1} parent=1 // pred_check_branch
      %22 = sbr.rel (0) target = $region5
    $region4: #{tpu_custom_call.1} parent=1 // pred_region
      %s24 = ssub.s32 256, 256
      %25 = vsyncadd [#allocation3], %s24
      %s26 = sshll.u32 [#allocation2], 4
      %s27 = int_to_ptr.vmem [resolvable:$true] %s26
      %32 = dma.hbm_to_vmem [thread:$0]  %s0, 256, %s27, [#allocation3], 128, 128, 8
    $region5: #{tpu_custom_call.1} parent=1 // pred_fallthru
      _
    // Predicated region
    $region6: #{tpu_custom_call.1} parent=1 // pred_check
      _
    $region7: #{tpu_custom_call.1} parent=1 // pred_check_branch
      %34 = sbr.rel (0) target = $region9
    $region8: #{tpu_custom_call.1} parent=1 // pred_region
      _
    $region9: #{tpu_custom_call.1} parent=1 // pred_fallthru
      _
    // Predicated region
    $region10: #{tpu_custom_call.1} parent=1 // pred_check
      _
    $region11: #{tpu_custom_call.1} parent=1 // pred_check_branch
      %36 = sbr.rel (0) target = $region13
    $region12: #{tpu_custom_call.1} parent=1 // pred_region
      %s38 = ssub.s32 256, 256
      %39 = vsyncadd [#allocation6], %s38
      %s40 = sshll.u32 [#allocation5], 4
      %s41 = int_to_ptr.vmem [resolvable:$true] %s40
      %46 = dma.hbm_to_vmem [thread:$0]  %s2, 256, %s41, [#allocation6], 128, 128, 8
    $region13: #{tpu_custom_call.1} parent=1 // pred_fallthru
      _
    // Predicated region
    $region14: #{tpu_custom_call.1} parent=1 // pred_check
      _
    $region15: #{tpu_custom_call.1} parent=1 // pred_check_branch
      %48 = sbr.rel (0) target = $region17
    $region16: #{tpu_custom_call.1} parent=1 // pred_region
      _
    $region17: #{tpu_custom_call.1} parent=1 // pred_fallthru
      _
    // Predicated region
    $region18: #{tpu_custom_call.1} parent=1 // pred_check
      _
    $region19: #{tpu_custom_call.1} parent=1 // pred_check_branch
      %50 = sbr.rel (0) target = $region21
    $region20: #{tpu_custom_call.1} parent=1 // pred_region
      _
    $region21: #{tpu_custom_call.1} parent=1 // pred_fallthru
      _
    // Predicated region
    $region22: #{tpu_custom_call.1} parent=1 // pred_check
      _
    $region23: #{tpu_custom_call.1} parent=1 // pred_check_branch
      %52 = sbr.rel (0) target = $region25
    $region24: #{tpu_custom_call.1} parent=1 // pred_region
      _
    $region25: #{tpu_custom_call.1} parent=1 // pred_fallthru
      _
    // Predicated region
    $region26: #{tpu_custom_call.1} parent=1 // pred_check
      _
    $region27: #{tpu_custom_call.1} parent=1 // pred_check_branch
      %54 = sbr.rel (0) target = $region29
    $region28: #{tpu_custom_call.1} parent=1 // pred_region
      %s56 = ssub.s32 512, 512
      %57 = vsyncadd [#allocation6], %s56
      %s58 = sshll.u32 [#allocation7], 4
      %s59 = int_to_ptr.vmem [resolvable:$true] %s58
      %64 = dma.hbm_to_vmem [thread:$0]  %s6, 512, %s59, [#allocation6], 128, 128, 8
    $region29: #{tpu_custom_call.1} parent=1 // pred_fallthru
      _
    // Predicated region
    $region30: #{tpu_custom_call.1} parent=1 // pred_check
      _
    $region31: #{tpu_custom_call.1} parent=1 // pred_check_branch
      %66 = sbr.rel (0) target = $region33
    $region32: #{tpu_custom_call.1} parent=1 // pred_region
      %s68 = ssub.s32 512, 512
      %69 = vsyncadd [#allocation9], %s68
      %s70 = sshll.u32 [#allocation8], 4
      %s71 = int_to_ptr.vmem [resolvable:$true] %s70
      %76 = dma.hbm_to_vmem [thread:$0]  %s7, 512, %s71, [#allocation9], 128, 128, 8
    $region33: #{tpu_custom_call.1} parent=1 // pred_fallthru
      _
    // Predicated region
    $region34: #{tpu_custom_call.1} parent=1 // pred_check
      _
    $region35: #{tpu_custom_call.1} parent=1 // pred_check_branch
      %78 = sbr.rel (0) target = $region37
    $region36: #{tpu_custom_call.1} parent=1 // pred_region
      _
    $region37: #{tpu_custom_call.1} parent=1 // pred_fallthru
      _
    // Predicated region
    $region38: #{tpu_custom_call.1} parent=1 // pred_check
      _
    $region39: #{tpu_custom_call.1} parent=1 // pred_check_branch
      %80 = sbr.rel (0) target = $region41
    $region40: #{tpu_custom_call.1} parent=1 // pred_region
      %81 = dma.done [#allocation3], 256
    $region41: #{tpu_custom_call.1} parent=1 // pred_fallthru
      _
    // Predicated region
    $region42: #{tpu_custom_call.1} parent=1 // pred_check
      _
    $region43: #{tpu_custom_call.1} parent=1 // pred_check_branch
      %83 = sbr.rel (0) target = $region45
    $region44: #{tpu_custom_call.1} parent=1 // pred_region
      %84 = dma.done [#allocation6], 256
    $region45: #{tpu_custom_call.1} parent=1 // pred_fallthru
      _
    // Predicated region
    $region46: #{tpu_custom_call.1} parent=1 // pred_check
      _
    $region47: #{tpu_custom_call.1} parent=1 // pred_check_branch
      %86 = sbr.rel (0) target = $region49
    $region48: #{tpu_custom_call.1} parent=1 // pred_region
      %87 = dma.done [#allocation6], 512
    $region49: #{tpu_custom_call.1} parent=1 // pred_fallthru
      _
    // Predicated region
    $region50: #{tpu_custom_call.1} parent=1 // pred_check
      _
    $region51: #{tpu_custom_call.1} parent=1 // pred_check_branch
      %89 = sbr.rel (0) target = $region53
    $region52: #{tpu_custom_call.1} parent=1 // pred_region
      %90 = dma.done [#allocation9], 512
    $region53: #{tpu_custom_call.1} parent=1 // pred_fallthru
      _
    %v91 = vld [vmem:[#allocation2] sm:$0xff]
    %v92 = vld [vmem:[#allocation2 + $0x8] sm:$0xff]
    %v93 = vld [vmem:[%s1] sm:$0x1]
    %v94 = vld [vmem:[%s1 + $0x1] sm:$0x1]
    %v95 = vld [vmem:[#allocation5] sm:$0xff]
    %v96 = vld [vmem:[#allocation5 + $0x8] sm:$0xff]
    %vm97 = vcmask 261120
    %v98 = vsel %vm97, %v91, 0.0
    %99 = vadd.xlane.f32.xlu0 %v98
    %v100 = vpop.xlane.xlu0 %99
    %v101 = vsel %vm97, %v92, 0.0
    %102 = vadd.xlane.f32.xlu0 %v101
    %v103 = vpop.xlane.xlu0 %102
    %v104 = vrcp.pop 32.0
    %v105 = vmul.f32 %v100, %v104
    %v106 = vmul.f32 %v103, %v104
    %v107 = vsub.f32 %v91, %v105
    %v108 = vsub.f32 %v92, %v106
    %v109 = vmul.f32 %v107, %v107
    %v110 = vmul.f32 %v108, %v108
    %v111 = vsel %vm97, %v109, 0.0
    %112 = vadd.xlane.f32.xlu0 %v111
    %v113 = vpop.xlane.xlu0 %112
    %v114 = vsel %vm97, %v110, 0.0
    %115 = vadd.xlane.f32.xlu0 %v114
    %v116 = vpop.xlane.xlu0 %115
    %v117 = vmul.f32 %v113, %v104
    %v118 = vmul.f32 %v116, %v104
    %v119 = vadd.f32 %v117, 1e-06
    %v120 = vadd.f32 %v118, 1e-06
    %v121 = vrsqrt.pop %v119
    %v122 = vrsqrt.pop %v120
    %v123 = vmul.f32 %v107, %v121
    %v124 = vmul.f32 %v108, %v122
    %v125 = vlaneseq
    %v126 = vshrl.u32 %v125, 7
    %v127 = vsub.s32 0, %v126
    %v128 = vrot.slane %v95, %v127
    %v129 = vmul.f32 %v123, %v128
    %v130 = vmul.f32 %v124, %v128
    %v131 = vlaneseq
    %v132 = vshrl.u32 %v131, 7
    %v133 = vsub.s32 1, %v132
    %v134 = vrot.slane %v95, %v133
    %v135 = vadd.f32 %v129, %v134
    %v136 = vadd.f32 %v130, %v134
    %v137 = vld [vmem:[%s3] sm:$0xff]
    %v138 = vld [vmem:[%s3 + $0x8] sm:$0xff]
    %v139 = vld [vmem:[%s3 + $0x10] sm:$0xff]
    %v140 = vld [vmem:[%s3 + $0x18] sm:$0xff]
    %v141 = vlaneseq
    %v142 = vshrl.u32 %v141, 7
    %v143 = vsub.s32 2, %v142
    %v144 = vrot.slane %v95, %v143
    %v146 = vsel %vm97, %v135, 0
    %v149 = vsel %vm97, %v136, 0
    %151 = vmatprep.subr.mxu0 0.0
    %152 = vmatpush1.msra.mxu0 %v137
    %153 = vmatprep.subr.mxu0 0.0
    %154 = vmatpush1.msra.mxu0 %v138
    %155 = vmatprep.subr.mxu0 0.0
    %156 = vmatpush1.msra.mxu0 %v139
    %157 = vmatprep.subr.mxu0 0.0
    %158 = vmatpush1.msra.mxu0 %v140
    %159 = vmatprep.subr.mxu0 0.0
    %160 = vmatpush1.msra.mxu0 0.0
    %161 = vmatprep.subr.mxu0 0.0
    %162 = vmatpush1.msra.mxu0 0.0
    %163 = vmatprep.subr.mxu0 0.0
    %164 = vmatpush1.msra.mxu0 0.0
    %165 = vmatprep.subr.mxu0 0.0
    %166 = vmatpush1.msra.mxu0 0.0
    %167 = vmatprep.subr.mxu0 0.0
    %168 = vmatpush1.msra.mxu0 0.0
    %169 = vmatprep.subr.mxu0 0.0
    %170 = vmatpush1.msra.mxu0 0.0
    %171 = vmatprep.subr.mxu0 0.0
    %172 = vmatpush1.msra.mxu0 0.0
    %173 = vmatprep.subr.mxu0 0.0
    %174 = vmatpush1.msra.mxu0 0.0
    %175 = vmatprep.subr.mxu0 0.0
    %176 = vmatpush1.msra.mxu0 0.0
    %177 = vmatprep.subr.mxu0 0.0
    %178 = vmatpush1.msra.mxu0 0.0
    %179 = vmatprep.subr.mxu0 0.0
    %180 = vmatpush1.msra.mxu0 0.0
    %181 = vmatprep.subr.mxu0 0.0
    %182 = vmatpush1.msra.mxu0 0.0
    %183 = vmatprep.subr.mxu0 0.0
    %184 = vmatpush1.msra.mxu0 0.0
    %185 = vmatprep.subr.mxu0 0.0
    %186 = vmatpush1.msra.mxu0 0.0
    %187 = vmatprep.subr.mxu0 0.0
    %188 = vmatpush1.msra.mxu0 0.0
    %189 = vmatprep.subr.mxu0 0.0
    %190 = vmatpush1.msra.mxu0 0.0
    %191 = vmatprep.subr.mxu0 0.0
    %192 = vmatpush1.msra.mxu0 0.0
    %193 = vmatprep.subr.mxu0 0.0
    %194 = vmatpush1.msra.mxu0 0.0
    %195 = vmatprep.subr.mxu0 0.0
    %196 = vmatpush1.msra.mxu0 0.0
    %197 = vmatprep.subr.mxu0 0.0
    %198 = vmatpush1.msra.mxu0 0.0
    %199 = vmatprep.subr.mxu0 0.0
    %200 = vmatpush1.msra.mxu0 0.0
    %201 = vmatprep.subr.mxu0 0.0
    %202 = vmatpush1.msra.mxu0 0.0
    %203 = vmatprep.subr.mxu0 0.0
    %204 = vmatpush1.msra.mxu0 0.0
    %205 = vmatprep.subr.mxu0 0.0
    %206 = vmatpush1.msra.mxu0 0.0
    %207 = vmatprep.subr.mxu0 0.0
    %208 = vmatpush1.msra.mxu0 0.0
    %209 = vmatprep.subr.mxu0 0.0
    %210 = vmatpush1.msra.mxu0 0.0
    %211 = vmatprep.subr.mxu0 0.0
    %212 = vmatpush1.msra.mxu0 0.0
    %213 = vmatprep.subr.mxu0 0.0
    %214 = vmatpush1.msra.mxu0 0.0
    %215 = vmatprep.mubr.f32.mxu0 0.0
    %216 = vmatmul.mubr.f32.gmra.mrb[0].mxu0 %v146
    %v217 = vpop.f32.mrb[0].mxu0
    %v218 = vadd.f32 %v144, %v217
    %v219 = vpop.f32.mrb[0].mxu0
    %220 = vmatprep.mubr.f32.mxu0 0.0
    %221 = vmatmul.mubr.f32.gmra.mrb[0].mxu0 %v149
    %v222 = vpop.f32.mrb[0].mxu0
    %v223 = vadd.f32 %v144, %v222
    %v224 = vpop.f32.mrb[0].mxu0
    %225 = vdwg.mxu0
    %v226 = vld [vmem:[%s4] sm:$0xff]
    %v227 = vld [vmem:[%s4 + $0x8] sm:$0xff]
    %v228 = vld [vmem:[%s4 + $0x10] sm:$0xff]
    %v229 = vld [vmem:[%s4 + $0x18] sm:$0xff]
    %v230 = vlaneseq
    %v231 = vshrl.u32 %v230, 7
    %v232 = vsub.s32 3, %v231
    %v233 = vrot.slane %v95, %v232
    %234 = vmatprep.subr.mxu0 0.0
    %235 = vmatpush1.msra.mxu0 %v226
    %236 = vmatprep.subr.mxu0 0.0
    %237 = vmatpush1.msra.mxu0 %v227
    %238 = vmatprep.subr.mxu0 0.0
    %239 = vmatpush1.msra.mxu0 %v228
    %240 = vmatprep.subr.mxu0 0.0
    %241 = vmatpush1.msra.mxu0 %v229
    %242 = vmatprep.subr.mxu0 0.0
    %243 = vmatpush1.msra.mxu0 0.0
    %244 = vmatprep.subr.mxu0 0.0
    %245 = vmatpush1.msra.mxu0 0.0
    %246 = vmatprep.subr.mxu0 0.0
    %247 = vmatpush1.msra.mxu0 0.0
    %248 = vmatprep.subr.mxu0 0.0
    %249 = vmatpush1.msra.mxu0 0.0
    %250 = vmatprep.subr.mxu0 0.0
    %251 = vmatpush1.msra.mxu0 0.0
    %252 = vmatprep.subr.mxu0 0.0
    %253 = vmatpush1.msra.mxu0 0.0
    %254 = vmatprep.subr.mxu0 0.0
    %255 = vmatpush1.msra.mxu0 0.0
    %256 = vmatprep.subr.mxu0 0.0
    %257 = vmatpush1.msra.mxu0 0.0
    %258 = vmatprep.subr.mxu0 0.0
    %259 = vmatpush1.msra.mxu0 0.0
    %260 = vmatprep.subr.mxu0 0.0
    %261 = vmatpush1.msra.mxu0 0.0
    %262 = vmatprep.subr.mxu0 0.0
    %263 = vmatpush1.msra.mxu0 0.0
    %264 = vmatprep.subr.mxu0 0.0
    %265 = vmatpush1.msra.mxu0 0.0
    %266 = vmatprep.subr.mxu0 0.0
    %267 = vmatpush1.msra.mxu0 0.0
    %268 = vmatprep.subr.mxu0 0.0
    %269 = vmatpush1.msra.mxu0 0.0
    %270 = vmatprep.subr.mxu0 0.0
    %271 = vmatpush1.msra.mxu0 0.0
    %272 = vmatprep.subr.mxu0 0.0
    %273 = vmatpush1.msra.mxu0 0.0
    %274 = vmatprep.subr.mxu0 0.0
    %275 = vmatpush1.msra.mxu0 0.0
    %276 = vmatprep.subr.mxu0 0.0
    %277 = vmatpush1.msra.mxu0 0.0
    %278 = vmatprep.subr.mxu0 0.0
    %279 = vmatpush1.msra.mxu0 0.0
    %280 = vmatprep.subr.mxu0 0.0
    %281 = vmatpush1.msra.mxu0 0.0
    %282 = vmatprep.subr.mxu0 0.0
    %283 = vmatpush1.msra.mxu0 0.0
    %284 = vmatprep.subr.mxu0 0.0
    %285 = vmatpush1.msra.mxu0 0.0
    %286 = vmatprep.subr.mxu0 0.0
    %287 = vmatpush1.msra.mxu0 0.0
    %288 = vmatprep.subr.mxu0 0.0
    %289 = vmatpush1.msra.mxu0 0.0
    %290 = vmatprep.subr.mxu0 0.0
    %291 = vmatpush1.msra.mxu0 0.0
    %292 = vmatprep.subr.mxu0 0.0
    %293 = vmatpush1.msra.mxu0 0.0
    %294 = vmatprep.subr.mxu0 0.0
    %295 = vmatpush1.msra.mxu0 0.0
    %296 = vmatprep.subr.mxu0 0.0
    %297 = vmatpush1.msra.mxu0 0.0
    %298 = vmatprep.mubr.f32.mxu0 0.0
    %299 = vmatmul.mubr.f32.gmra.mrb[0].mxu0 %v146
    %v300 = vpop.f32.mrb[0].mxu0
    %v301 = vadd.f32 %v233, %v300
    %v302 = vpop.f32.mrb[0].mxu0
    %303 = vmatprep.mubr.f32.mxu0 0.0
    %304 = vmatmul.mubr.f32.gmra.mrb[0].mxu0 %v149
    %v305 = vpop.f32.mrb[0].mxu0
    %v306 = vadd.f32 %v233, %v305
    %v307 = vpop.f32.mrb[0].mxu0
    %308 = vdwg.mxu0
    %v309 = vld [vmem:[%s5] sm:$0xff]
    %v310 = vld [vmem:[%s5 + $0x8] sm:$0xff]
    %v311 = vld [vmem:[%s5 + $0x10] sm:$0xff]
    %v312 = vld [vmem:[%s5 + $0x18] sm:$0xff]
    %v313 = vlaneseq
    %v314 = vshrl.u32 %v313, 7
    %v315 = vsub.s32 4, %v314
    %v316 = vrot.slane %v95, %v315
    %317 = vmatprep.subr.mxu0 0.0
    %318 = vmatpush1.msra.mxu0 %v309
    %319 = vmatprep.subr.mxu0 0.0
    %320 = vmatpush1.msra.mxu0 %v310
    %321 = vmatprep.subr.mxu0 0.0
    %322 = vmatpush1.msra.mxu0 %v311
    %323 = vmatprep.subr.mxu0 0.0
    %324 = vmatpush1.msra.mxu0 %v312
    %325 = vmatprep.subr.mxu0 0.0
    %326 = vmatpush1.msra.mxu0 0.0
    %327 = vmatprep.subr.mxu0 0.0
    %328 = vmatpush1.msra.mxu0 0.0
    %329 = vmatprep.subr.mxu0 0.0
    %330 = vmatpush1.msra.mxu0 0.0
    %331 = vmatprep.subr.mxu0 0.0
    %332 = vmatpush1.msra.mxu0 0.0
    %333 = vmatprep.subr.mxu0 0.0
    %334 = vmatpush1.msra.mxu0 0.0
    %335 = vmatprep.subr.mxu0 0.0
    %336 = vmatpush1.msra.mxu0 0.0
    %337 = vmatprep.subr.mxu0 0.0
    %338 = vmatpush1.msra.mxu0 0.0
    %339 = vmatprep.subr.mxu0 0.0
    %340 = vmatpush1.msra.mxu0 0.0
    %341 = vmatprep.subr.mxu0 0.0
    %342 = vmatpush1.msra.mxu0 0.0
    %343 = vmatprep.subr.mxu0 0.0
    %344 = vmatpush1.msra.mxu0 0.0
    %345 = vmatprep.subr.mxu0 0.0
    %346 = vmatpush1.msra.mxu0 0.0
    %347 = vmatprep.subr.mxu0 0.0
    %348 = vmatpush1.msra.mxu0 0.0
    %349 = vmatprep.subr.mxu0 0.0
    %350 = vmatpush1.msra.mxu0 0.0
    %351 = vmatprep.subr.mxu0 0.0
    %352 = vmatpush1.msra.mxu0 0.0
    %353 = vmatprep.subr.mxu0 0.0
    %354 = vmatpush1.msra.mxu0 0.0
    %355 = vmatprep.subr.mxu0 0.0
    %356 = vmatpush1.msra.mxu0 0.0
    %357 = vmatprep.subr.mxu0 0.0
    %358 = vmatpush1.msra.mxu0 0.0
    %359 = vmatprep.subr.mxu0 0.0
    %360 = vmatpush1.msra.mxu0 0.0
    %361 = vmatprep.subr.mxu0 0.0
    %362 = vmatpush1.msra.mxu0 0.0
    %363 = vmatprep.subr.mxu0 0.0
    %364 = vmatpush1.msra.mxu0 0.0
    %365 = vmatprep.subr.mxu0 0.0
    %366 = vmatpush1.msra.mxu0 0.0
    %367 = vmatprep.subr.mxu0 0.0
    %368 = vmatpush1.msra.mxu0 0.0
    %369 = vmatprep.subr.mxu0 0.0
    %370 = vmatpush1.msra.mxu0 0.0
    %371 = vmatprep.subr.mxu0 0.0
    %372 = vmatpush1.msra.mxu0 0.0
    %373 = vmatprep.subr.mxu0 0.0
    %374 = vmatpush1.msra.mxu0 0.0
    %375 = vmatprep.subr.mxu0 0.0
    %376 = vmatpush1.msra.mxu0 0.0
    %377 = vmatprep.subr.mxu0 0.0
    %378 = vmatpush1.msra.mxu0 0.0
    %379 = vmatprep.subr.mxu0 0.0
    %380 = vmatpush1.msra.mxu0 0.0
    %381 = vmatprep.mubr.f32.mxu0 0.0
    %382 = vmatmul.mubr.f32.gmra.mrb[0].mxu0 %v146
    %v383 = vpop.f32.mrb[0].mxu0
    %v384 = vadd.f32 %v316, %v383
    %v385 = vpop.f32.mrb[0].mxu0
    %386 = vmatprep.mubr.f32.mxu0 0.0
    %387 = vmatmul.mubr.f32.gmra.mrb[0].mxu0 %v149
    %v388 = vpop.f32.mrb[0].mxu0
    %v389 = vadd.f32 %v316, %v388
    %v390 = vpop.f32.mrb[0].mxu0
    %391 = vdwg.mxu0
    %v392 = vlaneseq
    %v393 = vshrl.u32 %v392, 7
    %v394 = vlaneseq
    %v395 = vand.u32 %v394, 127
    %vm396 = vcmp.gt.s32.totalorder %v395, %v393
    %v397 = vld [vmem:[#allocation7] sm:$0xff]
    %v398 = vld [vmem:[#allocation7 + $0x8] sm:$0xff]
    %v399 = vld [vmem:[#allocation7 + $0x10] sm:$0xff]
    %v400 = vld [vmem:[#allocation7 + $0x18] sm:$0xff]
    %402 = vrot.lane.b32.xlu0 %v218, 120
    %v403 = vpop.permute.xlu0 %402
    %404 = vrot.lane.b32.xlu0 %v218, 112
    %v405 = vpop.permute.xlu0 %404
    %406 = vrot.lane.b32.xlu0 %v218, 104
    %v407 = vpop.permute.xlu0 %406
    %409 = vrot.lane.b32.xlu0 %v301, 120
    %v410 = vpop.permute.xlu0 %409
    %411 = vrot.lane.b32.xlu0 %v301, 112
    %v412 = vpop.permute.xlu0 %411
    %413 = vrot.lane.b32.xlu0 %v301, 104
    %v414 = vpop.permute.xlu0 %413
    %416 = vrot.lane.b32.xlu0 %v384, 120
    %v417 = vpop.permute.xlu0 %416
    %419 = vrot.lane.b32.xlu0 %v384, 112
    %v420 = vpop.permute.xlu0 %419
    %422 = vrot.lane.b32.xlu0 %v384, 104
    %v423 = vpop.permute.xlu0 %422
    %vm425 = vcmask 64512
    %v426 = vsel %vm425, %v218, 0
    %v428 = vsel %vm425, %v301, 0
    %430 = vmatprep.subr.mxu0 0.0
    %431 = vmatpush1.xpose.msra.mxu0 %v428
    %432 = vmatprep.subr.mxu0 0.0
    %433 = vmatpush1.xpose.msra.mxu0 0.0
    %434 = vmatprep.subr.mxu0 0.0
    %435 = vmatpush1.xpose.msra.mxu0 0.0
    %436 = vmatprep.subr.mxu0 0.0
    %437 = vmatpush1.xpose.msra.mxu0 0.0
    %438 = vmatprep.subr.mxu0 0.0
    %439 = vmatpush1.xpose.msra.mxu0 0.0
    %440 = vmatprep.subr.mxu0 0.0
    %441 = vmatpush1.xpose.msra.mxu0 0.0
    %442 = vmatprep.subr.mxu0 0.0
    %443 = vmatpush1.xpose.msra.mxu0 0.0
    %444 = vmatprep.subr.mxu0 0.0
    %445 = vmatpush1.xpose.msra.mxu0 0.0
    %446 = vmatprep.subr.mxu0 0.0
    %447 = vmatpush1.xpose.msra.mxu0 0.0
    %448 = vmatprep.subr.mxu0 0.0
    %449 = vmatpush1.xpose.msra.mxu0 0.0
    %450 = vmatprep.subr.mxu0 0.0
    %451 = vmatpush1.xpose.msra.mxu0 0.0
    %452 = vmatprep.subr.mxu0 0.0
    %453 = vmatpush1.xpose.msra.mxu0 0.0
    %454 = vmatprep.subr.mxu0 0.0
    %455 = vmatpush1.xpose.msra.mxu0 0.0
    %456 = vmatprep.subr.mxu0 0.0
    %457 = vmatpush1.xpose.msra.mxu0 0.0
    %458 = vmatprep.subr.mxu0 0.0
    %459 = vmatpush1.xpose.msra.mxu0 0.0
    %460 = vmatprep.subr.mxu0 0.0
    %461 = vmatpush1.xpose.msra.mxu0 0.0
    %462 = vmatprep.subr.mxu0 0.0
    %463 = vmatpush1.xpose.msra.mxu0 0.0
    %464 = vmatprep.subr.mxu0 0.0
    %465 = vmatpush1.xpose.msra.mxu0 0.0
    %466 = vmatprep.subr.mxu0 0.0
    %467 = vmatpush1.xpose.msra.mxu0 0.0
    %468 = vmatprep.subr.mxu0 0.0
    %469 = vmatpush1.xpose.msra.mxu0 0.0
    %470 = vmatprep.subr.mxu0 0.0
    %471 = vmatpush1.xpose.msra.mxu0 0.0
    %472 = vmatprep.subr.mxu0 0.0
    %473 = vmatpush1.xpose.msra.mxu0 0.0
    %474 = vmatprep.subr.mxu0 0.0
    %475 = vmatpush1.xpose.msra.mxu0 0.0
    %476 = vmatprep.subr.mxu0 0.0
    %477 = vmatpush1.xpose.msra.mxu0 0.0
    %478 = vmatprep.subr.mxu0 0.0
    %479 = vmatpush1.xpose.msra.mxu0 0.0
    %480 = vmatprep.subr.mxu0 0.0
    %481 = vmatpush1.xpose.msra.mxu0 0.0
    %482 = vmatprep.subr.mxu0 0.0
    %483 = vmatpush1.xpose.msra.mxu0 0.0
    %484 = vmatprep.subr.mxu0 0.0
    %485 = vmatpush1.xpose.msra.mxu0 0.0
    %486 = vmatprep.subr.mxu0 0.0
    %487 = vmatpush1.xpose.msra.mxu0 0.0
    %488 = vmatprep.subr.mxu0 0.0
    %489 = vmatpush1.xpose.msra.mxu0 0.0
    %490 = vmatprep.subr.mxu0 0.0
    %491 = vmatpush1.xpose.msra.mxu0 0.0
    %492 = vmatprep.subr.mxu0 0.0
    %493 = vmatpush1.xpose.msra.mxu0 0.0
    %494 = vmatprep.mubr.f32.mxu0 0.0
    %495 = vmatmul.mubr.f32.gmra.mrb[0].mxu0 %v426
    %v496 = vpop.f32.mrb[0].mxu0
    %v497 = vadd.f32 0.0, %v496
    %v498 = vpop.f32.mrb[0].mxu0
    %499 = vdwg.mxu0
    %v500 = vsel %vm425, %v403, 0
    %v502 = vsel %vm425, %v410, 0
    %504 = vmatprep.subr.mxu0 0.0
    %505 = vmatpush1.xpose.msra.mxu0 %v502
    %506 = vmatprep.subr.mxu0 0.0
    %507 = vmatpush1.xpose.msra.mxu0 0.0
    %508 = vmatprep.subr.mxu0 0.0
    %509 = vmatpush1.xpose.msra.mxu0 0.0
    %510 = vmatprep.subr.mxu0 0.0
    %511 = vmatpush1.xpose.msra.mxu0 0.0
    %512 = vmatprep.subr.mxu0 0.0
    %513 = vmatpush1.xpose.msra.mxu0 0.0
    %514 = vmatprep.subr.mxu0 0.0
    %515 = vmatpush1.xpose.msra.mxu0 0.0
    %516 = vmatprep.subr.mxu0 0.0
    %517 = vmatpush1.xpose.msra.mxu0 0.0
    %518 = vmatprep.subr.mxu0 0.0
    %519 = vmatpush1.xpose.msra.mxu0 0.0
    %520 = vmatprep.subr.mxu0 0.0
    %521 = vmatpush1.xpose.msra.mxu0 0.0
    %522 = vmatprep.subr.mxu0 0.0
    %523 = vmatpush1.xpose.msra.mxu0 0.0
    %524 = vmatprep.subr.mxu0 0.0
    %525 = vmatpush1.xpose.msra.mxu0 0.0
    %526 = vmatprep.subr.mxu0 0.0
    %527 = vmatpush1.xpose.msra.mxu0 0.0
    %528 = vmatprep.subr.mxu0 0.0
    %529 = vmatpush1.xpose.msra.mxu0 0.0
    %530 = vmatprep.subr.mxu0 0.0
    %531 = vmatpush1.xpose.msra.mxu0 0.0
    %532 = vmatprep.subr.mxu0 0.0
    %533 = vmatpush1.xpose.msra.mxu0 0.0
    %534 = vmatprep.subr.mxu0 0.0
    %535 = vmatpush1.xpose.msra.mxu0 0.0
    %536 = vmatprep.subr.mxu0 0.0
    %537 = vmatpush1.xpose.msra.mxu0 0.0
    %538 = vmatprep.subr.mxu0 0.0
    %539 = vmatpush1.xpose.msra.mxu0 0.0
    %540 = vmatprep.subr.mxu0 0.0
    %541 = vmatpush1.xpose.msra.mxu0 0.0
    %542 = vmatprep.subr.mxu0 0.0
    %543 = vmatpush1.xpose.msra.mxu0 0.0
    %544 = vmatprep.subr.mxu0 0.0
    %545 = vmatpush1.xpose.msra.mxu0 0.0
    %546 = vmatprep.subr.mxu0 0.0
    %547 = vmatpush1.xpose.msra.mxu0 0.0
    %548 = vmatprep.subr.mxu0 0.0
    %549 = vmatpush1.xpose.msra.mxu0 0.0
    %550 = vmatprep.subr.mxu0 0.0
    %551 = vmatpush1.xpose.msra.mxu0 0.0
    %552 = vmatprep.subr.mxu0 0.0
    %553 = vmatpush1.xpose.msra.mxu0 0.0
    %554 = vmatprep.subr.mxu0 0.0
    %555 = vmatpush1.xpose.msra.mxu0 0.0
    %556 = vmatprep.subr.mxu0 0.0
    %557 = vmatpush1.xpose.msra.mxu0 0.0
    %558 = vmatprep.subr.mxu0 0.0
    %559 = vmatpush1.xpose.msra.mxu0 0.0
    %560 = vmatprep.subr.mxu0 0.0
    %561 = vmatpush1.xpose.msra.mxu0 0.0
    %562 = vmatprep.subr.mxu0 0.0
    %563 = vmatpush1.xpose.msra.mxu0 0.0
    %564 = vmatprep.subr.mxu0 0.0
    %565 = vmatpush1.xpose.msra.mxu0 0.0
    %566 = vmatprep.subr.mxu0 0.0
    %567 = vmatpush1.xpose.msra.mxu0 0.0
    %568 = vmatprep.mubr.f32.mxu0 0.0
    %569 = vmatmul.mubr.f32.gmra.mrb[0].mxu0 %v500
    %v570 = vpop.f32.mrb[0].mxu0
    %v571 = vadd.f32 0.0, %v570
    %v572 = vpop.f32.mrb[0].mxu0
    %573 = vdwg.mxu0
    %v574 = vsel %vm425, %v405, 0
    %v576 = vsel %vm425, %v412, 0
    %578 = vmatprep.subr.mxu0 0.0
    %579 = vmatpush1.xpose.msra.mxu0 %v576
    %580 = vmatprep.subr.mxu0 0.0
    %581 = vmatpush1.xpose.msra.mxu0 0.0
    %582 = vmatprep.subr.mxu0 0.0
    %583 = vmatpush1.xpose.msra.mxu0 0.0
    %584 = vmatprep.subr.mxu0 0.0
    %585 = vmatpush1.xpose.msra.mxu0 0.0
    %586 = vmatprep.subr.mxu0 0.0
    %587 = vmatpush1.xpose.msra.mxu0 0.0
    %588 = vmatprep.subr.mxu0 0.0
    %589 = vmatpush1.xpose.msra.mxu0 0.0
    %590 = vmatprep.subr.mxu0 0.0
    %591 = vmatpush1.xpose.msra.mxu0 0.0
    %592 = vmatprep.subr.mxu0 0.0
    %593 = vmatpush1.xpose.msra.mxu0 0.0
    %594 = vmatprep.subr.mxu0 0.0
    %595 = vmatpush1.xpose.msra.mxu0 0.0
    %596 = vmatprep.subr.mxu0 0.0
    %597 = vmatpush1.xpose.msra.mxu0 0.0
    %598 = vmatprep.subr.mxu0 0.0
    %599 = vmatpush1.xpose.msra.mxu0 0.0
    %600 = vmatprep.subr.mxu0 0.0
    %601 = vmatpush1.xpose.msra.mxu0 0.0
    %602 = vmatprep.subr.mxu0 0.0
    %603 = vmatpush1.xpose.msra.mxu0 0.0
    %604 = vmatprep.subr.mxu0 0.0
    %605 = vmatpush1.xpose.msra.mxu0 0.0
    %606 = vmatprep.subr.mxu0 0.0
    %607 = vmatpush1.xpose.msra.mxu0 0.0
    %608 = vmatprep.subr.mxu0 0.0
    %609 = vmatpush1.xpose.msra.mxu0 0.0
    %610 = vmatprep.subr.mxu0 0.0
    %611 = vmatpush1.xpose.msra.mxu0 0.0
    %612 = vmatprep.subr.mxu0 0.0
    %613 = vmatpush1.xpose.msra.mxu0 0.0
    %614 = vmatprep.subr.mxu0 0.0
    %615 = vmatpush1.xpose.msra.mxu0 0.0
    %616 = vmatprep.subr.mxu0 0.0
    %617 = vmatpush1.xpose.msra.mxu0 0.0
    %618 = vmatprep.subr.mxu0 0.0
    %619 = vmatpush1.xpose.msra.mxu0 0.0
    %620 = vmatprep.subr.mxu0 0.0
    %621 = vmatpush1.xpose.msra.mxu0 0.0
    %622 = vmatprep.subr.mxu0 0.0
    %623 = vmatpush1.xpose.msra.mxu0 0.0
    %624 = vmatprep.subr.mxu0 0.0
    %625 = vmatpush1.xpose.msra.mxu0 0.0
    %626 = vmatprep.subr.mxu0 0.0
    %627 = vmatpush1.xpose.msra.mxu0 0.0
    %628 = vmatprep.subr.mxu0 0.0
    %629 = vmatpush1.xpose.msra.mxu0 0.0
    %630 = vmatprep.subr.mxu0 0.0
    %631 = vmatpush1.xpose.msra.mxu0 0.0
    %632 = vmatprep.subr.mxu0 0.0
    %633 = vmatpush1.xpose.msra.mxu0 0.0
    %634 = vmatprep.subr.mxu0 0.0
    %635 = vmatpush1.xpose.msra.mxu0 0.0
    %636 = vmatprep.subr.mxu0 0.0
    %637 = vmatpush1.xpose.msra.mxu0 0.0
    %638 = vmatprep.subr.mxu0 0.0
    %639 = vmatpush1.xpose.msra.mxu0 0.0
    %640 = vmatprep.subr.mxu0 0.0
    %641 = vmatpush1.xpose.msra.mxu0 0.0
    %642 = vmatprep.mubr.f32.mxu0 0.0
    %643 = vmatmul.mubr.f32.gmra.mrb[0].mxu0 %v574
    %v644 = vpop.f32.mrb[0].mxu0
    %v645 = vadd.f32 0.0, %v644
    %v646 = vpop.f32.mrb[0].mxu0
    %647 = vdwg.mxu0
    %v648 = vsel %vm425, %v407, 0
    %v650 = vsel %vm425, %v414, 0
    %652 = vmatprep.subr.mxu0 0.0
    %653 = vmatpush1.xpose.msra.mxu0 %v650
    %654 = vmatprep.subr.mxu0 0.0
    %655 = vmatpush1.xpose.msra.mxu0 0.0
    %656 = vmatprep.subr.mxu0 0.0
    %657 = vmatpush1.xpose.msra.mxu0 0.0
    %658 = vmatprep.subr.mxu0 0.0
    %659 = vmatpush1.xpose.msra.mxu0 0.0
    %660 = vmatprep.subr.mxu0 0.0
    %661 = vmatpush1.xpose.msra.mxu0 0.0
    %662 = vmatprep.subr.mxu0 0.0
    %663 = vmatpush1.xpose.msra.mxu0 0.0
    %664 = vmatprep.subr.mxu0 0.0
    %665 = vmatpush1.xpose.msra.mxu0 0.0
    %666 = vmatprep.subr.mxu0 0.0
    %667 = vmatpush1.xpose.msra.mxu0 0.0
    %668 = vmatprep.subr.mxu0 0.0
    %669 = vmatpush1.xpose.msra.mxu0 0.0
    %670 = vmatprep.subr.mxu0 0.0
    %671 = vmatpush1.xpose.msra.mxu0 0.0
    %672 = vmatprep.subr.mxu0 0.0
    %673 = vmatpush1.xpose.msra.mxu0 0.0
    %674 = vmatprep.subr.mxu0 0.0
    %675 = vmatpush1.xpose.msra.mxu0 0.0
    %676 = vmatprep.subr.mxu0 0.0
    %677 = vmatpush1.xpose.msra.mxu0 0.0
    %678 = vmatprep.subr.mxu0 0.0
    %679 = vmatpush1.xpose.msra.mxu0 0.0
    %680 = vmatprep.subr.mxu0 0.0
    %681 = vmatpush1.xpose.msra.mxu0 0.0
    %682 = vmatprep.subr.mxu0 0.0
    %683 = vmatpush1.xpose.msra.mxu0 0.0
    %684 = vmatprep.subr.mxu0 0.0
    %685 = vmatpush1.xpose.msra.mxu0 0.0
    %686 = vmatprep.subr.mxu0 0.0
    %687 = vmatpush1.xpose.msra.mxu0 0.0
    %688 = vmatprep.subr.mxu0 0.0
    %689 = vmatpush1.xpose.msra.mxu0 0.0
    %690 = vmatprep.subr.mxu0 0.0
    %691 = vmatpush1.xpose.msra.mxu0 0.0
    %692 = vmatprep.subr.mxu0 0.0
    %693 = vmatpush1.xpose.msra.mxu0 0.0
    %694 = vmatprep.subr.mxu0 0.0
    %695 = vmatpush1.xpose.msra.mxu0 0.0
    %696 = vmatprep.subr.mxu0 0.0
    %697 = vmatpush1.xpose.msra.mxu0 0.0
    %698 = vmatprep.subr.mxu0 0.0
    %699 = vmatpush1.xpose.msra.mxu0 0.0
    %700 = vmatprep.subr.mxu0 0.0
    %701 = vmatpush1.xpose.msra.mxu0 0.0
    %702 = vmatprep.subr.mxu0 0.0
    %703 = vmatpush1.xpose.msra.mxu0 0.0
    %704 = vmatprep.subr.mxu0 0.0
    %705 = vmatpush1.xpose.msra.mxu0 0.0
    %706 = vmatprep.subr.mxu0 0.0
    %707 = vmatpush1.xpose.msra.mxu0 0.0
    %708 = vmatprep.subr.mxu0 0.0
    %709 = vmatpush1.xpose.msra.mxu0 0.0
    %710 = vmatprep.subr.mxu0 0.0
    %711 = vmatpush1.xpose.msra.mxu0 0.0
    %712 = vmatprep.subr.mxu0 0.0
    %713 = vmatpush1.xpose.msra.mxu0 0.0
    %714 = vmatprep.subr.mxu0 0.0
    %715 = vmatpush1.xpose.msra.mxu0 0.0
    %716 = vmatprep.mubr.f32.mxu0 0.0
    %717 = vmatmul.mubr.f32.gmra.mrb[0].mxu0 %v648
    %v718 = vpop.f32.mrb[0].mxu0
    %v719 = vadd.f32 0.0, %v718
    %v720 = vpop.f32.mrb[0].mxu0
    %721 = vdwg.mxu0
    %vm722 = vcmp.gt.s32.totalorder %v93, 0
    %v723 = vsel %vm722, 1, 0
    %v724 = vlaneseq
    %v725 = vshrl.u32 %v724, 7
    %v726 = vsub.s32 0, %v725
    %v727 = vrot.slane %v723, %v726
    %vm728 = vcmp.eq.s32.totalorder %v727, 1
    %vm729 = vmor %vm396, %vm728
    %v730 = vsel %vm729, 1, 0
    %vm731 = vcmp.eq.s32.totalorder %v730, 1
    %v732 = vsel %vm731, -1e+18, %v497
    %v733 = vsel %vm731, -1e+18, %v571
    %v734 = vsel %vm731, -1e+18, %v645
    %v735 = vsel %vm731, -1e+18, %v719
    %v736 = vsel %vm425, %v732, -inf
    %737 = vmax.xlane.f32.xlu0 %v736
    %v738 = vpop.xlane.xlu0 %737
    %v739 = vsel %vm425, %v733, -inf
    %740 = vmax.xlane.f32.xlu0 %v739
    %v741 = vpop.xlane.xlu0 %740
    %v742 = vsel %vm425, %v734, -inf
    %743 = vmax.xlane.f32.xlu0 %v742
    %v744 = vpop.xlane.xlu0 %743
    %v745 = vsel %vm425, %v735, -inf
    %746 = vmax.xlane.f32.xlu0 %v745
    %v747 = vpop.xlane.xlu0 %746
    %v748 = vsub.f32 %v732, %v738
    %v749 = vsub.f32 %v733, %v741
    %v750 = vsub.f32 %v734, %v744
    %v751 = vsub.f32 %v735, %v747
    %v752 = vmul.f32 %v748, 1.442695
    %v753 = vpow.pop %v752
    %v754 = vmul.f32 %v749, 1.442695
    %v755 = vpow.pop %v754
    %v756 = vmul.f32 %v750, 1.442695
    %v757 = vpow.pop %v756
    %v758 = vmul.f32 %v751, 1.442695
    %v759 = vpow.pop %v758
    %v760 = vsel %vm425, %v753, 0.0
    %761 = vadd.xlane.f32.xlu0 %v760
    %v762 = vpop.xlane.xlu0 %761
    %v763 = vsel %vm425, %v755, 0.0
    %764 = vadd.xlane.f32.xlu0 %v763
    %v765 = vpop.xlane.xlu0 %764
    %v766 = vsel %vm425, %v757, 0.0
    %767 = vadd.xlane.f32.xlu0 %v766
    %v768 = vpop.xlane.xlu0 %767
    %v769 = vsel %vm425, %v759, 0.0
    %770 = vadd.xlane.f32.xlu0 %v769
    %v771 = vpop.xlane.xlu0 %770
    %v772 = vrcp.pop %v762
    %v773 = vrcp.pop %v765
    %v774 = vrcp.pop %v768
    %v775 = vrcp.pop %v771
    %v776 = vmul.f32 %v753, %v772
    %v777 = vmul.f32 %v755, %v773
    %v778 = vmul.f32 %v757, %v774
    %v779 = vmul.f32 %v759, %v775
    %780 = vst.msk [vmem:[#allocation11] sm:$0xff] %vm425, %v776
    %v782 = vsel %vm425, %v776, 0
    %784 = vmatprep.subr.mxu0 0.0
    %785 = vmatpush1.msra.mxu0 %v384
    %786 = vmatprep.subr.mxu0 0.0
    %787 = vmatpush1.msra.mxu0 0.0
    %788 = vmatprep.subr.mxu0 0.0
    %789 = vmatpush1.msra.mxu0 0.0
    %790 = vmatprep.subr.mxu0 0.0
    %791 = vmatpush1.msra.mxu0 0.0
    %792 = vmatprep.subr.mxu0 0.0
    %793 = vmatpush1.msra.mxu0 0.0
    %794 = vmatprep.subr.mxu0 0.0
    %795 = vmatpush1.msra.mxu0 0.0
    %796 = vmatprep.subr.mxu0 0.0
    %797 = vmatpush1.msra.mxu0 0.0
    %798 = vmatprep.subr.mxu0 0.0
    %799 = vmatpush1.msra.mxu0 0.0
    %800 = vmatprep.subr.mxu0 0.0
    %801 = vmatpush1.msra.mxu0 0.0
    %802 = vmatprep.subr.mxu0 0.0
    %803 = vmatpush1.msra.mxu0 0.0
    %804 = vmatprep.subr.mxu0 0.0
    %805 = vmatpush1.msra.mxu0 0.0
    %806 = vmatprep.subr.mxu0 0.0
    %807 = vmatpush1.msra.mxu0 0.0
    %808 = vmatprep.subr.mxu0 0.0
    %809 = vmatpush1.msra.mxu0 0.0
    %810 = vmatprep.subr.mxu0 0.0
    %811 = vmatpush1.msra.mxu0 0.0
    %812 = vmatprep.subr.mxu0 0.0
    %813 = vmatpush1.msra.mxu0 0.0
    %814 = vmatprep.subr.mxu0 0.0
    %815 = vmatpush1.msra.mxu0 0.0
    %816 = vmatprep.subr.mxu0 0.0
    %817 = vmatpush1.msra.mxu0 0.0
    %818 = vmatprep.subr.mxu0 0.0
    %819 = vmatpush1.msra.mxu0 0.0
    %820 = vmatprep.subr.mxu0 0.0
    %821 = vmatpush1.msra.mxu0 0.0
    %822 = vmatprep.subr.mxu0 0.0
    %823 = vmatpush1.msra.mxu0 0.0
    %824 = vmatprep.subr.mxu0 0.0
    %825 = vmatpush1.msra.mxu0 0.0
    %826 = vmatprep.subr.mxu0 0.0
    %827 = vmatpush1.msra.mxu0 0.0
    %828 = vmatprep.subr.mxu0 0.0
    %829 = vmatpush1.msra.mxu0 0.0
    %830 = vmatprep.subr.mxu0 0.0
    %831 = vmatpush1.msra.mxu0 0.0
    %832 = vmatprep.subr.mxu0 0.0
    %833 = vmatpush1.msra.mxu0 0.0
    %834 = vmatprep.subr.mxu0 0.0
    %835 = vmatpush1.msra.mxu0 0.0
    %836 = vmatprep.subr.mxu0 0.0
    %837 = vmatpush1.msra.mxu0 0.0
    %838 = vmatprep.subr.mxu0 0.0
    %839 = vmatpush1.msra.mxu0 0.0
    %840 = vmatprep.subr.mxu0 0.0
    %841 = vmatpush1.msra.mxu0 0.0
    %842 = vmatprep.subr.mxu0 0.0
    %843 = vmatpush1.msra.mxu0 0.0
    %844 = vmatprep.subr.mxu0 0.0
    %845 = vmatpush1.msra.mxu0 0.0
    %846 = vmatprep.subr.mxu0 0.0
    %847 = vmatpush1.msra.mxu0 0.0
    %848 = vmatprep.mubr.f32.mxu0 0.0
    %849 = vmatmul.mubr.f32.gmra.mrb[0].mxu0 %v782
    %v850 = vpop.f32.mrb[0].mxu0
    %v851 = vadd.f32 0.0, %v850
    %v852 = vpop.f32.mrb[0].mxu0
    %853 = vdwg.mxu0
    %v855 = vsel %vm425, %v777, 0
    %857 = vmatprep.subr.mxu0 0.0
    %858 = vmatpush1.msra.mxu0 %v417
    %859 = vmatprep.subr.mxu0 0.0
    %860 = vmatpush1.msra.mxu0 0.0
    %861 = vmatprep.subr.mxu0 0.0
    %862 = vmatpush1.msra.mxu0 0.0
    %863 = vmatprep.subr.mxu0 0.0
    %864 = vmatpush1.msra.mxu0 0.0
    %865 = vmatprep.subr.mxu0 0.0
    %866 = vmatpush1.msra.mxu0 0.0
    %867 = vmatprep.subr.mxu0 0.0
    %868 = vmatpush1.msra.mxu0 0.0
    %869 = vmatprep.subr.mxu0 0.0
    %870 = vmatpush1.msra.mxu0 0.0
    %871 = vmatprep.subr.mxu0 0.0
    %872 = vmatpush1.msra.mxu0 0.0
    %873 = vmatprep.subr.mxu0 0.0
    %874 = vmatpush1.msra.mxu0 0.0
    %875 = vmatprep.subr.mxu0 0.0
    %876 = vmatpush1.msra.mxu0 0.0
    %877 = vmatprep.subr.mxu0 0.0
    %878 = vmatpush1.msra.mxu0 0.0
    %879 = vmatprep.subr.mxu0 0.0
    %880 = vmatpush1.msra.mxu0 0.0
    %881 = vmatprep.subr.mxu0 0.0
    %882 = vmatpush1.msra.mxu0 0.0
    %883 = vmatprep.subr.mxu0 0.0
    %884 = vmatpush1.msra.mxu0 0.0
    %885 = vmatprep.subr.mxu0 0.0
    %886 = vmatpush1.msra.mxu0 0.0
    %887 = vmatprep.subr.mxu0 0.0
    %888 = vmatpush1.msra.mxu0 0.0
    %889 = vmatprep.subr.mxu0 0.0
    %890 = vmatpush1.msra.mxu0 0.0
    %891 = vmatprep.subr.mxu0 0.0
    %892 = vmatpush1.msra.mxu0 0.0
    %893 = vmatprep.subr.mxu0 0.0
    %894 = vmatpush1.msra.mxu0 0.0
    %895 = vmatprep.subr.mxu0 0.0
    %896 = vmatpush1.msra.mxu0 0.0
    %897 = vmatprep.subr.mxu0 0.0
    %898 = vmatpush1.msra.mxu0 0.0
    %899 = vmatprep.subr.mxu0 0.0
    %900 = vmatpush1.msra.mxu0 0.0
    %901 = vmatprep.subr.mxu0 0.0
    %902 = vmatpush1.msra.mxu0 0.0
    %903 = vmatprep.subr.mxu0 0.0
    %904 = vmatpush1.msra.mxu0 0.0
    %905 = vmatprep.subr.mxu0 0.0
    %906 = vmatpush1.msra.mxu0 0.0
    %907 = vmatprep.subr.mxu0 0.0
    %908 = vmatpush1.msra.mxu0 0.0
    %909 = vmatprep.subr.mxu0 0.0
    %910 = vmatpush1.msra.mxu0 0.0
    %911 = vmatprep.subr.mxu0 0.0
    %912 = vmatpush1.msra.mxu0 0.0
    %913 = vmatprep.subr.mxu0 0.0
    %914 = vmatpush1.msra.mxu0 0.0
    %915 = vmatprep.subr.mxu0 0.0
    %916 = vmatpush1.msra.mxu0 0.0
    %917 = vmatprep.subr.mxu0 0.0
    %918 = vmatpush1.msra.mxu0 0.0
    %919 = vmatprep.subr.mxu0 0.0
    %920 = vmatpush1.msra.mxu0 0.0
    %921 = vmatprep.mubr.f32.mxu0 0.0
    %922 = vmatmul.mubr.f32.gmra.mrb[0].mxu0 %v855
    %v923 = vpop.f32.mrb[0].mxu0
    %v924 = vadd.f32 0.0, %v923
    %v925 = vpop.f32.mrb[0].mxu0
    %926 = vdwg.mxu0
    %v928 = vsel %vm425, %v778, 0
    %930 = vmatprep.subr.mxu0 0.0
    %931 = vmatpush1.msra.mxu0 %v420
    %932 = vmatprep.subr.mxu0 0.0
    %933 = vmatpush1.msra.mxu0 0.0
    %934 = vmatprep.subr.mxu0 0.0
    %935 = vmatpush1.msra.mxu0 0.0
    %936 = vmatprep.subr.mxu0 0.0
    %937 = vmatpush1.msra.mxu0 0.0
    %938 = vmatprep.subr.mxu0 0.0
    %939 = vmatpush1.msra.mxu0 0.0
    %940 = vmatprep.subr.mxu0 0.0
    %941 = vmatpush1.msra.mxu0 0.0
    %942 = vmatprep.subr.mxu0 0.0
    %943 = vmatpush1.msra.mxu0 0.0
    %944 = vmatprep.subr.mxu0 0.0
    %945 = vmatpush1.msra.mxu0 0.0
    %946 = vmatprep.subr.mxu0 0.0
    %947 = vmatpush1.msra.mxu0 0.0
    %948 = vmatprep.subr.mxu0 0.0
    %949 = vmatpush1.msra.mxu0 0.0
    %950 = vmatprep.subr.mxu0 0.0
    %951 = vmatpush1.msra.mxu0 0.0
    %952 = vmatprep.subr.mxu0 0.0
    %953 = vmatpush1.msra.mxu0 0.0
    %954 = vmatprep.subr.mxu0 0.0
    %955 = vmatpush1.msra.mxu0 0.0
    %956 = vmatprep.subr.mxu0 0.0
    %957 = vmatpush1.msra.mxu0 0.0
    %958 = vmatprep.subr.mxu0 0.0
    %959 = vmatpush1.msra.mxu0 0.0
    %960 = vmatprep.subr.mxu0 0.0
    %961 = vmatpush1.msra.mxu0 0.0
    %962 = vmatprep.subr.mxu0 0.0
    %963 = vmatpush1.msra.mxu0 0.0
    %964 = vmatprep.subr.mxu0 0.0
    %965 = vmatpush1.msra.mxu0 0.0
    %966 = vmatprep.subr.mxu0 0.0
    %967 = vmatpush1.msra.mxu0 0.0
    %968 = vmatprep.subr.mxu0 0.0
    %969 = vmatpush1.msra.mxu0 0.0
    %970 = vmatprep.subr.mxu0 0.0
    %971 = vmatpush1.msra.mxu0 0.0
    %972 = vmatprep.subr.mxu0 0.0
    %973 = vmatpush1.msra.mxu0 0.0
    %974 = vmatprep.subr.mxu0 0.0
    %975 = vmatpush1.msra.mxu0 0.0
    %976 = vmatprep.subr.mxu0 0.0
    %977 = vmatpush1.msra.mxu0 0.0
    %978 = vmatprep.subr.mxu0 0.0
    %979 = vmatpush1.msra.mxu0 0.0
    %980 = vmatprep.subr.mxu0 0.0
    %981 = vmatpush1.msra.mxu0 0.0
    %982 = vmatprep.subr.mxu0 0.0
    %983 = vmatpush1.msra.mxu0 0.0
    %984 = vmatprep.subr.mxu0 0.0
    %985 = vmatpush1.msra.mxu0 0.0
    %986 = vmatprep.subr.mxu0 0.0
    %987 = vmatpush1.msra.mxu0 0.0
    %988 = vmatprep.subr.mxu0 0.0
    %989 = vmatpush1.msra.mxu0 0.0
    %990 = vmatprep.subr.mxu0 0.0
    %991 = vmatpush1.msra.mxu0 0.0
    %992 = vmatprep.subr.mxu0 0.0
    %993 = vmatpush1.msra.mxu0 0.0
    %994 = vmatprep.mubr.f32.mxu0 0.0
    %995 = vmatmul.mubr.f32.gmra.mrb[0].mxu0 %v928
    %v996 = vpop.f32.mrb[0].mxu0
    %v997 = vadd.f32 0.0, %v996
    %v998 = vpop.f32.mrb[0].mxu0
    %999 = vdwg.mxu0
    %v1001 = vsel %vm425, %v779, 0
    %1003 = vmatprep.subr.mxu0 0.0
    %1004 = vmatpush1.msra.mxu0 %v423
    %1005 = vmatprep.subr.mxu0 0.0
    %1006 = vmatpush1.msra.mxu0 0.0
    %1007 = vmatprep.subr.mxu0 0.0
    %1008 = vmatpush1.msra.mxu0 0.0
    %1009 = vmatprep.subr.mxu0 0.0
    %1010 = vmatpush1.msra.mxu0 0.0
    %1011 = vmatprep.subr.mxu0 0.0
    %1012 = vmatpush1.msra.mxu0 0.0
    %1013 = vmatprep.subr.mxu0 0.0
    %1014 = vmatpush1.msra.mxu0 0.0
    %1015 = vmatprep.subr.mxu0 0.0
    %1016 = vmatpush1.msra.mxu0 0.0
    %1017 = vmatprep.subr.mxu0 0.0
    %1018 = vmatpush1.msra.mxu0 0.0
    %1019 = vmatprep.subr.mxu0 0.0
    %1020 = vmatpush1.msra.mxu0 0.0
    %1021 = vmatprep.subr.mxu0 0.0
    %1022 = vmatpush1.msra.mxu0 0.0
    %1023 = vmatprep.subr.mxu0 0.0
    %1024 = vmatpush1.msra.mxu0 0.0
    %1025 = vmatprep.subr.mxu0 0.0
    %1026 = vmatpush1.msra.mxu0 0.0
    %1027 = vmatprep.subr.mxu0 0.0
    %1028 = vmatpush1.msra.mxu0 0.0
    %1029 = vmatprep.subr.mxu0 0.0
    %1030 = vmatpush1.msra.mxu0 0.0
    %1031 = vmatprep.subr.mxu0 0.0
    %1032 = vmatpush1.msra.mxu0 0.0
    %1033 = vmatprep.subr.mxu0 0.0
    %1034 = vmatpush1.msra.mxu0 0.0
    %1035 = vmatprep.subr.mxu0 0.0
    %1036 = vmatpush1.msra.mxu0 0.0
    %1037 = vmatprep.subr.mxu0 0.0
    %1038 = vmatpush1.msra.mxu0 0.0
    %1039 = vmatprep.subr.mxu0 0.0
    %1040 = vmatpush1.msra.mxu0 0.0
    %1041 = vmatprep.subr.mxu0 0.0
    %1042 = vmatpush1.msra.mxu0 0.0
    %1043 = vmatprep.subr.mxu0 0.0
    %1044 = vmatpush1.msra.mxu0 0.0
    %1045 = vmatprep.subr.mxu0 0.0
    %1046 = vmatpush1.msra.mxu0 0.0
    %1047 = vmatprep.subr.mxu0 0.0
    %1048 = vmatpush1.msra.mxu0 0.0
    %1049 = vmatprep.subr.mxu0 0.0
    %1050 = vmatpush1.msra.mxu0 0.0
    %1051 = vmatprep.subr.mxu0 0.0
    %1052 = vmatpush1.msra.mxu0 0.0
    %1053 = vmatprep.subr.mxu0 0.0
    %1054 = vmatpush1.msra.mxu0 0.0
    %1055 = vmatprep.subr.mxu0 0.0
    %1056 = vmatpush1.msra.mxu0 0.0
    %1057 = vmatprep.subr.mxu0 0.0
    %1058 = vmatpush1.msra.mxu0 0.0
    %1059 = vmatprep.subr.mxu0 0.0
    %1060 = vmatpush1.msra.mxu0 0.0
    %1061 = vmatprep.subr.mxu0 0.0
    %1062 = vmatpush1.msra.mxu0 0.0
    %1063 = vmatprep.subr.mxu0 0.0
    %1064 = vmatpush1.msra.mxu0 0.0
    %1065 = vmatprep.subr.mxu0 0.0
    %1066 = vmatpush1.msra.mxu0 0.0
    %1067 = vmatprep.mubr.f32.mxu0 0.0
    %1068 = vmatmul.mubr.f32.gmra.mrb[0].mxu0 %v1001
    %v1069 = vpop.f32.mrb[0].mxu0
    %v1070 = vadd.f32 0.0, %v1069
    %v1071 = vpop.f32.mrb[0].mxu0
    %1072 = vdwg.mxu0
    %1074 = vrot.lane.b32.xlu0 %v924, 8
    %v1075 = vpop.permute.xlu0 %1074
    %1078 = vrot.lane.b32.xlu0 %v997, 16
    %v1079 = vpop.permute.xlu0 %1078
    %1082 = vrot.lane.b32.xlu0 %v1070, 24
    %v1083 = vpop.permute.xlu0 %1082
    %v1085 = vsel %vm425, %v851, %v1075
    %vm1086 = vcmask 130048
    %v1087 = vsel %vm1086, %v1085, %v1079
    %vm1088 = vcmask 195584
    %v1089 = vsel %vm1088, %v1087, %v1083
    %v1090 = vlaneseq
    %v1091 = vshrl.u32 %v1090, 7
    %v1092 = vsub.s32 5, %v1091
    %v1093 = vrot.slane %v95, %v1092
    %v1095 = vsel %vm97, %v1089, 0
    %1097 = vmatprep.subr.mxu0 0.0
    %1098 = vmatpush1.msra.mxu0 %v397
    %1099 = vmatprep.subr.mxu0 0.0
    %1100 = vmatpush1.msra.mxu0 %v398
    %1101 = vmatprep.subr.mxu0 0.0
    %1102 = vmatpush1.msra.mxu0 %v399
    %1103 = vmatprep.subr.mxu0 0.0
    %1104 = vmatpush1.msra.mxu0 %v400
    %1105 = vmatprep.subr.mxu0 0.0
    %1106 = vmatpush1.msra.mxu0 0.0
    %1107 = vmatprep.subr.mxu0 0.0
    %1108 = vmatpush1.msra.mxu0 0.0
    %1109 = vmatprep.subr.mxu0 0.0
    %1110 = vmatpush1.msra.mxu0 0.0
    %1111 = vmatprep.subr.mxu0 0.0
    %1112 = vmatpush1.msra.mxu0 0.0
    %1113 = vmatprep.subr.mxu0 0.0
    %1114 = vmatpush1.msra.mxu0 0.0
    %1115 = vmatprep.subr.mxu0 0.0
    %1116 = vmatpush1.msra.mxu0 0.0
    %1117 = vmatprep.subr.mxu0 0.0
    %1118 = vmatpush1.msra.mxu0 0.0
    %1119 = vmatprep.subr.mxu0 0.0
    %1120 = vmatpush1.msra.mxu0 0.0
    %1121 = vmatprep.subr.mxu0 0.0
    %1122 = vmatpush1.msra.mxu0 0.0
    %1123 = vmatprep.subr.mxu0 0.0
    %1124 = vmatpush1.msra.mxu0 0.0
    %1125 = vmatprep.subr.mxu0 0.0
    %1126 = vmatpush1.msra.mxu0 0.0
    %1127 = vmatprep.subr.mxu0 0.0
    %1128 = vmatpush1.msra.mxu0 0.0
    %1129 = vmatprep.subr.mxu0 0.0
    %1130 = vmatpush1.msra.mxu0 0.0
    %1131 = vmatprep.subr.mxu0 0.0
    %1132 = vmatpush1.msra.mxu0 0.0
    %1133 = vmatprep.subr.mxu0 0.0
    %1134 = vmatpush1.msra.mxu0 0.0
    %1135 = vmatprep.subr.mxu0 0.0
    %1136 = vmatpush1.msra.mxu0 0.0
    %1137 = vmatprep.subr.mxu0 0.0
    %1138 = vmatpush1.msra.mxu0 0.0
    %1139 = vmatprep.subr.mxu0 0.0
    %1140 = vmatpush1.msra.mxu0 0.0
    %1141 = vmatprep.subr.mxu0 0.0
    %1142 = vmatpush1.msra.mxu0 0.0
    %1143 = vmatprep.subr.mxu0 0.0
    %1144 = vmatpush1.msra.mxu0 0.0
    %1145 = vmatprep.subr.mxu0 0.0
    %1146 = vmatpush1.msra.mxu0 0.0
    %1147 = vmatprep.subr.mxu0 0.0
    %1148 = vmatpush1.msra.mxu0 0.0
    %1149 = vmatprep.subr.mxu0 0.0
    %1150 = vmatpush1.msra.mxu0 0.0
    %1151 = vmatprep.subr.mxu0 0.0
    %1152 = vmatpush1.msra.mxu0 0.0
    %1153 = vmatprep.subr.mxu0 0.0
    %1154 = vmatpush1.msra.mxu0 0.0
    %1155 = vmatprep.subr.mxu0 0.0
    %1156 = vmatpush1.msra.mxu0 0.0
    %1157 = vmatprep.subr.mxu0 0.0
    %1158 = vmatpush1.msra.mxu0 0.0
    %1159 = vmatprep.subr.mxu0 0.0
    %1160 = vmatpush1.msra.mxu0 0.0
    %1161 = vmatprep.mubr.f32.mxu0 0.0
    %1162 = vmatmul.mubr.f32.gmra.mrb[0].mxu0 %v1095
    %v1163 = vpop.f32.mrb[0].mxu0
    %v1164 = vadd.f32 %v1093, %v1163
    %v1165 = vpop.f32.mrb[0].mxu0
    %1166 = vdwg.mxu0
    %v1167 = vadd.f32 %v1164, %v91
    %1169 = vrot.lane.b32.xlu0 %v223, 120
    %v1170 = vpop.permute.xlu0 %1169
    %1171 = vrot.lane.b32.xlu0 %v223, 112
    %v1172 = vpop.permute.xlu0 %1171
    %1173 = vrot.lane.b32.xlu0 %v223, 104
    %v1174 = vpop.permute.xlu0 %1173
    %1176 = vrot.lane.b32.xlu0 %v306, 120
    %v1177 = vpop.permute.xlu0 %1176
    %1178 = vrot.lane.b32.xlu0 %v306, 112
    %v1179 = vpop.permute.xlu0 %1178
    %1180 = vrot.lane.b32.xlu0 %v306, 104
    %v1181 = vpop.permute.xlu0 %1180
    %1183 = vrot.lane.b32.xlu0 %v389, 120
    %v1184 = vpop.permute.xlu0 %1183
    %1186 = vrot.lane.b32.xlu0 %v389, 112
    %v1187 = vpop.permute.xlu0 %1186
    %1189 = vrot.lane.b32.xlu0 %v389, 104
    %v1190 = vpop.permute.xlu0 %1189
    %v1192 = vsel %vm425, %v223, 0
    %v1194 = vsel %vm425, %v306, 0
    %1196 = vmatprep.subr.mxu0 0.0
    %1197 = vmatpush1.xpose.msra.mxu0 %v1194
    %1198 = vmatprep.subr.mxu0 0.0
    %1199 = vmatpush1.xpose.msra.mxu0 0.0
    %1200 = vmatprep.subr.mxu0 0.0
    %1201 = vmatpush1.xpose.msra.mxu0 0.0
    %1202 = vmatprep.subr.mxu0 0.0
    %1203 = vmatpush1.xpose.msra.mxu0 0.0
    %1204 = vmatprep.subr.mxu0 0.0
    %1205 = vmatpush1.xpose.msra.mxu0 0.0
    %1206 = vmatprep.subr.mxu0 0.0
    %1207 = vmatpush1.xpose.msra.mxu0 0.0
    %1208 = vmatprep.subr.mxu0 0.0
    %1209 = vmatpush1.xpose.msra.mxu0 0.0
    %1210 = vmatprep.subr.mxu0 0.0
    %1211 = vmatpush1.xpose.msra.mxu0 0.0
    %1212 = vmatprep.subr.mxu0 0.0
    %1213 = vmatpush1.xpose.msra.mxu0 0.0
    %1214 = vmatprep.subr.mxu0 0.0
    %1215 = vmatpush1.xpose.msra.mxu0 0.0
    %1216 = vmatprep.subr.mxu0 0.0
    %1217 = vmatpush1.xpose.msra.mxu0 0.0
    %1218 = vmatprep.subr.mxu0 0.0
    %1219 = vmatpush1.xpose.msra.mxu0 0.0
    %1220 = vmatprep.subr.mxu0 0.0
    %1221 = vmatpush1.xpose.msra.mxu0 0.0
    %1222 = vmatprep.subr.mxu0 0.0
    %1223 = vmatpush1.xpose.msra.mxu0 0.0
    %1224 = vmatprep.subr.mxu0 0.0
    %1225 = vmatpush1.xpose.msra.mxu0 0.0
    %1226 = vmatprep.subr.mxu0 0.0
    %1227 = vmatpush1.xpose.msra.mxu0 0.0
    %1228 = vmatprep.subr.mxu0 0.0
    %1229 = vmatpush1.xpose.msra.mxu0 0.0
    %1230 = vmatprep.subr.mxu0 0.0
    %1231 = vmatpush1.xpose.msra.mxu0 0.0
    %1232 = vmatprep.subr.mxu0 0.0
    %1233 = vmatpush1.xpose.msra.mxu0 0.0
    %1234 = vmatprep.subr.mxu0 0.0
    %1235 = vmatpush1.xpose.msra.mxu0 0.0
    %1236 = vmatprep.subr.mxu0 0.0
    %1237 = vmatpush1.xpose.msra.mxu0 0.0
    %1238 = vmatprep.subr.mxu0 0.0
    %1239 = vmatpush1.xpose.msra.mxu0 0.0
    %1240 = vmatprep.subr.mxu0 0.0
    %1241 = vmatpush1.xpose.msra.mxu0 0.0
    %1242 = vmatprep.subr.mxu0 0.0
    %1243 = vmatpush1.xpose.msra.mxu0 0.0
    %1244 = vmatprep.subr.mxu0 0.0
    %1245 = vmatpush1.xpose.msra.mxu0 0.0
    %1246 = vmatprep.subr.mxu0 0.0
    %1247 = vmatpush1.xpose.msra.mxu0 0.0
    %1248 = vmatprep.subr.mxu0 0.0
    %1249 = vmatpush1.xpose.msra.mxu0 0.0
    %1250 = vmatprep.subr.mxu0 0.0
    %1251 = vmatpush1.xpose.msra.mxu0 0.0
    %1252 = vmatprep.subr.mxu0 0.0
    %1253 = vmatpush1.xpose.msra.mxu0 0.0
    %1254 = vmatprep.subr.mxu0 0.0
    %1255 = vmatpush1.xpose.msra.mxu0 0.0
    %1256 = vmatprep.subr.mxu0 0.0
    %1257 = vmatpush1.xpose.msra.mxu0 0.0
    %1258 = vmatprep.subr.mxu0 0.0
    %1259 = vmatpush1.xpose.msra.mxu0 0.0
    %1260 = vmatprep.mubr.f32.mxu0 0.0
    %1261 = vmatmul.mubr.f32.gmra.mrb[0].mxu0 %v1192
    %v1262 = vpop.f32.mrb[0].mxu0
    %v1263 = vadd.f32 0.0, %v1262
    %v1264 = vpop.f32.mrb[0].mxu0
    %1265 = vdwg.mxu0
    %v1266 = vsel %vm425, %v1170, 0
    %v1268 = vsel %vm425, %v1177, 0
    %1270 = vmatprep.subr.mxu0 0.0
    %1271 = vmatpush1.xpose.msra.mxu0 %v1268
    %1272 = vmatprep.subr.mxu0 0.0
    %1273 = vmatpush1.xpose.msra.mxu0 0.0
    %1274 = vmatprep.subr.mxu0 0.0
    %1275 = vmatpush1.xpose.msra.mxu0 0.0
    %1276 = vmatprep.subr.mxu0 0.0
    %1277 = vmatpush1.xpose.msra.mxu0 0.0
    %1278 = vmatprep.subr.mxu0 0.0
    %1279 = vmatpush1.xpose.msra.mxu0 0.0
    %1280 = vmatprep.subr.mxu0 0.0
    %1281 = vmatpush1.xpose.msra.mxu0 0.0
    %1282 = vmatprep.subr.mxu0 0.0
    %1283 = vmatpush1.xpose.msra.mxu0 0.0
    %1284 = vmatprep.subr.mxu0 0.0
    %1285 = vmatpush1.xpose.msra.mxu0 0.0
    %1286 = vmatprep.subr.mxu0 0.0
    %1287 = vmatpush1.xpose.msra.mxu0 0.0
    %1288 = vmatprep.subr.mxu0 0.0
    %1289 = vmatpush1.xpose.msra.mxu0 0.0
    %1290 = vmatprep.subr.mxu0 0.0
    %1291 = vmatpush1.xpose.msra.mxu0 0.0
    %1292 = vmatprep.subr.mxu0 0.0
    %1293 = vmatpush1.xpose.msra.mxu0 0.0
    %1294 = vmatprep.subr.mxu0 0.0
    %1295 = vmatpush1.xpose.msra.mxu0 0.0
    %1296 = vmatprep.subr.mxu0 0.0
    %1297 = vmatpush1.xpose.msra.mxu0 0.0
    %1298 = vmatprep.subr.mxu0 0.0
    %1299 = vmatpush1.xpose.msra.mxu0 0.0
    %1300 = vmatprep.subr.mxu0 0.0
    %1301 = vmatpush1.xpose.msra.mxu0 0.0
    %1302 = vmatprep.subr.mxu0 0.0
    %1303 = vmatpush1.xpose.msra.mxu0 0.0
    %1304 = vmatprep.subr.mxu0 0.0
    %1305 = vmatpush1.xpose.msra.mxu0 0.0
    %1306 = vmatprep.subr.mxu0 0.0
    %1307 = vmatpush1.xpose.msra.mxu0 0.0
    %1308 = vmatprep.subr.mxu0 0.0
    %1309 = vmatpush1.xpose.msra.mxu0 0.0
    %1310 = vmatprep.subr.mxu0 0.0
    %1311 = vmatpush1.xpose.msra.mxu0 0.0
    %1312 = vmatprep.subr.mxu0 0.0
    %1313 = vmatpush1.xpose.msra.mxu0 0.0
    %1314 = vmatprep.subr.mxu0 0.0
    %1315 = vmatpush1.xpose.msra.mxu0 0.0
    %1316 = vmatprep.subr.mxu0 0.0
    %1317 = vmatpush1.xpose.msra.mxu0 0.0
    %1318 = vmatprep.subr.mxu0 0.0
    %1319 = vmatpush1.xpose.msra.mxu0 0.0
    %1320 = vmatprep.subr.mxu0 0.0
    %1321 = vmatpush1.xpose.msra.mxu0 0.0
    %1322 = vmatprep.subr.mxu0 0.0
    %1323 = vmatpush1.xpose.msra.mxu0 0.0
    %1324 = vmatprep.subr.mxu0 0.0
    %1325 = vmatpush1.xpose.msra.mxu0 0.0
    %1326 = vmatprep.subr.mxu0 0.0
    %1327 = vmatpush1.xpose.msra.mxu0 0.0
    %1328 = vmatprep.subr.mxu0 0.0
    %1329 = vmatpush1.xpose.msra.mxu0 0.0
    %1330 = vmatprep.subr.mxu0 0.0
    %1331 = vmatpush1.xpose.msra.mxu0 0.0
    %1332 = vmatprep.subr.mxu0 0.0
    %1333 = vmatpush1.xpose.msra.mxu0 0.0
    %1334 = vmatprep.mubr.f32.mxu0 0.0
    %1335 = vmatmul.mubr.f32.gmra.mrb[0].mxu0 %v1266
    %v1336 = vpop.f32.mrb[0].mxu0
    %v1337 = vadd.f32 0.0, %v1336
    %v1338 = vpop.f32.mrb[0].mxu0
    %1339 = vdwg.mxu0
    %v1340 = vsel %vm425, %v1172, 0
    %v1342 = vsel %vm425, %v1179, 0
    %1344 = vmatprep.subr.mxu0 0.0
    %1345 = vmatpush1.xpose.msra.mxu0 %v1342
    %1346 = vmatprep.subr.mxu0 0.0
    %1347 = vmatpush1.xpose.msra.mxu0 0.0
    %1348 = vmatprep.subr.mxu0 0.0
    %1349 = vmatpush1.xpose.msra.mxu0 0.0
    %1350 = vmatprep.subr.mxu0 0.0
    %1351 = vmatpush1.xpose.msra.mxu0 0.0
    %1352 = vmatprep.subr.mxu0 0.0
    %1353 = vmatpush1.xpose.msra.mxu0 0.0
    %1354 = vmatprep.subr.mxu0 0.0
    %1355 = vmatpush1.xpose.msra.mxu0 0.0
    %1356 = vmatprep.subr.mxu0 0.0
    %1357 = vmatpush1.xpose.msra.mxu0 0.0
    %1358 = vmatprep.subr.mxu0 0.0
    %1359 = vmatpush1.xpose.msra.mxu0 0.0
    %1360 = vmatprep.subr.mxu0 0.0
    %1361 = vmatpush1.xpose.msra.mxu0 0.0
    %1362 = vmatprep.subr.mxu0 0.0
    %1363 = vmatpush1.xpose.msra.mxu0 0.0
    %1364 = vmatprep.subr.mxu0 0.0
    %1365 = vmatpush1.xpose.msra.mxu0 0.0
    %1366 = vmatprep.subr.mxu0 0.0
    %1367 = vmatpush1.xpose.msra.mxu0 0.0
    %1368 = vmatprep.subr.mxu0 0.0
    %1369 = vmatpush1.xpose.msra.mxu0 0.0
    %1370 = vmatprep.subr.mxu0 0.0
    %1371 = vmatpush1.xpose.msra.mxu0 0.0
    %1372 = vmatprep.subr.mxu0 0.0
    %1373 = vmatpush1.xpose.msra.mxu0 0.0
    %1374 = vmatprep.subr.mxu0 0.0
    %1375 = vmatpush1.xpose.msra.mxu0 0.0
    %1376 = vmatprep.subr.mxu0 0.0
    %1377 = vmatpush1.xpose.msra.mxu0 0.0
    %1378 = vmatprep.subr.mxu0 0.0
    %1379 = vmatpush1.xpose.msra.mxu0 0.0
    %1380 = vmatprep.subr.mxu0 0.0
    %1381 = vmatpush1.xpose.msra.mxu0 0.0
    %1382 = vmatprep.subr.mxu0 0.0
    %1383 = vmatpush1.xpose.msra.mxu0 0.0
    %1384 = vmatprep.subr.mxu0 0.0
    %1385 = vmatpush1.xpose.msra.mxu0 0.0
    %1386 = vmatprep.subr.mxu0 0.0
    %1387 = vmatpush1.xpose.msra.mxu0 0.0
    %1388 = vmatprep.subr.mxu0 0.0
    %1389 = vmatpush1.xpose.msra.mxu0 0.0
    %1390 = vmatprep.subr.mxu0 0.0
    %1391 = vmatpush1.xpose.msra.mxu0 0.0
    %1392 = vmatprep.subr.mxu0 0.0
    %1393 = vmatpush1.xpose.msra.mxu0 0.0
    %1394 = vmatprep.subr.mxu0 0.0
    %1395 = vmatpush1.xpose.msra.mxu0 0.0
    %1396 = vmatprep.subr.mxu0 0.0
    %1397 = vmatpush1.xpose.msra.mxu0 0.0
    %1398 = vmatprep.subr.mxu0 0.0
    %1399 = vmatpush1.xpose.msra.mxu0 0.0
    %1400 = vmatprep.subr.mxu0 0.0
    %1401 = vmatpush1.xpose.msra.mxu0 0.0
    %1402 = vmatprep.subr.mxu0 0.0
    %1403 = vmatpush1.xpose.msra.mxu0 0.0
    %1404 = vmatprep.subr.mxu0 0.0
    %1405 = vmatpush1.xpose.msra.mxu0 0.0
    %1406 = vmatprep.subr.mxu0 0.0
    %1407 = vmatpush1.xpose.msra.mxu0 0.0
    %1408 = vmatprep.mubr.f32.mxu0 0.0
    %1409 = vmatmul.mubr.f32.gmra.mrb[0].mxu0 %v1340
    %v1410 = vpop.f32.mrb[0].mxu0
    %v1411 = vadd.f32 0.0, %v1410
    %v1412 = vpop.f32.mrb[0].mxu0
    %1413 = vdwg.mxu0
    %v1414 = vsel %vm425, %v1174, 0
    %v1416 = vsel %vm425, %v1181, 0
    %1418 = vmatprep.subr.mxu0 0.0
    %1419 = vmatpush1.xpose.msra.mxu0 %v1416
    %1420 = vmatprep.subr.mxu0 0.0
    %1421 = vmatpush1.xpose.msra.mxu0 0.0
    %1422 = vmatprep.subr.mxu0 0.0
    %1423 = vmatpush1.xpose.msra.mxu0 0.0
    %1424 = vmatprep.subr.mxu0 0.0
    %1425 = vmatpush1.xpose.msra.mxu0 0.0
    %1426 = vmatprep.subr.mxu0 0.0
    %1427 = vmatpush1.xpose.msra.mxu0 0.0
    %1428 = vmatprep.subr.mxu0 0.0
    %1429 = vmatpush1.xpose.msra.mxu0 0.0
    %1430 = vmatprep.subr.mxu0 0.0
    %1431 = vmatpush1.xpose.msra.mxu0 0.0
    %1432 = vmatprep.subr.mxu0 0.0
    %1433 = vmatpush1.xpose.msra.mxu0 0.0
    %1434 = vmatprep.subr.mxu0 0.0
    %1435 = vmatpush1.xpose.msra.mxu0 0.0
    %1436 = vmatprep.subr.mxu0 0.0
    %1437 = vmatpush1.xpose.msra.mxu0 0.0
    %1438 = vmatprep.subr.mxu0 0.0
    %1439 = vmatpush1.xpose.msra.mxu0 0.0
    %1440 = vmatprep.subr.mxu0 0.0
    %1441 = vmatpush1.xpose.msra.mxu0 0.0
    %1442 = vmatprep.subr.mxu0 0.0
    %1443 = vmatpush1.xpose.msra.mxu0 0.0
    %1444 = vmatprep.subr.mxu0 0.0
    %1445 = vmatpush1.xpose.msra.mxu0 0.0
    %1446 = vmatprep.subr.mxu0 0.0
    %1447 = vmatpush1.xpose.msra.mxu0 0.0
    %1448 = vmatprep.subr.mxu0 0.0
    %1449 = vmatpush1.xpose.msra.mxu0 0.0
    %1450 = vmatprep.subr.mxu0 0.0
    %1451 = vmatpush1.xpose.msra.mxu0 0.0
    %1452 = vmatprep.subr.mxu0 0.0
    %1453 = vmatpush1.xpose.msra.mxu0 0.0
    %1454 = vmatprep.subr.mxu0 0.0
    %1455 = vmatpush1.xpose.msra.mxu0 0.0
    %1456 = vmatprep.subr.mxu0 0.0
    %1457 = vmatpush1.xpose.msra.mxu0 0.0
    %1458 = vmatprep.subr.mxu0 0.0
    %1459 = vmatpush1.xpose.msra.mxu0 0.0
    %1460 = vmatprep.subr.mxu0 0.0
    %1461 = vmatpush1.xpose.msra.mxu0 0.0
    %1462 = vmatprep.subr.mxu0 0.0
    %1463 = vmatpush1.xpose.msra.mxu0 0.0
    %1464 = vmatprep.subr.mxu0 0.0
    %1465 = vmatpush1.xpose.msra.mxu0 0.0
    %1466 = vmatprep.subr.mxu0 0.0
    %1467 = vmatpush1.xpose.msra.mxu0 0.0
    %1468 = vmatprep.subr.mxu0 0.0
    %1469 = vmatpush1.xpose.msra.mxu0 0.0
    %1470 = vmatprep.subr.mxu0 0.0
    %1471 = vmatpush1.xpose.msra.mxu0 0.0
    %1472 = vmatprep.subr.mxu0 0.0
    %1473 = vmatpush1.xpose.msra.mxu0 0.0
    %1474 = vmatprep.subr.mxu0 0.0
    %1475 = vmatpush1.xpose.msra.mxu0 0.0
    %1476 = vmatprep.subr.mxu0 0.0
    %1477 = vmatpush1.xpose.msra.mxu0 0.0
    %1478 = vmatprep.subr.mxu0 0.0
    %1479 = vmatpush1.xpose.msra.mxu0 0.0
    %1480 = vmatprep.subr.mxu0 0.0
    %1481 = vmatpush1.xpose.msra.mxu0 0.0
    %1482 = vmatprep.mubr.f32.mxu0 0.0
    %1483 = vmatmul.mubr.f32.gmra.mrb[0].mxu0 %v1414
    %v1484 = vpop.f32.mrb[0].mxu0
    %v1485 = vadd.f32 0.0, %v1484
    %v1486 = vpop.f32.mrb[0].mxu0
    %1487 = vdwg.mxu0
    %vm1488 = vcmp.gt.s32.totalorder %v94, 0
    %v1489 = vsel %vm1488, 1, 0
    %v1490 = vlaneseq
    %v1491 = vshrl.u32 %v1490, 7
    %v1492 = vsub.s32 0, %v1491
    %v1493 = vrot.slane %v1489, %v1492
    %vm1494 = vcmp.eq.s32.totalorder %v1493, 1
    %vm1495 = vmor %vm396, %vm1494
    %v1496 = vsel %vm1495, 1, 0
    %vm1497 = vcmp.eq.s32.totalorder %v1496, 1
    %v1498 = vsel %vm1497, -1e+18, %v1263
    %v1499 = vsel %vm1497, -1e+18, %v1337
    %v1500 = vsel %vm1497, -1e+18, %v1411
    %v1501 = vsel %vm1497, -1e+18, %v1485
    %v1502 = vsel %vm425, %v1498, -inf
    %1503 = vmax.xlane.f32.xlu0 %v1502
    %v1504 = vpop.xlane.xlu0 %1503
    %v1505 = vsel %vm425, %v1499, -inf
    %1506 = vmax.xlane.f32.xlu0 %v1505
    %v1507 = vpop.xlane.xlu0 %1506
    %v1508 = vsel %vm425, %v1500, -inf
    %1509 = vmax.xlane.f32.xlu0 %v1508
    %v1510 = vpop.xlane.xlu0 %1509
    %v1511 = vsel %vm425, %v1501, -inf
    %1512 = vmax.xlane.f32.xlu0 %v1511
    %v1513 = vpop.xlane.xlu0 %1512
    %v1514 = vsub.f32 %v1498, %v1504
    %v1515 = vsub.f32 %v1499, %v1507
    %v1516 = vsub.f32 %v1500, %v1510
    %v1517 = vsub.f32 %v1501, %v1513
    %v1518 = vmul.f32 %v1514, 1.442695
    %v1519 = vpow.pop %v1518
    %v1520 = vmul.f32 %v1515, 1.442695
    %v1521 = vpow.pop %v1520
    %v1522 = vmul.f32 %v1516, 1.442695
    %v1523 = vpow.pop %v1522
    %v1524 = vmul.f32 %v1517, 1.442695
    %v1525 = vpow.pop %v1524
    %v1526 = vsel %vm425, %v1519, 0.0
    %1527 = vadd.xlane.f32.xlu0 %v1526
    %v1528 = vpop.xlane.xlu0 %1527
    %v1529 = vsel %vm425, %v1521, 0.0
    %1530 = vadd.xlane.f32.xlu0 %v1529
    %v1531 = vpop.xlane.xlu0 %1530
    %v1532 = vsel %vm425, %v1523, 0.0
    %1533 = vadd.xlane.f32.xlu0 %v1532
    %v1534 = vpop.xlane.xlu0 %1533
    %v1535 = vsel %vm425, %v1525, 0.0
    %1536 = vadd.xlane.f32.xlu0 %v1535
    %v1537 = vpop.xlane.xlu0 %1536
    %v1538 = vrcp.pop %v1528
    %v1539 = vrcp.pop %v1531
    %v1540 = vrcp.pop %v1534
    %v1541 = vrcp.pop %v1537
    %v1542 = vmul.f32 %v1519, %v1538
    %v1543 = vmul.f32 %v1521, %v1539
    %v1544 = vmul.f32 %v1523, %v1540
    %v1545 = vmul.f32 %v1525, %v1541
    %s1546 = scalar_lea.vmem [#allocation11], 8
    %1547 = vst.msk [vmem:[%s1546] sm:$0xff] %vm425, %v1542
    %v1549 = vsel %vm425, %v1542, 0
    %1551 = vmatprep.subr.mxu0 0.0
    %1552 = vmatpush1.msra.mxu0 %v389
    %1553 = vmatprep.subr.mxu0 0.0
    %1554 = vmatpush1.msra.mxu0 0.0
    %1555 = vmatprep.subr.mxu0 0.0
    %1556 = vmatpush1.msra.mxu0 0.0
    %1557 = vmatprep.subr.mxu0 0.0
    %1558 = vmatpush1.msra.mxu0 0.0
    %1559 = vmatprep.subr.mxu0 0.0
    %1560 = vmatpush1.msra.mxu0 0.0
    %1561 = vmatprep.subr.mxu0 0.0
    %1562 = vmatpush1.msra.mxu0 0.0
    %1563 = vmatprep.subr.mxu0 0.0
    %1564 = vmatpush1.msra.mxu0 0.0
    %1565 = vmatprep.subr.mxu0 0.0
    %1566 = vmatpush1.msra.mxu0 0.0
    %1567 = vmatprep.subr.mxu0 0.0
    %1568 = vmatpush1.msra.mxu0 0.0
    %1569 = vmatprep.subr.mxu0 0.0
    %1570 = vmatpush1.msra.mxu0 0.0
    %1571 = vmatprep.subr.mxu0 0.0
    %1572 = vmatpush1.msra.mxu0 0.0
    %1573 = vmatprep.subr.mxu0 0.0
    %1574 = vmatpush1.msra.mxu0 0.0
    %1575 = vmatprep.subr.mxu0 0.0
    %1576 = vmatpush1.msra.mxu0 0.0
    %1577 = vmatprep.subr.mxu0 0.0
    %1578 = vmatpush1.msra.mxu0 0.0
    %1579 = vmatprep.subr.mxu0 0.0
    %1580 = vmatpush1.msra.mxu0 0.0
    %1581 = vmatprep.subr.mxu0 0.0
    %1582 = vmatpush1.msra.mxu0 0.0
    %1583 = vmatprep.subr.mxu0 0.0
    %1584 = vmatpush1.msra.mxu0 0.0
    %1585 = vmatprep.subr.mxu0 0.0
    %1586 = vmatpush1.msra.mxu0 0.0
    %1587 = vmatprep.subr.mxu0 0.0
    %1588 = vmatpush1.msra.mxu0 0.0
    %1589 = vmatprep.subr.mxu0 0.0
    %1590 = vmatpush1.msra.mxu0 0.0
    %1591 = vmatprep.subr.mxu0 0.0
    %1592 = vmatpush1.msra.mxu0 0.0
    %1593 = vmatprep.subr.mxu0 0.0
    %1594 = vmatpush1.msra.mxu0 0.0
    %1595 = vmatprep.subr.mxu0 0.0
    %1596 = vmatpush1.msra.mxu0 0.0
    %1597 = vmatprep.subr.mxu0 0.0
    %1598 = vmatpush1.msra.mxu0 0.0
    %1599 = vmatprep.subr.mxu0 0.0
    %1600 = vmatpush1.msra.mxu0 0.0
    %1601 = vmatprep.subr.mxu0 0.0
    %1602 = vmatpush1.msra.mxu0 0.0
    %1603 = vmatprep.subr.mxu0 0.0
    %1604 = vmatpush1.msra.mxu0 0.0
    %1605 = vmatprep.subr.mxu0 0.0
    %1606 = vmatpush1.msra.mxu0 0.0
    %1607 = vmatprep.subr.mxu0 0.0
    %1608 = vmatpush1.msra.mxu0 0.0
    %1609 = vmatprep.subr.mxu0 0.0
    %1610 = vmatpush1.msra.mxu0 0.0
    %1611 = vmatprep.subr.mxu0 0.0
    %1612 = vmatpush1.msra.mxu0 0.0
    %1613 = vmatprep.subr.mxu0 0.0
    %1614 = vmatpush1.msra.mxu0 0.0
    %1615 = vmatprep.mubr.f32.mxu0 0.0
    %1616 = vmatmul.mubr.f32.gmra.mrb[0].mxu0 %v1549
    %v1617 = vpop.f32.mrb[0].mxu0
    %v1618 = vadd.f32 0.0, %v1617
    %v1619 = vpop.f32.mrb[0].mxu0
    %1620 = vdwg.mxu0
    %v1622 = vsel %vm425, %v1543, 0
    %1624 = vmatprep.subr.mxu0 0.0
    %1625 = vmatpush1.msra.mxu0 %v1184
    %1626 = vmatprep.subr.mxu0 0.0
    %1627 = vmatpush1.msra.mxu0 0.0
    %1628 = vmatprep.subr.mxu0 0.0
    %1629 = vmatpush1.msra.mxu0 0.0
    %1630 = vmatprep.subr.mxu0 0.0
    %1631 = vmatpush1.msra.mxu0 0.0
    %1632 = vmatprep.subr.mxu0 0.0
    %1633 = vmatpush1.msra.mxu0 0.0
    %1634 = vmatprep.subr.mxu0 0.0
    %1635 = vmatpush1.msra.mxu0 0.0
    %1636 = vmatprep.subr.mxu0 0.0
    %1637 = vmatpush1.msra.mxu0 0.0
    %1638 = vmatprep.subr.mxu0 0.0
    %1639 = vmatpush1.msra.mxu0 0.0
    %1640 = vmatprep.subr.mxu0 0.0
    %1641 = vmatpush1.msra.mxu0 0.0
    %1642 = vmatprep.subr.mxu0 0.0
    %1643 = vmatpush1.msra.mxu0 0.0
    %1644 = vmatprep.subr.mxu0 0.0
    %1645 = vmatpush1.msra.mxu0 0.0
    %1646 = vmatprep.subr.mxu0 0.0
    %1647 = vmatpush1.msra.mxu0 0.0
    %1648 = vmatprep.subr.mxu0 0.0
    %1649 = vmatpush1.msra.mxu0 0.0
    %1650 = vmatprep.subr.mxu0 0.0
    %1651 = vmatpush1.msra.mxu0 0.0
    %1652 = vmatprep.subr.mxu0 0.0
    %1653 = vmatpush1.msra.mxu0 0.0
    %1654 = vmatprep.subr.mxu0 0.0
    %1655 = vmatpush1.msra.mxu0 0.0
    %1656 = vmatprep.subr.mxu0 0.0
    %1657 = vmatpush1.msra.mxu0 0.0
    %1658 = vmatprep.subr.mxu0 0.0
    %1659 = vmatpush1.msra.mxu0 0.0
    %1660 = vmatprep.subr.mxu0 0.0
    %1661 = vmatpush1.msra.mxu0 0.0
    %1662 = vmatprep.subr.mxu0 0.0
    %1663 = vmatpush1.msra.mxu0 0.0
    %1664 = vmatprep.subr.mxu0 0.0
    %1665 = vmatpush1.msra.mxu0 0.0
    %1666 = vmatprep.subr.mxu0 0.0
    %1667 = vmatpush1.msra.mxu0 0.0
    %1668 = vmatprep.subr.mxu0 0.0
    %1669 = vmatpush1.msra.mxu0 0.0
    %1670 = vmatprep.subr.mxu0 0.0
    %1671 = vmatpush1.msra.mxu0 0.0
    %1672 = vmatprep.subr.mxu0 0.0
    %1673 = vmatpush1.msra.mxu0 0.0
    %1674 = vmatprep.subr.mxu0 0.0
    %1675 = vmatpush1.msra.mxu0 0.0
    %1676 = vmatprep.subr.mxu0 0.0
    %1677 = vmatpush1.msra.mxu0 0.0
    %1678 = vmatprep.subr.mxu0 0.0
    %1679 = vmatpush1.msra.mxu0 0.0
    %1680 = vmatprep.subr.mxu0 0.0
    %1681 = vmatpush1.msra.mxu0 0.0
    %1682 = vmatprep.subr.mxu0 0.0
    %1683 = vmatpush1.msra.mxu0 0.0
    %1684 = vmatprep.subr.mxu0 0.0
    %1685 = vmatpush1.msra.mxu0 0.0
    %1686 = vmatprep.subr.mxu0 0.0
    %1687 = vmatpush1.msra.mxu0 0.0
    %1688 = vmatprep.mubr.f32.mxu0 0.0
    %1689 = vmatmul.mubr.f32.gmra.mrb[0].mxu0 %v1622
    %v1690 = vpop.f32.mrb[0].mxu0
    %v1691 = vadd.f32 0.0, %v1690
    %v1692 = vpop.f32.mrb[0].mxu0
    %1693 = vdwg.mxu0
    %v1695 = vsel %vm425, %v1544, 0
    %1697 = vmatprep.subr.mxu0 0.0
    %1698 = vmatpush1.msra.mxu0 %v1187
    %1699 = vmatprep.subr.mxu0 0.0
    %1700 = vmatpush1.msra.mxu0 0.0
    %1701 = vmatprep.subr.mxu0 0.0
    %1702 = vmatpush1.msra.mxu0 0.0
    %1703 = vmatprep.subr.mxu0 0.0
    %1704 = vmatpush1.msra.mxu0 0.0
    %1705 = vmatprep.subr.mxu0 0.0
    %1706 = vmatpush1.msra.mxu0 0.0
    %1707 = vmatprep.subr.mxu0 0.0
    %1708 = vmatpush1.msra.mxu0 0.0
    %1709 = vmatprep.subr.mxu0 0.0
    %1710 = vmatpush1.msra.mxu0 0.0
    %1711 = vmatprep.subr.mxu0 0.0
    %1712 = vmatpush1.msra.mxu0 0.0
    %1713 = vmatprep.subr.mxu0 0.0
    %1714 = vmatpush1.msra.mxu0 0.0
    %1715 = vmatprep.subr.mxu0 0.0
    %1716 = vmatpush1.msra.mxu0 0.0
    %1717 = vmatprep.subr.mxu0 0.0
    %1718 = vmatpush1.msra.mxu0 0.0
    %1719 = vmatprep.subr.mxu0 0.0
    %1720 = vmatpush1.msra.mxu0 0.0
    %1721 = vmatprep.subr.mxu0 0.0
    %1722 = vmatpush1.msra.mxu0 0.0
    %1723 = vmatprep.subr.mxu0 0.0
    %1724 = vmatpush1.msra.mxu0 0.0
    %1725 = vmatprep.subr.mxu0 0.0
    %1726 = vmatpush1.msra.mxu0 0.0
    %1727 = vmatprep.subr.mxu0 0.0
    %1728 = vmatpush1.msra.mxu0 0.0
    %1729 = vmatprep.subr.mxu0 0.0
    %1730 = vmatpush1.msra.mxu0 0.0
    %1731 = vmatprep.subr.mxu0 0.0
    %1732 = vmatpush1.msra.mxu0 0.0
    %1733 = vmatprep.subr.mxu0 0.0
    %1734 = vmatpush1.msra.mxu0 0.0
    %1735 = vmatprep.subr.mxu0 0.0
    %1736 = vmatpush1.msra.mxu0 0.0
    %1737 = vmatprep.subr.mxu0 0.0
    %1738 = vmatpush1.msra.mxu0 0.0
    %1739 = vmatprep.subr.mxu0 0.0
    %1740 = vmatpush1.msra.mxu0 0.0
    %1741 = vmatprep.subr.mxu0 0.0
    %1742 = vmatpush1.msra.mxu0 0.0
    %1743 = vmatprep.subr.mxu0 0.0
    %1744 = vmatpush1.msra.mxu0 0.0
    %1745 = vmatprep.subr.mxu0 0.0
    %1746 = vmatpush1.msra.mxu0 0.0
    %1747 = vmatprep.subr.mxu0 0.0
    %1748 = vmatpush1.msra.mxu0 0.0
    %1749 = vmatprep.subr.mxu0 0.0
    %1750 = vmatpush1.msra.mxu0 0.0
    %1751 = vmatprep.subr.mxu0 0.0
    %1752 = vmatpush1.msra.mxu0 0.0
    %1753 = vmatprep.subr.mxu0 0.0
    %1754 = vmatpush1.msra.mxu0 0.0
    %1755 = vmatprep.subr.mxu0 0.0
    %1756 = vmatpush1.msra.mxu0 0.0
    %1757 = vmatprep.subr.mxu0 0.0
    %1758 = vmatpush1.msra.mxu0 0.0
    %1759 = vmatprep.subr.mxu0 0.0
    %1760 = vmatpush1.msra.mxu0 0.0
    %1761 = vmatprep.mubr.f32.mxu0 0.0
    %1762 = vmatmul.mubr.f32.gmra.mrb[0].mxu0 %v1695
    %v1763 = vpop.f32.mrb[0].mxu0
    %v1764 = vadd.f32 0.0, %v1763
    %v1765 = vpop.f32.mrb[0].mxu0
    %1766 = vdwg.mxu0
    %v1768 = vsel %vm425, %v1545, 0
    %1770 = vmatprep.subr.mxu0 0.0
    %1771 = vmatpush1.msra.mxu0 %v1190
    %1772 = vmatprep.subr.mxu0 0.0
    %1773 = vmatpush1.msra.mxu0 0.0
    %1774 = vmatprep.subr.mxu0 0.0
    %1775 = vmatpush1.msra.mxu0 0.0
    %1776 = vmatprep.subr.mxu0 0.0
    %1777 = vmatpush1.msra.mxu0 0.0
    %1778 = vmatprep.subr.mxu0 0.0
    %1779 = vmatpush1.msra.mxu0 0.0
    %1780 = vmatprep.subr.mxu0 0.0
    %1781 = vmatpush1.msra.mxu0 0.0
    %1782 = vmatprep.subr.mxu0 0.0
    %1783 = vmatpush1.msra.mxu0 0.0
    %1784 = vmatprep.subr.mxu0 0.0
    %1785 = vmatpush1.msra.mxu0 0.0
    %1786 = vmatprep.subr.mxu0 0.0
    %1787 = vmatpush1.msra.mxu0 0.0
    %1788 = vmatprep.subr.mxu0 0.0
    %1789 = vmatpush1.msra.mxu0 0.0
    %1790 = vmatprep.subr.mxu0 0.0
    %1791 = vmatpush1.msra.mxu0 0.0
    %1792 = vmatprep.subr.mxu0 0.0
    %1793 = vmatpush1.msra.mxu0 0.0
    %1794 = vmatprep.subr.mxu0 0.0
    %1795 = vmatpush1.msra.mxu0 0.0
    %1796 = vmatprep.subr.mxu0 0.0
    %1797 = vmatpush1.msra.mxu0 0.0
    %1798 = vmatprep.subr.mxu0 0.0
    %1799 = vmatpush1.msra.mxu0 0.0
    %1800 = vmatprep.subr.mxu0 0.0
    %1801 = vmatpush1.msra.mxu0 0.0
    %1802 = vmatprep.subr.mxu0 0.0
    %1803 = vmatpush1.msra.mxu0 0.0
    %1804 = vmatprep.subr.mxu0 0.0
    %1805 = vmatpush1.msra.mxu0 0.0
    %1806 = vmatprep.subr.mxu0 0.0
    %1807 = vmatpush1.msra.mxu0 0.0
    %1808 = vmatprep.subr.mxu0 0.0
    %1809 = vmatpush1.msra.mxu0 0.0
    %1810 = vmatprep.subr.mxu0 0.0
    %1811 = vmatpush1.msra.mxu0 0.0
    %1812 = vmatprep.subr.mxu0 0.0
    %1813 = vmatpush1.msra.mxu0 0.0
    %1814 = vmatprep.subr.mxu0 0.0
    %1815 = vmatpush1.msra.mxu0 0.0
    %1816 = vmatprep.subr.mxu0 0.0
    %1817 = vmatpush1.msra.mxu0 0.0
    %1818 = vmatprep.subr.mxu0 0.0
    %1819 = vmatpush1.msra.mxu0 0.0
    %1820 = vmatprep.subr.mxu0 0.0
    %1821 = vmatpush1.msra.mxu0 0.0
    %1822 = vmatprep.subr.mxu0 0.0
    %1823 = vmatpush1.msra.mxu0 0.0
    %1824 = vmatprep.subr.mxu0 0.0
    %1825 = vmatpush1.msra.mxu0 0.0
    %1826 = vmatprep.subr.mxu0 0.0
    %1827 = vmatpush1.msra.mxu0 0.0
    %1828 = vmatprep.subr.mxu0 0.0
    %1829 = vmatpush1.msra.mxu0 0.0
    %1830 = vmatprep.subr.mxu0 0.0
    %1831 = vmatpush1.msra.mxu0 0.0
    %1832 = vmatprep.subr.mxu0 0.0
    %1833 = vmatpush1.msra.mxu0 0.0
    %1834 = vmatprep.mubr.f32.mxu0 0.0
    %1835 = vmatmul.mubr.f32.gmra.mrb[0].mxu0 %v1768
    %v1836 = vpop.f32.mrb[0].mxu0
    %v1837 = vadd.f32 0.0, %v1836
    %v1838 = vpop.f32.mrb[0].mxu0
    %1839 = vdwg.mxu0
    %1841 = vrot.lane.b32.xlu0 %v1691, 8
    %v1842 = vpop.permute.xlu0 %1841
    %1845 = vrot.lane.b32.xlu0 %v1764, 16
    %v1846 = vpop.permute.xlu0 %1845
    %1849 = vrot.lane.b32.xlu0 %v1837, 24
    %v1850 = vpop.permute.xlu0 %1849
    %v1852 = vsel %vm425, %v1618, %v1842
    %v1853 = vsel %vm1086, %v1852, %v1846
    %v1854 = vsel %vm1088, %v1853, %v1850
    %v1856 = vsel %vm97, %v1854, 0
    %1858 = vmatprep.subr.mxu0 0.0
    %1859 = vmatpush1.msra.mxu0 %v397
    %1860 = vmatprep.subr.mxu0 0.0
    %1861 = vmatpush1.msra.mxu0 %v398
    %1862 = vmatprep.subr.mxu0 0.0
    %1863 = vmatpush1.msra.mxu0 %v399
    %1864 = vmatprep.subr.mxu0 0.0
    %1865 = vmatpush1.msra.mxu0 %v400
    %1866 = vmatprep.subr.mxu0 0.0
    %1867 = vmatpush1.msra.mxu0 0.0
    %1868 = vmatprep.subr.mxu0 0.0
    %1869 = vmatpush1.msra.mxu0 0.0
    %1870 = vmatprep.subr.mxu0 0.0
    %1871 = vmatpush1.msra.mxu0 0.0
    %1872 = vmatprep.subr.mxu0 0.0
    %1873 = vmatpush1.msra.mxu0 0.0
    %1874 = vmatprep.subr.mxu0 0.0
    %1875 = vmatpush1.msra.mxu0 0.0
    %1876 = vmatprep.subr.mxu0 0.0
    %1877 = vmatpush1.msra.mxu0 0.0
    %1878 = vmatprep.subr.mxu0 0.0
    %1879 = vmatpush1.msra.mxu0 0.0
    %1880 = vmatprep.subr.mxu0 0.0
    %1881 = vmatpush1.msra.mxu0 0.0
    %1882 = vmatprep.subr.mxu0 0.0
    %1883 = vmatpush1.msra.mxu0 0.0
    %1884 = vmatprep.subr.mxu0 0.0
    %1885 = vmatpush1.msra.mxu0 0.0
    %1886 = vmatprep.subr.mxu0 0.0
    %1887 = vmatpush1.msra.mxu0 0.0
    %1888 = vmatprep.subr.mxu0 0.0
    %1889 = vmatpush1.msra.mxu0 0.0
    %1890 = vmatprep.subr.mxu0 0.0
    %1891 = vmatpush1.msra.mxu0 0.0
    %1892 = vmatprep.subr.mxu0 0.0
    %1893 = vmatpush1.msra.mxu0 0.0
    %1894 = vmatprep.subr.mxu0 0.0
    %1895 = vmatpush1.msra.mxu0 0.0
    %1896 = vmatprep.subr.mxu0 0.0
    %1897 = vmatpush1.msra.mxu0 0.0
    %1898 = vmatprep.subr.mxu0 0.0
    %1899 = vmatpush1.msra.mxu0 0.0
    %1900 = vmatprep.subr.mxu0 0.0
    %1901 = vmatpush1.msra.mxu0 0.0
    %1902 = vmatprep.subr.mxu0 0.0
    %1903 = vmatpush1.msra.mxu0 0.0
    %1904 = vmatprep.subr.mxu0 0.0
    %1905 = vmatpush1.msra.mxu0 0.0
    %1906 = vmatprep.subr.mxu0 0.0
    %1907 = vmatpush1.msra.mxu0 0.0
    %1908 = vmatprep.subr.mxu0 0.0
    %1909 = vmatpush1.msra.mxu0 0.0
    %1910 = vmatprep.subr.mxu0 0.0
    %1911 = vmatpush1.msra.mxu0 0.0
    %1912 = vmatprep.subr.mxu0 0.0
    %1913 = vmatpush1.msra.mxu0 0.0
    %1914 = vmatprep.subr.mxu0 0.0
    %1915 = vmatpush1.msra.mxu0 0.0
    %1916 = vmatprep.subr.mxu0 0.0
    %1917 = vmatpush1.msra.mxu0 0.0
    %1918 = vmatprep.subr.mxu0 0.0
    %1919 = vmatpush1.msra.mxu0 0.0
    %1920 = vmatprep.subr.mxu0 0.0
    %1921 = vmatpush1.msra.mxu0 0.0
    %1922 = vmatprep.mubr.f32.mxu0 0.0
    %1923 = vmatmul.mubr.f32.gmra.mrb[0].mxu0 %v1856
    %v1924 = vpop.f32.mrb[0].mxu0
    %v1925 = vadd.f32 %v1093, %v1924
    %v1926 = vpop.f32.mrb[0].mxu0
    %1927 = vdwg.mxu0
    %v1928 = vadd.f32 %v1925, %v92
    %v1929 = vsel %vm97, %v1167, 0.0
    %1930 = vadd.xlane.f32.xlu0 %v1929
    %v1931 = vpop.xlane.xlu0 %1930
    %v1932 = vsel %vm97, %v1928, 0.0
    %1933 = vadd.xlane.f32.xlu0 %v1932
    %v1934 = vpop.xlane.xlu0 %1933
    %v1935 = vmul.f32 %v1931, %v104
    %v1936 = vmul.f32 %v1934, %v104
    %v1937 = vsub.f32 %v1167, %v1935
    %v1938 = vsub.f32 %v1928, %v1936
    %v1939 = vmul.f32 %v1937, %v1937
    %v1940 = vmul.f32 %v1938, %v1938
    %v1941 = vsel %vm97, %v1939, 0.0
    %1942 = vadd.xlane.f32.xlu0 %v1941
    %v1943 = vpop.xlane.xlu0 %1942
    %v1944 = vsel %vm97, %v1940, 0.0
    %1945 = vadd.xlane.f32.xlu0 %v1944
    %v1946 = vpop.xlane.xlu0 %1945
    %v1947 = vmul.f32 %v1943, %v104
    %v1948 = vmul.f32 %v1946, %v104
    %v1949 = vadd.f32 %v1947, 1e-06
    %v1950 = vadd.f32 %v1948, 1e-06
    %v1951 = vrsqrt.pop %v1949
    %v1952 = vrsqrt.pop %v1950
    %v1953 = vmul.f32 %v1937, %v1951
    %v1954 = vmul.f32 %v1938, %v1952
    %v1955 = vlaneseq
    %v1956 = vshrl.u32 %v1955, 7
    %v1957 = vsub.s32 6, %v1956
    %v1958 = vrot.slane %v95, %v1957
    %v1959 = vmul.f32 %v1953, %v1958
    %v1960 = vmul.f32 %v1954, %v1958
    %v1961 = vlaneseq
    %v1962 = vshrl.u32 %v1961, 7
    %v1963 = vsub.s32 7, %v1962
    %v1964 = vrot.slane %v95, %v1963
    %v1965 = vadd.f32 %v1959, %v1964
    %v1966 = vadd.f32 %v1960, %v1964
    %v1967 = vld [vmem:[#allocation8] sm:$0xff]
    %v1968 = vld [vmem:[#allocation8 + $0x8] sm:$0xff]
    %v1969 = vld [vmem:[#allocation8 + $0x10] sm:$0xff]
    %v1970 = vld [vmem:[#allocation8 + $0x18] sm:$0xff]
    %v1971 = vlaneseq
    %v1972 = vshrl.u32 %v1971, 7
    %v1973 = vsub.s32 1, %v1972
    %v1974 = vrot.slane %v96, %v1973
    %v1976 = vsel %vm97, %v1965, 0
    %v1979 = vsel %vm97, %v1966, 0
    %1981 = vmatprep.subr.mxu0 0.0
    %1982 = vmatpush1.msra.mxu0 %v1967
    %1983 = vmatprep.subr.mxu0 0.0
    %1984 = vmatpush1.msra.mxu0 %v1968
    %1985 = vmatprep.subr.mxu0 0.0
    %1986 = vmatpush1.msra.mxu0 %v1969
    %1987 = vmatprep.subr.mxu0 0.0
    %1988 = vmatpush1.msra.mxu0 %v1970
    %1989 = vmatprep.subr.mxu0 0.0
    %1990 = vmatpush1.msra.mxu0 0.0
    %1991 = vmatprep.subr.mxu0 0.0
    %1992 = vmatpush1.msra.mxu0 0.0
    %1993 = vmatprep.subr.mxu0 0.0
    %1994 = vmatpush1.msra.mxu0 0.0
    %1995 = vmatprep.subr.mxu0 0.0
    %1996 = vmatpush1.msra.mxu0 0.0
    %1997 = vmatprep.subr.mxu0 0.0
    %1998 = vmatpush1.msra.mxu0 0.0
    %1999 = vmatprep.subr.mxu0 0.0
    %2000 = vmatpush1.msra.mxu0 0.0
    %2001 = vmatprep.subr.mxu0 0.0
    %2002 = vmatpush1.msra.mxu0 0.0
    %2003 = vmatprep.subr.mxu0 0.0
    %2004 = vmatpush1.msra.mxu0 0.0
    %2005 = vmatprep.subr.mxu0 0.0
    %2006 = vmatpush1.msra.mxu0 0.0
    %2007 = vmatprep.subr.mxu0 0.0
    %2008 = vmatpush1.msra.mxu0 0.0
    %2009 = vmatprep.subr.mxu0 0.0
    %2010 = vmatpush1.msra.mxu0 0.0
    %2011 = vmatprep.subr.mxu0 0.0
    %2012 = vmatpush1.msra.mxu0 0.0
    %2013 = vmatprep.subr.mxu0 0.0
    %2014 = vmatpush1.msra.mxu0 0.0
    %2015 = vmatprep.subr.mxu0 0.0
    %2016 = vmatpush1.msra.mxu0 0.0
    %2017 = vmatprep.subr.mxu0 0.0
    %2018 = vmatpush1.msra.mxu0 0.0
    %2019 = vmatprep.subr.mxu0 0.0
    %2020 = vmatpush1.msra.mxu0 0.0
    %2021 = vmatprep.subr.mxu0 0.0
    %2022 = vmatpush1.msra.mxu0 0.0
    %2023 = vmatprep.subr.mxu0 0.0
    %2024 = vmatpush1.msra.mxu0 0.0
    %2025 = vmatprep.subr.mxu0 0.0
    %2026 = vmatpush1.msra.mxu0 0.0
    %2027 = vmatprep.subr.mxu0 0.0
    %2028 = vmatpush1.msra.mxu0 0.0
    %2029 = vmatprep.subr.mxu0 0.0
    %2030 = vmatpush1.msra.mxu0 0.0
    %2031 = vmatprep.subr.mxu0 0.0
    %2032 = vmatpush1.msra.mxu0 0.0
    %2033 = vmatprep.subr.mxu0 0.0
    %2034 = vmatpush1.msra.mxu0 0.0
    %2035 = vmatprep.subr.mxu0 0.0
    %2036 = vmatpush1.msra.mxu0 0.0
    %2037 = vmatprep.subr.mxu0 0.0
    %2038 = vmatpush1.msra.mxu0 0.0
    %2039 = vmatprep.subr.mxu0 0.0
    %2040 = vmatpush1.msra.mxu0 0.0
    %2041 = vmatprep.subr.mxu0 0.0
    %2042 = vmatpush1.msra.mxu0 0.0
    %2043 = vmatprep.subr.mxu0 0.0
    %2044 = vmatpush1.msra.mxu0 0.0
    %2045 = vmatprep.mubr.f32.mxu0 0.0
    %2046 = vmatmul.mubr.f32.gmra.mrb[0].mxu0 %v1976
    %v2047 = vpop.f32.mrb[0].mxu0
    %v2048 = vadd.f32 %v1974, %v2047
    %v2049 = vpop.f32.mrb[0].mxu0
    %2050 = vmatprep.mubr.f32.mxu0 0.0
    %2051 = vmatmul.mubr.f32.gmra.mrb[0].mxu0 %v1979
    %v2052 = vpop.f32.mrb[0].mxu0
    %v2053 = vadd.f32 %v1974, %v2052
    %v2054 = vpop.f32.mrb[0].mxu0
    %2055 = vdwg.mxu0
    %v2056 = vmax.f32 %v2048, 0.0
    %v2057 = vmax.f32 %v2053, 0.0
    %v2058 = vld [vmem:[%s8] sm:$0xff]
    %v2059 = vld [vmem:[%s8 + $0x8] sm:$0xff]
    %v2060 = vld [vmem:[%s8 + $0x10] sm:$0xff]
    %v2061 = vld [vmem:[%s8 + $0x18] sm:$0xff]
    %v2062 = vld [vmem:[%s8 + $0x20] sm:$0xff]
    %v2063 = vld [vmem:[%s8 + $0x28] sm:$0xff]
    %v2064 = vld [vmem:[%s8 + $0x30] sm:$0xff]
    %v2065 = vld [vmem:[%s8 + $0x38] sm:$0xff]
    %v2066 = vlaneseq
    %v2067 = vshrl.u32 %v2066, 7
    %v2068 = vsub.s32 0, %v2067
    %v2069 = vrot.slane %v96, %v2068
    %vm2070 = vcmask 523264
    %v2072 = vsel %vm2070, %v2056, 0
    %v2075 = vsel %vm2070, %v2057, 0
    %2077 = vmatprep.subr.mxu0 0.0
    %2078 = vmatpush1.msra.mxu0 %v2058
    %2079 = vmatprep.subr.mxu0 0.0
    %2080 = vmatpush1.msra.mxu0 %v2059
    %2081 = vmatprep.subr.mxu0 0.0
    %2082 = vmatpush1.msra.mxu0 %v2060
    %2083 = vmatprep.subr.mxu0 0.0
    %2084 = vmatpush1.msra.mxu0 %v2061
    %2085 = vmatprep.subr.mxu0 0.0
    %2086 = vmatpush1.msra.mxu0 %v2062
    %2087 = vmatprep.subr.mxu0 0.0
    %2088 = vmatpush1.msra.mxu0 %v2063
    %2089 = vmatprep.subr.mxu0 0.0
    %2090 = vmatpush1.msra.mxu0 %v2064
    %2091 = vmatprep.subr.mxu0 0.0
    %2092 = vmatpush1.msra.mxu0 %v2065
    %2093 = vmatprep.subr.mxu0 0.0
    %2094 = vmatpush1.msra.mxu0 0.0
    %2095 = vmatprep.subr.mxu0 0.0
    %2096 = vmatpush1.msra.mxu0 0.0
    %2097 = vmatprep.subr.mxu0 0.0
    %2098 = vmatpush1.msra.mxu0 0.0
    %2099 = vmatprep.subr.mxu0 0.0
    %2100 = vmatpush1.msra.mxu0 0.0
    %2101 = vmatprep.subr.mxu0 0.0
    %2102 = vmatpush1.msra.mxu0 0.0
    %2103 = vmatprep.subr.mxu0 0.0
    %2104 = vmatpush1.msra.mxu0 0.0
    %2105 = vmatprep.subr.mxu0 0.0
    %2106 = vmatpush1.msra.mxu0 0.0
    %2107 = vmatprep.subr.mxu0 0.0
    %2108 = vmatpush1.msra.mxu0 0.0
    %2109 = vmatprep.subr.mxu0 0.0
    %2110 = vmatpush1.msra.mxu0 0.0
    %2111 = vmatprep.subr.mxu0 0.0
    %2112 = vmatpush1.msra.mxu0 0.0
    %2113 = vmatprep.subr.mxu0 0.0
    %2114 = vmatpush1.msra.mxu0 0.0
    %2115 = vmatprep.subr.mxu0 0.0
    %2116 = vmatpush1.msra.mxu0 0.0
    %2117 = vmatprep.subr.mxu0 0.0
    %2118 = vmatpush1.msra.mxu0 0.0
    %2119 = vmatprep.subr.mxu0 0.0
    %2120 = vmatpush1.msra.mxu0 0.0
    %2121 = vmatprep.subr.mxu0 0.0
    %2122 = vmatpush1.msra.mxu0 0.0
    %2123 = vmatprep.subr.mxu0 0.0
    %2124 = vmatpush1.msra.mxu0 0.0
    %2125 = vmatprep.subr.mxu0 0.0
    %2126 = vmatpush1.msra.mxu0 0.0
    %2127 = vmatprep.subr.mxu0 0.0
    %2128 = vmatpush1.msra.mxu0 0.0
    %2129 = vmatprep.subr.mxu0 0.0
    %2130 = vmatpush1.msra.mxu0 0.0
    %2131 = vmatprep.subr.mxu0 0.0
    %2132 = vmatpush1.msra.mxu0 0.0
    %2133 = vmatprep.subr.mxu0 0.0
    %2134 = vmatpush1.msra.mxu0 0.0
    %2135 = vmatprep.subr.mxu0 0.0
    %2136 = vmatpush1.msra.mxu0 0.0
    %2137 = vmatprep.subr.mxu0 0.0
    %2138 = vmatpush1.msra.mxu0 0.0
    %2139 = vmatprep.subr.mxu0 0.0
    %2140 = vmatpush1.msra.mxu0 0.0
    %2141 = vmatprep.mubr.f32.mxu0 0.0
    %2142 = vmatmul.mubr.f32.gmra.mrb[0].mxu0 %v2072
    %v2143 = vpop.f32.mrb[0].mxu0
    %v2144 = vadd.f32 %v2069, %v2143
    %v2145 = vpop.f32.mrb[0].mxu0
    %2146 = vmatprep.mubr.f32.mxu0 0.0
    %2147 = vmatmul.mubr.f32.gmra.mrb[0].mxu0 %v2075
    %v2148 = vpop.f32.mrb[0].mxu0
    %v2149 = vadd.f32 %v2069, %v2148
    %v2150 = vpop.f32.mrb[0].mxu0
    %2151 = vdwg.mxu0
    %v2152 = vadd.f32 %v2144, %v1167
    %v2153 = vadd.f32 %v2149, %v1928
    %2154 = vst.msk [vmem:[#allocation10] sm:$0xff] %vm97, %v2152
    %2155 = vst.msk [vmem:[#allocation10 + $0x8] sm:$0xff] %vm97, %v2153
    // Predicated region
    $region54: #{tpu_custom_call.1} parent=1 // pred_check
      _
    $region55: #{tpu_custom_call.1} parent=1 // pred_check_branch
      %2157 = sbr.rel (0) target = $region57
    $region56: #{tpu_custom_call.1} parent=1 // pred_region
      %s2159 = ssub.s32 256, 256
      %2160 = vsyncadd [#allocation4], %s2159
      %s2161 = sshll.u32 [#allocation10], 4
      %s2162 = int_to_ptr.vmem [resolvable:$true] %s2161
      %2167 = dma.vmem_to_hbm [thread:$0]  %s2162, 256, %s9, [#allocation4], 128, 128, 8
    $region57: #{tpu_custom_call.1} parent=1 // pred_fallthru
      _
    // Predicated region
    $region58: #{tpu_custom_call.1} parent=1 // pred_check
      _
    $region59: #{tpu_custom_call.1} parent=1 // pred_check_branch
      %2169 = sbr.rel (0) target = $region61
    $region60: #{tpu_custom_call.1} parent=1 // pred_region
      %s2171 = ssub.s32 256, 256
      %2172 = vsyncadd [#allocation12], %s2171
      %s2173 = sshll.u32 [#allocation11], 4
      %s2174 = int_to_ptr.vmem [resolvable:$true] %s2173
      %2179 = dma.vmem_to_hbm [thread:$0]  %s2174, 256, %s10, [#allocation12], 128, 128, 8
    $region61: #{tpu_custom_call.1} parent=1 // pred_fallthru
      _
    // Predicated region
    $region62: #{tpu_custom_call.1} parent=1 // pred_check
      _
    $region63: #{tpu_custom_call.1} parent=1 // pred_check_branch
      %2181 = sbr.rel (0) target = $region65
    $region64: #{tpu_custom_call.1} parent=1 // pred_region
      %2182 = dma.done [#allocation4], 256
    $region65: #{tpu_custom_call.1} parent=1 // pred_fallthru
      _
    // Predicated region
    $region66: #{tpu_custom_call.1} parent=1 // pred_check
      _
    $region67: #{tpu_custom_call.1} parent=1 // pred_check_branch
      %2184 = sbr.rel (0) target = $region69
    $region68: #{tpu_custom_call.1} parent=1 // pred_region
      %2185 = dma.done [#allocation12], 256
    $region69: #{tpu_custom_call.1} parent=1 // pred_fallthru
      _
    %2186 = vsyncpa [#allocation3], 1
    %2187 = vsyncpa [#allocation6], 1
    %2188 = vsyncpa [#allocation9], 1
    %2189 = vsyncpa [#allocation4], 1
    %2190 = vsyncpa [#allocation12], 1

</llo_original>
